<compile_context>
chip_gen: v7x
topology: tpu7x:2x2x1
jax: 0.10.0
libtpu: 0.0.40
codegen_flags: <defaults>
</compile_context>

<pallas_src>
import functools

import numpy as np
import jax
import jax.numpy as jnp
from jax.experimental import pallas as pl
from jax.experimental.pallas import tpu as pltpu

K = 31           # conv kernel size
STRIDE = 2
PAD = 15
LRELU_SLOPE = 0.2
BN_EPS = 0.8     # BatchNorm1d(c, 0.8): 0.8 lands in eps (faithful to the reference)


# ----------------------------- Pallas kernel --------------------------------

def disc_fused_kernel(x_ref,
                      w1_ref, p1_ref, w2_ref, p2_ref,
                      w3_ref, p3_ref, w4_ref, p4_ref,
                      wh_ref, bh_ref, out_ref):
    """One batch tile of the whole Discriminator forward.

    x_ref  : (TB, Cin*L)   f32   NCL-flattened input signal tile
    wi_ref : (F_in, F_out) bf16  Toeplitz-expanded conv weight, prev-block BN folded in
    pi_ref : (1, F_out)    f32   conv bias (+ folded prev-BN shift term), per position
    wh_ref : (1, F4)       f32   head weight (position-major order, block-4 BN folded in)
    bh_ref : (1, 1)        f32   head bias (SMEM scalar)
    out_ref: (TB, 1)       f32   sigmoid validity
    """

    def block(a, w_ref, p_ref):
        y = jnp.dot(a.astype(w_ref.dtype), w_ref[...],
                    preferred_element_type=jnp.float32)   # MXU, f32 accumulate
        y = y + p_ref[...]                                 # bias row, (1,F) bcast
        # LeakyReLU(0.2) == max(y, 0.2*y); Dropout2d(0.25) is identity at inference.
        return jnp.maximum(y, LRELU_SLOPE * y)

    a = x_ref[...]                                         # (TB, Cin*L) f32
    a = block(a, w1_ref, p1_ref)
    a = block(a, w2_ref, p2_ref)
    a = block(a, w3_ref, p3_ref)
    a = block(a, w4_ref, p4_ref)
    # Adversarial head: Linear(F4 -> 1) + Sigmoid as VPU multiply + lane reduce.
    logit = jnp.sum(a * wh_ref[...], axis=-1, keepdims=True) + bh_ref[0, 0]
    out_ref[...] = (1.0 / (1.0 + jnp.exp(-logit))).astype(out_ref.dtype)


# ------------------------- parameter preparation -----------------------------

def _conv_as_dense(w, l_in, row_order):
    """Toeplitz-expand Conv1d(k=31, s=2, p=15) weights (Cout, Cin, K) into a dense
    [rows, L_out*Cout] matmul matrix acting on the flattened input.

    row_order 'cl': rows = ci*L_in + l  (NCL flatten of the network input)
    row_order 'lc': rows = l*Cin + ci   (layout of a previous block's flat output)
    Columns are o*Cout + co (position-major, channel-minor).
    """
    cout, cin, kk = w.shape
    l_out = (l_in + 2 * PAD - kk) // STRIDE + 1
    wt = np.transpose(np.asarray(w, np.float32), (2, 1, 0))      # (K, Cin, Cout)
    dense = np.zeros((cin * l_in, l_out * cout), np.float32)
    for o in range(l_out):
        for k in range(kk):
            l = STRIDE * o + k - PAD
            if 0 <= l < l_in:
                cols = slice(o * cout, (o + 1) * cout)
                if row_order == "cl":
                    dense[l::l_in, cols] = wt[k]                 # rows ci*L_in + l
                else:
                    dense[l * cin:(l + 1) * cin, cols] = wt[k]   # rows l*Cin + ci
    return dense, l_out


def init_params(key, signal_size, input_nc):
    """Raw parameters in PyTorch layout (Conv1d weight (Cout, Cin, K), etc.)."""
    chans = [input_nc, 16, 32, 64, 128]
    use_bn = [False, True, True, True]
    params = {"blocks": []}
    keys = jax.random.split(key, 4 * 3 + 2)
    ki = 0
    for li in range(4):
        cin, cout = chans[li], chans[li + 1]
        fan_in = cin * K
        w = (jax.random.normal(keys[ki], (cout, cin, K), jnp.float32)
             / jnp.sqrt(jnp.float32(fan_in)))
        ki += 1
        b = 0.01 * jax.random.normal(keys[ki], (cout,), jnp.float32)
        ki += 1
        if use_bn[li]:
            gamma = 1.0 + 0.05 * jax.random.normal(keys[ki], (cout,), jnp.float32)
            beta = jnp.zeros((cout,), jnp.float32)
            run_mean = jnp.zeros((cout,), jnp.float32)
            run_var = jnp.ones((cout,), jnp.float32)
            scale = gamma / jnp.sqrt(run_var + BN_EPS)
            shift = beta - run_mean * scale
        else:
            scale = jnp.ones((cout,), jnp.float32)
            shift = jnp.zeros((cout,), jnp.float32)
        ki += 1
        params["blocks"].append((w, b, scale, shift))

    ds_size = signal_size // (2 ** 4)
    feat = 128 * ds_size
    params["adv_w"] = (jax.random.normal(keys[ki], (1, feat), jnp.float32)
                       / jnp.sqrt(jnp.float32(feat)))
    ki += 1
    params["adv_b"] = 0.01 * jax.random.normal(keys[ki], (1,), jnp.float32)
    return params


def fold_params(params, signal_size):
    """One-time, data-independent parameter folding (kept OUT of the jitted forward).

    * Conv1d -> dense Toeplitz matmul matrices (bf16).
    * Block N's BatchNorm (eval, running stats, eps=0.8) is folded FORWARD into
      block N+1's weight rows / bias (exact: the scale/shift sit on the linear
      side of the next matmul); block 4's BN is folded into the head.
    """
    folded = {"blocks": []}
    l_cur = signal_size
    prev_scale = None
    prev_shift = None
    for li, (w, b, scale, shift) in enumerate(params["blocks"]):
        dense, l_out = _conv_as_dense(w, l_cur, "cl" if li == 0 else "lc")
        cout = w.shape[0]
        cin = w.shape[1]
        if li > 0:
            # rows are l*Cin + ci  ->  per-row channel = row % Cin
            row_scale = np.tile(np.asarray(prev_scale, np.float32), l_cur)   # (Cin*L,)
            row_shift = np.tile(np.asarray(prev_shift, np.float32), l_cur)
            bias_extra = row_shift @ dense                                   # uses UNSCALED W
            dense = dense * row_scale[:, None]
        else:
            bias_extra = np.zeros((l_out * cout,), np.float32)
        bias_row = np.tile(np.asarray(b, np.float32), l_out) + bias_extra    # (L_out*Cout,)
        # TODO(synk): quantize `dense` to fp8 (v7x) / int8 (v5e, v6e) with per-column
        # scales folded into bias_row to halve the weight DMA traffic.
        folded["blocks"].append((jnp.asarray(dense, jnp.bfloat16),
                                 jnp.asarray(bias_row[None, :], jnp.float32)))
        prev_scale, prev_shift = scale, shift
        l_cur = l_out

    # Head: permute PyTorch's channel-major flatten order (c*ds + l) to the
    # kernel's position-major order (l*C + c), then fold block-4's BN into it.
    cout_last = params["blocks"][-1][0].shape[0]                 # 128
    adv_w = np.asarray(params["adv_w"], np.float32)              # (1, 128*ds)
    head_w = adv_w.reshape(cout_last, l_cur).T.reshape(1, cout_last * l_cur)
    col_scale = np.tile(np.asarray(prev_scale, np.float32), l_cur)
    col_shift = np.tile(np.asarray(prev_shift, np.float32), l_cur)
    head_b = float(np.asarray(params["adv_b"], np.float32)[0]) + float(head_w[0] @ col_shift)
    head_w = head_w * col_scale[None, :]
    folded["head_w"] = jnp.asarray(head_w, jnp.float32)
    folded["head_b"] = jnp.asarray([[head_b]], jnp.float32)
    return folded


# ------------------------------- forward ------------------------------------

def discriminator_forward(folded, signal, *, tb=16):
    """signal: (B, Cin, L) f32 -> (B, 1) validity.  Single fused pallas_call with a
    batch grid: weights stay VMEM-resident across grid steps, batch tiles stream."""
    b = signal.shape[0]
    x = signal.reshape(b, -1).astype(jnp.float32)    # NCL flatten (block-1 row order)
    feat_in = x.shape[1]
    b_pad = ((b + tb - 1) // tb) * tb
    if b_pad != b:
        x = jnp.pad(x, ((0, b_pad - b), (0, 0)))

    (w1, p1), (w2, p2), (w3, p3), (w4, p4) = folded["blocks"]
    wh, bh = folded["head_w"], folded["head_b"]

    def resident(arr):
        # Same block index every grid step -> DMA'd once, stays resident in VMEM.
        return pl.BlockSpec(arr.shape, lambda i: (0, 0))

    flops = int(2 * b_pad * (w1.shape[0] * w1.shape[1] + w2.shape[0] * w2.shape[1]
                             + w3.shape[0] * w3.shape[1] + w4.shape[0] * w4.shape[1]
                             + wh.shape[1]))
    weight_bytes = int(2 * (w1.size + w2.size + w3.size + w4.size))      # bf16
    aux_bytes = int(4 * (p1.size + p2.size + p3.size + p4.size + wh.size + bh.size))
    io_bytes = int(4 * (b_pad * feat_in + b_pad))
    cost = pl.CostEstimate(flops=flops, transcendentals=int(b_pad),
                           bytes_accessed=weight_bytes + aux_bytes + io_bytes)

    out = pl.pallas_call(
        disc_fused_kernel,
        out_shape=jax.ShapeDtypeStruct((b_pad, 1), jnp.float32),
        grid=(b_pad // tb,),
        in_specs=[
            pl.BlockSpec((tb, feat_in), lambda i: (i, 0)),   # activations stream
            resident(w1), resident(p1),
            resident(w2), resident(p2),
            resident(w3), resident(p3),
            resident(w4), resident(p4),
            resident(wh),
            pl.BlockSpec(memory_space=pltpu.MemorySpace.SMEM),   # head bias scalar
        ],
        out_specs=pl.BlockSpec((tb, 1), lambda i: (i, 0)),
        compiler_params=pltpu.CompilerParams(
            dimension_semantics=("parallel",)),
        cost_estimate=cost,
    )(x, w1, p1, w2, p2, w3, p3, w4, p4, wh, bh)
    return out[:b]


def reference_forward(params, signal):
    """Pure-JAX f32 reference with PyTorch inference semantics (conv+bias,
    LeakyReLU(0.2), Dropout identity, BatchNorm1d eval with eps=0.8, Linear+Sigmoid)."""
    out = signal
    for (w, b, scale, shift) in params["blocks"]:
        out = jax.lax.conv_general_dilated(
            out, w, window_strides=(STRIDE,), padding=[(PAD, PAD)],
            dimension_numbers=("NCH", "OIH", "NCH"),
            precision=jax.lax.Precision.HIGHEST)
        out = out + b[None, :, None]
        out = jnp.where(out >= 0.0, out, LRELU_SLOPE * out)
        out = out * scale[None, :, None] + shift[None, :, None]
    flat = out.reshape(out.shape[0], -1)
    logit = jnp.sum(flat * params["adv_w"], axis=-1, keepdims=True) + params["adv_b"]
    return 1.0 / (1.0 + jnp.exp(-logit))


# ---------------------------------- main -------------------------------------

if __name__ == "__main__":
    batch = 32          # streamed as 2 grid steps of TB=16 rows (bf16 sublane pack)
    input_nc = 4
    signal_size = 64    # -> ds_size = 4, flattened head feature dim = 512

    key = jax.random.PRNGKey(0)
    pkey, xkey = jax.random.split(key)
    params = init_params(pkey, signal_size, input_nc)
    folded = fold_params(params, signal_size)            # one-time weight prep
    signal = jax.random.normal(xkey, (batch, input_nc, signal_size), jnp.float32)

    fwd = jax.jit(functools.partial(discriminator_forward, folded))
    validity = jax.block_until_ready(fwd(signal))

    assert validity.shape == (batch, 1), validity.shape
    assert bool(jnp.all(jnp.isfinite(validity)))
    assert bool(jnp.all((validity >= 0.0) & (validity <= 1.0)))

    ref = jax.block_until_ready(
        jax.jit(functools.partial(reference_forward, params))(signal))
    err = float(jnp.max(jnp.abs(validity - ref)))
    assert err < 3e-2, err     # bf16 matmul operands vs f32 reference

    print("KERNEL_OK")
</pallas_src>

<mosaic_0001>
module attributes {stable_mosaic.version = 11 : i64} {
  func.func @disc_fused_kernel(%arg0: i32, %arg1: memref<16x256xf32, #tpu.memory_space<vmem>>, %arg2: memref<256x512xbf16, #tpu.memory_space<vmem>>, %arg3: memref<1x512xf32, #tpu.memory_space<vmem>>, %arg4: memref<512x512xbf16, #tpu.memory_space<vmem>>, %arg5: memref<1x512xf32, #tpu.memory_space<vmem>>, %arg6: memref<512x512xbf16, #tpu.memory_space<vmem>>, %arg7: memref<1x512xf32, #tpu.memory_space<vmem>>, %arg8: memref<512x512xbf16, #tpu.memory_space<vmem>>, %arg9: memref<1x512xf32, #tpu.memory_space<vmem>>, %arg10: memref<1x512xf32, #tpu.memory_space<vmem>>, %arg11: memref<1x1xf32, #tpu.memory_space<smem>>, %arg12: memref<16x1xf32, #tpu.memory_space<vmem>>) attributes {dimension_semantics = [#tpu.dimension_semantics<parallel>], iteration_bounds = array<i64: 2>, scalar_prefetch = 0 : i64, scratch_operands = 0 : i64, tpu.core_type = #tpu.core_type<tc>, window_params = [{transform_indices = @transform_0, window_bounds = array<i64: 16, 256>}, {pipeline_mode = #tpu.pipeline_mode<synchronous>, transform_indices = @transform_1, window_bounds = array<i64: 256, 512>}, {pipeline_mode = #tpu.pipeline_mode<synchronous>, transform_indices = @transform_2, window_bounds = array<i64: 1, 512>}, {pipeline_mode = #tpu.pipeline_mode<synchronous>, transform_indices = @transform_3, window_bounds = array<i64: 512, 512>}, {pipeline_mode = #tpu.pipeline_mode<synchronous>, transform_indices = @transform_4, window_bounds = array<i64: 1, 512>}, {pipeline_mode = #tpu.pipeline_mode<synchronous>, transform_indices = @transform_5, window_bounds = array<i64: 512, 512>}, {pipeline_mode = #tpu.pipeline_mode<synchronous>, transform_indices = @transform_6, window_bounds = array<i64: 1, 512>}, {pipeline_mode = #tpu.pipeline_mode<synchronous>, transform_indices = @transform_7, window_bounds = array<i64: 512, 512>}, {pipeline_mode = #tpu.pipeline_mode<synchronous>, transform_indices = @transform_8, window_bounds = array<i64: 1, 512>}, {pipeline_mode = #tpu.pipeline_mode<synchronous>, transform_indices = @transform_9, window_bounds = array<i64: 1, 512>}, {transform_indices = @transform_10, window_bounds = array<i64: 1, 1>}, {transform_indices = @transform_11, window_bounds = array<i64: 16, 1>}]} {
    %c0 = arith.constant 0 : index
    %c0_0 = arith.constant 0 : index
    %0 = vector.load %arg1[%c0, %c0_0] : memref<16x256xf32, #tpu.memory_space<vmem>>, vector<16x256xf32>
    %1 = arith.truncf %0 : vector<16x256xf32> to vector<16x256xbf16>
    %c0_1 = arith.constant 0 : index
    %c0_2 = arith.constant 0 : index
    %2 = vector.load %arg2[%c0_1, %c0_2] : memref<256x512xbf16, #tpu.memory_space<vmem>>, vector<256x512xbf16>
    %cst = arith.constant dense<0.000000e+00> : vector<16x512xf32>
    %3 = tpu.matmul %1, %2, %cst {dimension_numbers = #tpu.dot_dimension_numbers<[1], [0], [0], [1], [0, 0, 1, 1], [], []>} : vector<16x256xbf16>, vector<256x512xbf16>, vector<16x512xf32> -> vector<16x512xf32>
    %c0_3 = arith.constant 0 : index
    %c0_4 = arith.constant 0 : index
    %4 = vector.load %arg3[%c0_3, %c0_4] : memref<1x512xf32, #tpu.memory_space<vmem>>, vector<1x512xf32>
    %5 = vector.broadcast %4 : vector<1x512xf32> to vector<16x512xf32>
    %6 = arith.addf %3, %5 : vector<16x512xf32>
    %cst_5 = arith.constant 2.000000e-01 : f32
    %7 = vector.broadcast %cst_5 : f32 to vector<16x512xf32>
    %8 = arith.mulf %7, %6 : vector<16x512xf32>
    %9 = arith.maximumf %6, %8 : vector<16x512xf32>
    %10 = arith.truncf %9 : vector<16x512xf32> to vector<16x512xbf16>
    %c0_6 = arith.constant 0 : index
    %c0_7 = arith.constant 0 : index
    %11 = vector.load %arg4[%c0_6, %c0_7] : memref<512x512xbf16, #tpu.memory_space<vmem>>, vector<512x512xbf16>
    %cst_8 = arith.constant dense<0.000000e+00> : vector<16x512xf32>
    %12 = tpu.matmul %10, %11, %cst_8 {dimension_numbers = #tpu.dot_dimension_numbers<[1], [0], [0], [1], [0, 0, 1, 1], [], []>} : vector<16x512xbf16>, vector<512x512xbf16>, vector<16x512xf32> -> vector<16x512xf32>
    %c0_9 = arith.constant 0 : index
    %c0_10 = arith.constant 0 : index
    %13 = vector.load %arg5[%c0_9, %c0_10] : memref<1x512xf32, #tpu.memory_space<vmem>>, vector<1x512xf32>
    %14 = vector.broadcast %13 : vector<1x512xf32> to vector<16x512xf32>
    %15 = arith.addf %12, %14 : vector<16x512xf32>
    %cst_11 = arith.constant 2.000000e-01 : f32
    %16 = vector.broadcast %cst_11 : f32 to vector<16x512xf32>
    %17 = arith.mulf %16, %15 : vector<16x512xf32>
    %18 = arith.maximumf %15, %17 : vector<16x512xf32>
    %19 = arith.truncf %18 : vector<16x512xf32> to vector<16x512xbf16>
    %c0_12 = arith.constant 0 : index
    %c0_13 = arith.constant 0 : index
    %20 = vector.load %arg6[%c0_12, %c0_13] : memref<512x512xbf16, #tpu.memory_space<vmem>>, vector<512x512xbf16>
    %cst_14 = arith.constant dense<0.000000e+00> : vector<16x512xf32>
    %21 = tpu.matmul %19, %20, %cst_14 {dimension_numbers = #tpu.dot_dimension_numbers<[1], [0], [0], [1], [0, 0, 1, 1], [], []>} : vector<16x512xbf16>, vector<512x512xbf16>, vector<16x512xf32> -> vector<16x512xf32>
    %c0_15 = arith.constant 0 : index
    %c0_16 = arith.constant 0 : index
    %22 = vector.load %arg7[%c0_15, %c0_16] : memref<1x512xf32, #tpu.memory_space<vmem>>, vector<1x512xf32>
    %23 = vector.broadcast %22 : vector<1x512xf32> to vector<16x512xf32>
    %24 = arith.addf %21, %23 : vector<16x512xf32>
    %cst_17 = arith.constant 2.000000e-01 : f32
    %25 = vector.broadcast %cst_17 : f32 to vector<16x512xf32>
    %26 = arith.mulf %25, %24 : vector<16x512xf32>
    %27 = arith.maximumf %24, %26 : vector<16x512xf32>
    %28 = arith.truncf %27 : vector<16x512xf32> to vector<16x512xbf16>
    %c0_18 = arith.constant 0 : index
    %c0_19 = arith.constant 0 : index
    %29 = vector.load %arg8[%c0_18, %c0_19] : memref<512x512xbf16, #tpu.memory_space<vmem>>, vector<512x512xbf16>
    %cst_20 = arith.constant dense<0.000000e+00> : vector<16x512xf32>
    %30 = tpu.matmul %28, %29, %cst_20 {dimension_numbers = #tpu.dot_dimension_numbers<[1], [0], [0], [1], [0, 0, 1, 1], [], []>} : vector<16x512xbf16>, vector<512x512xbf16>, vector<16x512xf32> -> vector<16x512xf32>
    %c0_21 = arith.constant 0 : index
    %c0_22 = arith.constant 0 : index
    %31 = vector.load %arg9[%c0_21, %c0_22] : memref<1x512xf32, #tpu.memory_space<vmem>>, vector<1x512xf32>
    %32 = vector.broadcast %31 : vector<1x512xf32> to vector<16x512xf32>
    %33 = arith.addf %30, %32 : vector<16x512xf32>
    %cst_23 = arith.constant 2.000000e-01 : f32
    %34 = vector.broadcast %cst_23 : f32 to vector<16x512xf32>
    %35 = arith.mulf %34, %33 : vector<16x512xf32>
    %36 = arith.maximumf %33, %35 : vector<16x512xf32>
    %c0_24 = arith.constant 0 : index
    %c0_25 = arith.constant 0 : index
    %37 = vector.load %arg10[%c0_24, %c0_25] : memref<1x512xf32, #tpu.memory_space<vmem>>, vector<1x512xf32>
    %38 = vector.broadcast %37 : vector<1x512xf32> to vector<16x512xf32>
    %39 = arith.mulf %36, %38 : vector<16x512xf32>
    %cst_26 = arith.constant dense<0.000000e+00> : vector<16xf32>
    %40 = vector.multi_reduction <add>, %39, %cst_26 [1] : vector<16x512xf32> to vector<16xf32>
    %41 = vector.shape_cast %40 : vector<16xf32> to vector<16x1xf32>
    %c0_27 = arith.constant 0 : index
    %c0_28 = arith.constant 0 : index
    %42 = memref.load %arg11[%c0_27, %c0_28] : memref<1x1xf32, #tpu.memory_space<smem>>
    %43 = vector.broadcast %42 : f32 to vector<16x1xf32>
    %44 = arith.addf %41, %43 : vector<16x1xf32>
    %cst_29 = arith.constant 0.000000e+00 : f32
    %45 = vector.broadcast %cst_29 : f32 to vector<16x1xf32>
    %46 = arith.subf %45, %44 : vector<16x1xf32>
    %47 = math.exp %46 : vector<16x1xf32>
    %cst_30 = arith.constant 1.000000e+00 : f32
    %48 = vector.broadcast %cst_30 : f32 to vector<16x1xf32>
    %49 = arith.addf %48, %47 : vector<16x1xf32>
    %cst_31 = arith.constant 1.000000e+00 : f32
    %50 = vector.broadcast %cst_31 : f32 to vector<16x1xf32>
    %51 = arith.divf %50, %49 : vector<16x1xf32>
    %c0_32 = arith.constant 0 : index
    %c0_33 = arith.constant 0 : index
    %52 = vector.load %arg12[%c0_32, %c0_33] : memref<16x1xf32, #tpu.memory_space<vmem>>, vector<16x1xf32>
    tpu.vector_store %arg12[%c0_32, %c0_33], %51 {strides = array<i32>} : memref<16x1xf32, #tpu.memory_space<vmem>>, vector<16x1xf32>,
    return
  }
  func.func @transform_0(%arg0: i32) -> (i32, i32) {
    %c0_i32 = arith.constant 0 : i32
    %c0_i32_0 = arith.constant 0 : i32
    return %arg0, %c0_i32 : i32, i32
  }
  func.func @transform_1(%arg0: i32) -> (i32, i32) {
    %c0_i32 = arith.constant 0 : i32
    %c0_i32_0 = arith.constant 0 : i32
    %c0_i32_1 = arith.constant 0 : i32
    return %c0_i32, %c0_i32_0 : i32, i32
  }
  func.func @transform_2(%arg0: i32) -> (i32, i32) {
    %c0_i32 = arith.constant 0 : i32
    %c0_i32_0 = arith.constant 0 : i32
    %c0_i32_1 = arith.constant 0 : i32
    return %c0_i32, %c0_i32_0 : i32, i32
  }
  func.func @transform_3(%arg0: i32) -> (i32, i32) {
    %c0_i32 = arith.constant 0 : i32
    %c0_i32_0 = arith.constant 0 : i32
    %c0_i32_1 = arith.constant 0 : i32
    return %c0_i32, %c0_i32_0 : i32, i32
  }
  func.func @transform_4(%arg0: i32) -> (i32, i32) {
    %c0_i32 = arith.constant 0 : i32
    %c0_i32_0 = arith.constant 0 : i32
    %c0_i32_1 = arith.constant 0 : i32
    return %c0_i32, %c0_i32_0 : i32, i32
  }
  func.func @transform_5(%arg0: i32) -> (i32, i32) {
    %c0_i32 = arith.constant 0 : i32
    %c0_i32_0 = arith.constant 0 : i32
    %c0_i32_1 = arith.constant 0 : i32
    return %c0_i32, %c0_i32_0 : i32, i32
  }
  func.func @transform_6(%arg0: i32) -> (i32, i32) {
    %c0_i32 = arith.constant 0 : i32
    %c0_i32_0 = arith.constant 0 : i32
    %c0_i32_1 = arith.constant 0 : i32
    return %c0_i32, %c0_i32_0 : i32, i32
  }
  func.func @transform_7(%arg0: i32) -> (i32, i32) {
    %c0_i32 = arith.constant 0 : i32
    %c0_i32_0 = arith.constant 0 : i32
    %c0_i32_1 = arith.constant 0 : i32
    return %c0_i32, %c0_i32_0 : i32, i32
  }
  func.func @transform_8(%arg0: i32) -> (i32, i32) {
    %c0_i32 = arith.constant 0 : i32
    %c0_i32_0 = arith.constant 0 : i32
    %c0_i32_1 = arith.constant 0 : i32
    return %c0_i32, %c0_i32_0 : i32, i32
  }
  func.func @transform_9(%arg0: i32) -> (i32, i32) {
    %c0_i32 = arith.constant 0 : i32
    %c0_i32_0 = arith.constant 0 : i32
    %c0_i32_1 = arith.constant 0 : i32
    return %c0_i32, %c0_i32_0 : i32, i32
  }
  func.func @transform_10(%arg0: i32) -> (i32, i32) {
    %c0_i32 = arith.constant 0 : i32
    %c0_i32_0 = arith.constant 0 : i32
    %c0_i32_1 = arith.constant 0 : i32
    return %c0_i32, %c0_i32_0 : i32, i32
  }
  func.func @transform_11(%arg0: i32) -> (i32, i32) {
    %c0_i32 = arith.constant 0 : i32
    %c0_i32_0 = arith.constant 0 : i32
    return %arg0, %c0_i32 : i32, i32
  }
}

</mosaic_0001>

<llo_original>
// kernel: discriminator_forward.1
$region0: #{discriminator_forward.1}
  #allocation0 [shape = 'u32[]', space=smem, size = 0x4, offset = 0x4, fixed_abs, tag = 'smem constant byte address 0x4 - core index']
  #allocation1 [shape = 'u32[144,128]{1,0:T(1,128)}', space=vmem, size = 0x12000, scoped, tag = 'internal scratch']
  #allocation2 [shape = 'f32[1,1]{1,0:T(1,128)S(6)}', space=smem, size = 0x200, scoped, tag = 'scoped memory for discriminator_forward.1']
  %s0 = inlined_call_operand.vmem [shape: f32[32,256], index: 0, kind: input, shape index: {}]
  %s1 = inlined_call_operand.vmem [shape: bf16[256,512], index: 1, kind: input, shape index: {}]
  %s2 = inlined_call_operand.vmem [shape: f32[1,512], index: 2, kind: input, shape index: {}]
  %s3 = inlined_call_operand.vmem [shape: bf16[512,512], index: 3, kind: input, shape index: {}]
  %s4 = inlined_call_operand.vmem [shape: f32[1,512], index: 4, kind: input, shape index: {}]
  %s5 = inlined_call_operand.vmem [shape: bf16[512,512], index: 5, kind: input, shape index: {}]
  %s6 = inlined_call_operand.vmem [shape: f32[1,512], index: 6, kind: input, shape index: {}]
  %s7 = inlined_call_operand.vmem [shape: bf16[512,512], index: 7, kind: input, shape index: {}]
  %s8 = inlined_call_operand.vmem [shape: f32[1,512], index: 8, kind: input, shape index: {}]
  %s9 = inlined_call_operand.vmem [shape: f32[1,512], index: 9, kind: input, shape index: {}]
  %s10 = inlined_call_operand.<no memory space> [shape: f32[1,1], index: 10, kind: input, shape index: {}]
  %s11 = inlined_call_operand.vmem [shape: f32[32,1], index: 11, kind: output, shape index: {}]
  %s12 = sld [smem:[#allocation0]]
  $region77: #{discriminator_forward.1} parent=0
    _
  %s14 = ssub.s32 1, %s12
  %s15 = scalar_select 0, %s14, %s12
  %16 = sst [smem:[#allocation2]] %s10
  loop: start=0, step=1, limit=4
  $region2: #{discriminator_forward.1} parent=0 // loop_pre_header
    _
  $region3: #{discriminator_forward.1} parent=0 // loop_header
    %s18 = sphi 0, %s22
    %p19 = scmp.ge.s32.totalorder %s18, 4
    %s28 = sphi 0, %s30
    %s31 = sphi 0, %s28
    %s32 = sphi 0, %s31
    %s48 = sphi 0, %s32
    %s52 = sphi 0, %s52
    %s54 = sphi 0, %s52
    %s55 = sphi 0, %s54
    %s69 = sphi 0, %s55
    %s73 = sphi 0, %s73
    %s75 = sphi 0, %s73
    %s76 = sphi 0, %s75
    %s90 = sphi 0, %s76
    %s94 = sphi 0, %s94
    %s96 = sphi 0, %s94
    %s97 = sphi 0, %s96
    %s111 = sphi 0, %s97
    %s115 = sphi 0, %s115
    %s117 = sphi 0, %s115
    %s118 = sphi 0, %s117
    %s132 = sphi 0, %s118
    %s136 = sphi 0, %s136
    %s138 = sphi 0, %s136
    %s139 = sphi 0, %s138
    %s153 = sphi 0, %s139
    %s157 = sphi 0, %s157
    %s159 = sphi 0, %s157
    %s160 = sphi 0, %s159
    %s174 = sphi 0, %s160
    %s178 = sphi 0, %s178
    %s180 = sphi 0, %s178
    %s181 = sphi 0, %s180
    %s195 = sphi 0, %s181
    %s199 = sphi 0, %s199
    %s201 = sphi 0, %s199
    %s202 = sphi 0, %s201
    %s216 = sphi 0, %s202
    %s220 = sphi 0, %s220
    %s222 = sphi 0, %s220
    %s223 = sphi 0, %s222
    %s237 = sphi 0, %s223
    %s241 = sphi 0, %s241
    %s243 = sphi 0, %s241
    %s244 = sphi 0, %s243
    %s258 = sphi 0, %s244
    %s264 = sphi 0, %s266
    %s267 = sphi 0, %s264
    %s268 = sphi 0, %s267
    %s284 = sphi 0, %s268
  $region4: #{discriminator_forward.1} parent=0 // loop_header_branch
    %21 = sbr.rel (%p19) target = $region8
  $region5: #{discriminator_forward.1} parent=0 // loop_body
    %s23 = ssub.s32 %s18, 1
    %s24 = ssub.s32 %s18, 2
    %s25 = sadd.s32 %s18, 1
    %s26 = ssub.s32 %s18, %s25
    %p27 = scmp.eq.s32.totalorder %s26, 0
    %s29 = sadd.s32 %s28, 1
    %s30 = scalar_select %p27, %s28, %s29
    %p33 = pneg %p27
    %p34 = scmp.eq.s32.totalorder %s18, 1
    %p35 = por %p33, %p34
    %p36 = scmp.ne.s32.totalorder %s28, %s31
    %p37 = scmp.eq.s32.totalorder %s18, 0
    %p38 = por %p36, %p37
    %p39 = scmp.ne.s32.totalorder %s28, %s31
    %p40 = scmp.eq.s32.totalorder %s23, 1
    %p41 = por %p39, %p40
    %p42 = scmp.ne.s32.totalorder %s31, %s32
    %p43 = scmp.eq.s32.totalorder %s23, 0
    %p44 = por %p42, %p43
    %p45 = scmp.ne.s32.totalorder %s31, %s32
    %p46 = scmp.eq.s32.totalorder %s24, 1
    %p47 = por %p45, %p46
    %p49 = scmp.ne.s32.totalorder %s32, %s48
    %p50 = scmp.eq.s32.totalorder %s24, 0
    %p51 = por %p49, %p50
    %s53 = sadd.s32 %s52, 1
    %p56 = scmp.eq.s32.totalorder %s18, 1
    %p57 = scmp.ne.s32.totalorder %s52, %s54
    %p58 = scmp.eq.s32.totalorder %s18, 0
    %p59 = por %p57, %p58
    %p60 = scmp.ne.s32.totalorder %s52, %s54
    %p61 = scmp.eq.s32.totalorder %s23, 1
    %p62 = por %p60, %p61
    %p63 = scmp.ne.s32.totalorder %s54, %s55
    %p64 = scmp.eq.s32.totalorder %s23, 0
    %p65 = por %p63, %p64
    %p66 = scmp.ne.s32.totalorder %s54, %s55
    %p67 = scmp.eq.s32.totalorder %s24, 1
    %p68 = por %p66, %p67
    %p70 = scmp.ne.s32.totalorder %s55, %s69
    %p71 = scmp.eq.s32.totalorder %s24, 0
    %p72 = por %p70, %p71
    %s74 = sadd.s32 %s73, 1
    %p77 = scmp.eq.s32.totalorder %s18, 1
    %p78 = scmp.ne.s32.totalorder %s73, %s75
    %p79 = scmp.eq.s32.totalorder %s18, 0
    %p80 = por %p78, %p79
    %p81 = scmp.ne.s32.totalorder %s73, %s75
    %p82 = scmp.eq.s32.totalorder %s23, 1
    %p83 = por %p81, %p82
    %p84 = scmp.ne.s32.totalorder %s75, %s76
    %p85 = scmp.eq.s32.totalorder %s23, 0
    %p86 = por %p84, %p85
    %p87 = scmp.ne.s32.totalorder %s75, %s76
    %p88 = scmp.eq.s32.totalorder %s24, 1
    %p89 = por %p87, %p88
    %p91 = scmp.ne.s32.totalorder %s76, %s90
    %p92 = scmp.eq.s32.totalorder %s24, 0
    %p93 = por %p91, %p92
    %s95 = sadd.s32 %s94, 1
    %p98 = scmp.eq.s32.totalorder %s18, 1
    %p99 = scmp.ne.s32.totalorder %s94, %s96
    %p100 = scmp.eq.s32.totalorder %s18, 0
    %p101 = por %p99, %p100
    %p102 = scmp.ne.s32.totalorder %s94, %s96
    %p103 = scmp.eq.s32.totalorder %s23, 1
    %p104 = por %p102, %p103
    %p105 = scmp.ne.s32.totalorder %s96, %s97
    %p106 = scmp.eq.s32.totalorder %s23, 0
    %p107 = por %p105, %p106
    %p108 = scmp.ne.s32.totalorder %s96, %s97
    %p109 = scmp.eq.s32.totalorder %s24, 1
    %p110 = por %p108, %p109
    %p112 = scmp.ne.s32.totalorder %s97, %s111
    %p113 = scmp.eq.s32.totalorder %s24, 0
    %p114 = por %p112, %p113
    %s116 = sadd.s32 %s115, 1
    %p119 = scmp.eq.s32.totalorder %s18, 1
    %p120 = scmp.ne.s32.totalorder %s115, %s117
    %p121 = scmp.eq.s32.totalorder %s18, 0
    %p122 = por %p120, %p121
    %p123 = scmp.ne.s32.totalorder %s115, %s117
    %p124 = scmp.eq.s32.totalorder %s23, 1
    %p125 = por %p123, %p124
    %p126 = scmp.ne.s32.totalorder %s117, %s118
    %p127 = scmp.eq.s32.totalorder %s23, 0
    %p128 = por %p126, %p127
    %p129 = scmp.ne.s32.totalorder %s117, %s118
    %p130 = scmp.eq.s32.totalorder %s24, 1
    %p131 = por %p129, %p130
    %p133 = scmp.ne.s32.totalorder %s118, %s132
    %p134 = scmp.eq.s32.totalorder %s24, 0
    %p135 = por %p133, %p134
    %s137 = sadd.s32 %s136, 1
    %p140 = scmp.eq.s32.totalorder %s18, 1
    %p141 = scmp.ne.s32.totalorder %s136, %s138
    %p142 = scmp.eq.s32.totalorder %s18, 0
    %p143 = por %p141, %p142
    %p144 = scmp.ne.s32.totalorder %s136, %s138
    %p145 = scmp.eq.s32.totalorder %s23, 1
    %p146 = por %p144, %p145
    %p147 = scmp.ne.s32.totalorder %s138, %s139
    %p148 = scmp.eq.s32.totalorder %s23, 0
    %p149 = por %p147, %p148
    %p150 = scmp.ne.s32.totalorder %s138, %s139
    %p151 = scmp.eq.s32.totalorder %s24, 1
    %p152 = por %p150, %p151
    %p154 = scmp.ne.s32.totalorder %s139, %s153
    %p155 = scmp.eq.s32.totalorder %s24, 0
    %p156 = por %p154, %p155
    %s158 = sadd.s32 %s157, 1
    %p161 = scmp.eq.s32.totalorder %s18, 1
    %p162 = scmp.ne.s32.totalorder %s157, %s159
    %p163 = scmp.eq.s32.totalorder %s18, 0
    %p164 = por %p162, %p163
    %p165 = scmp.ne.s32.totalorder %s157, %s159
    %p166 = scmp.eq.s32.totalorder %s23, 1
    %p167 = por %p165, %p166
    %p168 = scmp.ne.s32.totalorder %s159, %s160
    %p169 = scmp.eq.s32.totalorder %s23, 0
    %p170 = por %p168, %p169
    %p171 = scmp.ne.s32.totalorder %s159, %s160
    %p172 = scmp.eq.s32.totalorder %s24, 1
    %p173 = por %p171, %p172
    %p175 = scmp.ne.s32.totalorder %s160, %s174
    %p176 = scmp.eq.s32.totalorder %s24, 0
    %p177 = por %p175, %p176
    %s179 = sadd.s32 %s178, 1
    %p182 = scmp.eq.s32.totalorder %s18, 1
    %p183 = scmp.ne.s32.totalorder %s178, %s180
    %p184 = scmp.eq.s32.totalorder %s18, 0
    %p185 = por %p183, %p184
    %p186 = scmp.ne.s32.totalorder %s178, %s180
    %p187 = scmp.eq.s32.totalorder %s23, 1
    %p188 = por %p186, %p187
    %p189 = scmp.ne.s32.totalorder %s180, %s181
    %p190 = scmp.eq.s32.totalorder %s23, 0
    %p191 = por %p189, %p190
    %p192 = scmp.ne.s32.totalorder %s180, %s181
    %p193 = scmp.eq.s32.totalorder %s24, 1
    %p194 = por %p192, %p193
    %p196 = scmp.ne.s32.totalorder %s181, %s195
    %p197 = scmp.eq.s32.totalorder %s24, 0
    %p198 = por %p196, %p197
    %s200 = sadd.s32 %s199, 1
    %p203 = scmp.eq.s32.totalorder %s18, 1
    %p204 = scmp.ne.s32.totalorder %s199, %s201
    %p205 = scmp.eq.s32.totalorder %s18, 0
    %p206 = por %p204, %p205
    %p207 = scmp.ne.s32.totalorder %s199, %s201
    %p208 = scmp.eq.s32.totalorder %s23, 1
    %p209 = por %p207, %p208
    %p210 = scmp.ne.s32.totalorder %s201, %s202
    %p211 = scmp.eq.s32.totalorder %s23, 0
    %p212 = por %p210, %p211
    %p213 = scmp.ne.s32.totalorder %s201, %s202
    %p214 = scmp.eq.s32.totalorder %s24, 1
    %p215 = por %p213, %p214
    %p217 = scmp.ne.s32.totalorder %s202, %s216
    %p218 = scmp.eq.s32.totalorder %s24, 0
    %p219 = por %p217, %p218
    %s221 = sadd.s32 %s220, 1
    %p224 = scmp.eq.s32.totalorder %s18, 1
    %p225 = scmp.ne.s32.totalorder %s220, %s222
    %p226 = scmp.eq.s32.totalorder %s18, 0
    %p227 = por %p225, %p226
    %p228 = scmp.ne.s32.totalorder %s220, %s222
    %p229 = scmp.eq.s32.totalorder %s23, 1
    %p230 = por %p228, %p229
    %p231 = scmp.ne.s32.totalorder %s222, %s223
    %p232 = scmp.eq.s32.totalorder %s23, 0
    %p233 = por %p231, %p232
    %p234 = scmp.ne.s32.totalorder %s222, %s223
    %p235 = scmp.eq.s32.totalorder %s24, 1
    %p236 = por %p234, %p235
    %p238 = scmp.ne.s32.totalorder %s223, %s237
    %p239 = scmp.eq.s32.totalorder %s24, 0
    %p240 = por %p238, %p239
    %s242 = sadd.s32 %s241, 1
    %p245 = scmp.eq.s32.totalorder %s18, 1
    %p246 = scmp.ne.s32.totalorder %s241, %s243
    %p247 = scmp.eq.s32.totalorder %s18, 0
    %p248 = por %p246, %p247
    %p249 = scmp.ne.s32.totalorder %s241, %s243
    %p250 = scmp.eq.s32.totalorder %s23, 1
    %p251 = por %p249, %p250
    %p252 = scmp.ne.s32.totalorder %s243, %s244
    %p253 = scmp.eq.s32.totalorder %s23, 0
    %p254 = por %p252, %p253
    %p255 = scmp.ne.s32.totalorder %s243, %s244
    %p256 = scmp.eq.s32.totalorder %s24, 1
    %p257 = por %p255, %p256
    %p259 = scmp.ne.s32.totalorder %s244, %s258
    %p260 = scmp.eq.s32.totalorder %s24, 0
    %p261 = por %p259, %p260
    %s262 = ssub.s32 %s18, %s25
    %p263 = scmp.eq.s32.totalorder %s262, 0
    %s265 = sadd.s32 %s264, 1
    %s266 = scalar_select %p263, %s264, %s265
    %p269 = pneg %p263
    %p270 = scmp.eq.s32.totalorder %s18, 1
    %p271 = por %p269, %p270
    %p272 = scmp.ne.s32.totalorder %s264, %s267
    %p273 = scmp.eq.s32.totalorder %s18, 0
    %p274 = por %p272, %p273
    %p275 = scmp.ne.s32.totalorder %s264, %s267
    %p276 = scmp.eq.s32.totalorder %s23, 1
    %p277 = por %p275, %p276
    %p278 = scmp.ne.s32.totalorder %s267, %s268
    %p279 = scmp.eq.s32.totalorder %s23, 0
    %p280 = por %p278, %p279
    %p281 = scmp.ne.s32.totalorder %s267, %s268
    %p282 = scmp.eq.s32.totalorder %s24, 1
    %p283 = por %p281, %p282
    %p285 = scmp.ne.s32.totalorder %s268, %s284
    %p286 = scmp.eq.s32.totalorder %s24, 0
    %p287 = por %p285, %p286
    %p288 = scmp.le.s32.totalorder 1, %s18
    %p289 = scmp.lt.s32.totalorder %s18, 3
    %p290 = pnand %p288, %p289
    %p291 = pneg %p290
    // Predicated region
    $region9: #{discriminator_forward.1} parent=5 // pred_check
      _
    $region10: #{discriminator_forward.1} parent=5 // pred_check_branch
      %293 = sbr.rel (%p290) target = $region12
    $region11: #{discriminator_forward.1} parent=5 // pred_region
      %s294 = ssub.s32 %s18, 1
      // Predicated region
      $region13: #{discriminator_forward.1} parent=11 // pred_check
        %p295 = pneg %p65
      $region14: #{discriminator_forward.1} parent=11 // pred_check_branch
        %297 = sbr.rel (%p295) target = $region16
      $region15: #{discriminator_forward.1} parent=11 // pred_region
        _
      $region16: #{discriminator_forward.1} parent=11 // pred_fallthru
        _
      // Predicated region
      $region17: #{discriminator_forward.1} parent=11 // pred_check
        %p298 = pneg %p86
      $region18: #{discriminator_forward.1} parent=11 // pred_check_branch
        %300 = sbr.rel (%p298) target = $region20
      $region19: #{discriminator_forward.1} parent=11 // pred_region
        _
      $region20: #{discriminator_forward.1} parent=11 // pred_fallthru
        _
      // Predicated region
      $region21: #{discriminator_forward.1} parent=11 // pred_check
        %p301 = pneg %p107
      $region22: #{discriminator_forward.1} parent=11 // pred_check_branch
        %303 = sbr.rel (%p301) target = $region24
      $region23: #{discriminator_forward.1} parent=11 // pred_region
        _
      $region24: #{discriminator_forward.1} parent=11 // pred_fallthru
        _
      // Predicated region
      $region25: #{discriminator_forward.1} parent=11 // pred_check
        %p304 = pneg %p128
      $region26: #{discriminator_forward.1} parent=11 // pred_check_branch
        %306 = sbr.rel (%p304) target = $region28
      $region27: #{discriminator_forward.1} parent=11 // pred_region
        _
      $region28: #{discriminator_forward.1} parent=11 // pred_fallthru
        _
      // Predicated region
      $region29: #{discriminator_forward.1} parent=11 // pred_check
        %p307 = pneg %p149
      $region30: #{discriminator_forward.1} parent=11 // pred_check_branch
        %309 = sbr.rel (%p307) target = $region32
      $region31: #{discriminator_forward.1} parent=11 // pred_region
        _
      $region32: #{discriminator_forward.1} parent=11 // pred_fallthru
        _
      // Predicated region
      $region33: #{discriminator_forward.1} parent=11 // pred_check
        %p310 = pneg %p170
      $region34: #{discriminator_forward.1} parent=11 // pred_check_branch
        %312 = sbr.rel (%p310) target = $region36
      $region35: #{discriminator_forward.1} parent=11 // pred_region
        _
      $region36: #{discriminator_forward.1} parent=11 // pred_fallthru
        _
      // Predicated region
      $region37: #{discriminator_forward.1} parent=11 // pred_check
        %p313 = pneg %p191
      $region38: #{discriminator_forward.1} parent=11 // pred_check_branch
        %315 = sbr.rel (%p313) target = $region40
      $region39: #{discriminator_forward.1} parent=11 // pred_region
        _
      $region40: #{discriminator_forward.1} parent=11 // pred_fallthru
        _
      // Predicated region
      $region41: #{discriminator_forward.1} parent=11 // pred_check
        %p316 = pneg %p212
      $region42: #{discriminator_forward.1} parent=11 // pred_check_branch
        %318 = sbr.rel (%p316) target = $region44
      $region43: #{discriminator_forward.1} parent=11 // pred_region
        _
      $region44: #{discriminator_forward.1} parent=11 // pred_fallthru
        _
      // Predicated region
      $region45: #{discriminator_forward.1} parent=11 // pred_check
        %p319 = pneg %p233
      $region46: #{discriminator_forward.1} parent=11 // pred_check_branch
        %321 = sbr.rel (%p319) target = $region48
      $region47: #{discriminator_forward.1} parent=11 // pred_region
        _
      $region48: #{discriminator_forward.1} parent=11 // pred_fallthru
        _
      // Predicated region
      $region49: #{discriminator_forward.1} parent=11 // pred_check
        %p322 = pneg %p254
      $region50: #{discriminator_forward.1} parent=11 // pred_check_branch
        %324 = sbr.rel (%p322) target = $region52
      $region51: #{discriminator_forward.1} parent=11 // pred_region
        _
      $region52: #{discriminator_forward.1} parent=11 // pred_fallthru
        _
    $region12: #{discriminator_forward.1} parent=5 // pred_fallthru
      _
    %p325 = scmp.lt.s32.totalorder %s18, 2
    // Predicated region
    $region53: #{discriminator_forward.1} parent=5 // pred_check
      %p326 = pneg %p325
    $region54: #{discriminator_forward.1} parent=5 // pred_check_branch
      %328 = sbr.rel (%p326) target = $region56
    $region55: #{discriminator_forward.1} parent=5 // pred_region
      // Predicated region
      $region57: #{discriminator_forward.1} parent=55 // pred_check
        %p329 = pneg %p38
      $region58: #{discriminator_forward.1} parent=55 // pred_check_branch
        %331 = sbr.rel (%p329) target = $region60
      $region59: #{discriminator_forward.1} parent=55 // pred_region
        %s332 = smul.u32 2, %s18
        %p333 = scmp.lt.s32.totalorder %s332, 3
        %s334 = scalar_select %p333, %s332, 3
        %s335 = smul.addr %s334, 2
        %s336 = smul.addr %s335, 8
        %s337 = scalar_lea.vmem %s0, %s336
        %s338 = smul.u32 2, %s18
      $region60: #{discriminator_forward.1} parent=55 // pred_fallthru
        _
    $region56: #{discriminator_forward.1} parent=5 // pred_fallthru
      _
    %p339 = scmp.le.s32.totalorder 1, %s18
    %p340 = scmp.lt.s32.totalorder %s18, 3
    %p341 = pnand %p339, %p340
    %p342 = pneg %p341
    // Predicated region
    $region61: #{discriminator_forward.1} parent=5 // pred_check
      _
    $region62: #{discriminator_forward.1} parent=5 // pred_check_branch
      %344 = sbr.rel (%p341) target = $region64
    $region63: #{discriminator_forward.1} parent=5 // pred_region
      %s345 = ssub.s32 %s18, 1
      %s346 = smul.u32 2, %s23
      %p347 = scmp.lt.s32.totalorder %s346, 3
      %s348 = scalar_select %p347, %s346, 3
      %s349 = smul.addr %s348, 2
      %s350 = smul.addr %s349, 8
      %s351 = scalar_lea.vmem %s0, %s350
      %p352 = pneg %p44
      %p353 = pneg %p41
      %p354 = pneg %p65
      %p355 = pneg %p62
      %p356 = pneg %p86
      %p357 = pneg %p83
      %p358 = pneg %p107
      %p359 = pneg %p104
      %p360 = pneg %p128
      %p361 = pneg %p125
      %p362 = pneg %p149
      %p363 = pneg %p146
      %p364 = pneg %p170
      %p365 = pneg %p167
      %p366 = pneg %p191
      %p367 = pneg %p188
      %p368 = pneg %p212
      %p369 = pneg %p209
      %p370 = pneg %p233
      %p371 = pneg %p230
      %p372 = pneg %p254
      %p373 = pneg %p251
      %p374 = pneg %p280
      %p375 = pneg %p277
      %s376 = smul.u32 2, %s23
      %p377 = scmp.lt.s32.totalorder %s376, 3
      %s378 = scalar_select %p377, %s376, 3
      %s379 = smul.addr %s378, 8
      %s380 = scalar_lea.vmem %s11, %s379
      %s381 = smul.u32 2, %s23
      %p382 = scmp.lt.s32.totalorder %s381, 3
      %s383 = scalar_select %p382, %s381, 3
      %s384 = smul.addr %s383, 2
      %s385 = smul.addr %s384, 8
      %s386 = scalar_lea.vmem %s0, %s385
      %s387 = smul.u32 2, %s23
      %s388 = smul.u32 2, %s23
      %p389 = scmp.lt.s32.totalorder %s388, 3
      %s390 = scalar_select %p389, %s388, 3
      %s391 = smul.addr %s390, 8
      %s392 = scalar_lea.vmem %s11, %s391
      %s393 = smul.u32 2, %s23
      %v394 = vld [vmem:[%s386] sm:$0xff]
      %v395 = vld [vmem:[%s386 + $0x8] sm:$0xff]
      %v396 = vld [vmem:[%s386 + $0x10] sm:$0xff]
      %v397 = vld [vmem:[%s386 + $0x18] sm:$0xff]
      %v398 = vpack.c.bf16 %v396, %v394
      %v399 = vpack.c.bf16 %v397, %v395
      %v400 = vld [vmem:[%s1] sm:$0xff]
      %v401 = vld [vmem:[%s1 + $0x8] sm:$0xff]
      %v402 = vld [vmem:[%s1 + $0x10] sm:$0xff]
      %v403 = vld [vmem:[%s1 + $0x18] sm:$0xff]
      %v404 = vld [vmem:[%s1 + $0x20] sm:$0xff]
      %v405 = vld [vmem:[%s1 + $0x28] sm:$0xff]
      %v406 = vld [vmem:[%s1 + $0x30] sm:$0xff]
      %v407 = vld [vmem:[%s1 + $0x38] sm:$0xff]
      %v408 = vld [vmem:[%s1 + $0x40] sm:$0xff]
      %v409 = vld [vmem:[%s1 + $0x48] sm:$0xff]
      %v410 = vld [vmem:[%s1 + $0x50] sm:$0xff]
      %v411 = vld [vmem:[%s1 + $0x58] sm:$0xff]
      %v412 = vld [vmem:[%s1 + $0x60] sm:$0xff]
      %v413 = vld [vmem:[%s1 + $0x68] sm:$0xff]
      %v414 = vld [vmem:[%s1 + $0x70] sm:$0xff]
      %v415 = vld [vmem:[%s1 + $0x78] sm:$0xff]
      %v416 = vld [vmem:[%s1 + $0x80] sm:$0xff]
      %v417 = vld [vmem:[%s1 + $0x88] sm:$0xff]
      %v418 = vld [vmem:[%s1 + $0x90] sm:$0xff]
      %v419 = vld [vmem:[%s1 + $0x98] sm:$0xff]
      %v420 = vld [vmem:[%s1 + $0xa0] sm:$0xff]
      %v421 = vld [vmem:[%s1 + $0xa8] sm:$0xff]
      %v422 = vld [vmem:[%s1 + $0xb0] sm:$0xff]
      %v423 = vld [vmem:[%s1 + $0xb8] sm:$0xff]
      %v424 = vld [vmem:[%s1 + $0xc0] sm:$0xff]
      %v425 = vld [vmem:[%s1 + $0xc8] sm:$0xff]
      %v426 = vld [vmem:[%s1 + $0xd0] sm:$0xff]
      %v427 = vld [vmem:[%s1 + $0xd8] sm:$0xff]
      %v428 = vld [vmem:[%s1 + $0xe0] sm:$0xff]
      %v429 = vld [vmem:[%s1 + $0xe8] sm:$0xff]
      %v430 = vld [vmem:[%s1 + $0xf0] sm:$0xff]
      %v431 = vld [vmem:[%s1 + $0xf8] sm:$0xff]
      %v432 = vld [vmem:[%s1 + $0x100] sm:$0xff]
      %v433 = vld [vmem:[%s1 + $0x108] sm:$0xff]
      %v434 = vld [vmem:[%s1 + $0x110] sm:$0xff]
      %v435 = vld [vmem:[%s1 + $0x118] sm:$0xff]
      %v436 = vld [vmem:[%s1 + $0x120] sm:$0xff]
      %v437 = vld [vmem:[%s1 + $0x128] sm:$0xff]
      %v438 = vld [vmem:[%s1 + $0x130] sm:$0xff]
      %v439 = vld [vmem:[%s1 + $0x138] sm:$0xff]
      %v440 = vld [vmem:[%s1 + $0x140] sm:$0xff]
      %v441 = vld [vmem:[%s1 + $0x148] sm:$0xff]
      %v442 = vld [vmem:[%s1 + $0x150] sm:$0xff]
      %v443 = vld [vmem:[%s1 + $0x158] sm:$0xff]
      %v444 = vld [vmem:[%s1 + $0x160] sm:$0xff]
      %v445 = vld [vmem:[%s1 + $0x168] sm:$0xff]
      %v446 = vld [vmem:[%s1 + $0x170] sm:$0xff]
      %v447 = vld [vmem:[%s1 + $0x178] sm:$0xff]
      %v448 = vld [vmem:[%s1 + $0x180] sm:$0xff]
      %v449 = vld [vmem:[%s1 + $0x188] sm:$0xff]
      %v450 = vld [vmem:[%s1 + $0x190] sm:$0xff]
      %v451 = vld [vmem:[%s1 + $0x198] sm:$0xff]
      %v452 = vld [vmem:[%s1 + $0x1a0] sm:$0xff]
      %v453 = vld [vmem:[%s1 + $0x1a8] sm:$0xff]
      %v454 = vld [vmem:[%s1 + $0x1b0] sm:$0xff]
      %v455 = vld [vmem:[%s1 + $0x1b8] sm:$0xff]
      %v456 = vld [vmem:[%s1 + $0x1c0] sm:$0xff]
      %v457 = vld [vmem:[%s1 + $0x1c8] sm:$0xff]
      %v458 = vld [vmem:[%s1 + $0x1d0] sm:$0xff]
      %v459 = vld [vmem:[%s1 + $0x1d8] sm:$0xff]
      %v460 = vld [vmem:[%s1 + $0x1e0] sm:$0xff]
      %v461 = vld [vmem:[%s1 + $0x1e8] sm:$0xff]
      %v462 = vld [vmem:[%s1 + $0x1f0] sm:$0xff]
      %v463 = vld [vmem:[%s1 + $0x1f8] sm:$0xff]
      %v464 = vld [vmem:[%s2] sm:$0xf]
      %v466 = vlaneseq
      %v467 = vshrl.u32 %v466, 7
      %v468 = vsub.s32 0, %v467
      %v469 = vrot.slane %v464, %v468
      %v470 = vlaneseq
      %v471 = vshrl.u32 %v470, 7
      %v472 = vsub.s32 1, %v471
      %v473 = vrot.slane %v464, %v472
      %v474 = vlaneseq
      %v475 = vshrl.u32 %v474, 7
      %v476 = vsub.s32 2, %v475
      %v477 = vrot.slane %v464, %v476
      %v478 = vlaneseq
      %v479 = vshrl.u32 %v478, 7
      %v480 = vsub.s32 3, %v479
      %v481 = vrot.slane %v464, %v480
      %v550 = vunpack.c.l.b16 %v400
      %v551 = vunpack.c.h.b16 %v400
      %v552 = vunpack.c.l.b16 %v401
      %v553 = vunpack.c.h.b16 %v401
      %v554 = vunpack.c.l.b16 %v402
      %v555 = vunpack.c.h.b16 %v402
      %v556 = vunpack.c.l.b16 %v403
      %v557 = vunpack.c.h.b16 %v403
      %v558 = vunpack.c.l.b16 %v404
      %v559 = vunpack.c.h.b16 %v404
      %v560 = vunpack.c.l.b16 %v405
      %v561 = vunpack.c.h.b16 %v405
      %v562 = vunpack.c.l.b16 %v406
      %v563 = vunpack.c.h.b16 %v406
      %v564 = vunpack.c.l.b16 %v407
      %v565 = vunpack.c.h.b16 %v407
      %v566 = vunpack.c.l.b16 %v408
      %v567 = vunpack.c.h.b16 %v408
      %v568 = vunpack.c.l.b16 %v409
      %v569 = vunpack.c.h.b16 %v409
      %v570 = vunpack.c.l.b16 %v410
      %v571 = vunpack.c.h.b16 %v410
      %v572 = vunpack.c.l.b16 %v411
      %v573 = vunpack.c.h.b16 %v411
      %v574 = vunpack.c.l.b16 %v412
      %v575 = vunpack.c.h.b16 %v412
      %v576 = vunpack.c.l.b16 %v413
      %v577 = vunpack.c.h.b16 %v413
      %v578 = vunpack.c.l.b16 %v414
      %v579 = vunpack.c.h.b16 %v414
      %v580 = vunpack.c.l.b16 %v415
      %v581 = vunpack.c.h.b16 %v415
      %v582 = vunpack.c.l.b16 %v416
      %v583 = vunpack.c.h.b16 %v416
      %v584 = vunpack.c.l.b16 %v417
      %v585 = vunpack.c.h.b16 %v417
      %v586 = vunpack.c.l.b16 %v418
      %v587 = vunpack.c.h.b16 %v418
      %v588 = vunpack.c.l.b16 %v419
      %v589 = vunpack.c.h.b16 %v419
      %v590 = vunpack.c.l.b16 %v420
      %v591 = vunpack.c.h.b16 %v420
      %v592 = vunpack.c.l.b16 %v421
      %v593 = vunpack.c.h.b16 %v421
      %v594 = vunpack.c.l.b16 %v422
      %v595 = vunpack.c.h.b16 %v422
      %v596 = vunpack.c.l.b16 %v423
      %v597 = vunpack.c.h.b16 %v423
      %v598 = vunpack.c.l.b16 %v424
      %v599 = vunpack.c.h.b16 %v424
      %v600 = vunpack.c.l.b16 %v425
      %v601 = vunpack.c.h.b16 %v425
      %v602 = vunpack.c.l.b16 %v426
      %v603 = vunpack.c.h.b16 %v426
      %v604 = vunpack.c.l.b16 %v427
      %v605 = vunpack.c.h.b16 %v427
      %v606 = vunpack.c.l.b16 %v428
      %v607 = vunpack.c.h.b16 %v428
      %v608 = vunpack.c.l.b16 %v429
      %v609 = vunpack.c.h.b16 %v429
      %v610 = vunpack.c.l.b16 %v430
      %v611 = vunpack.c.h.b16 %v430
      %v612 = vunpack.c.l.b16 %v431
      %v613 = vunpack.c.h.b16 %v431
      %v614 = vunpack.c.l.b16 %v432
      %v615 = vunpack.c.h.b16 %v432
      %v616 = vunpack.c.l.b16 %v433
      %v617 = vunpack.c.h.b16 %v433
      %v618 = vunpack.c.l.b16 %v434
      %v619 = vunpack.c.h.b16 %v434
      %v620 = vunpack.c.l.b16 %v435
      %v621 = vunpack.c.h.b16 %v435
      %v622 = vunpack.c.l.b16 %v436
      %v623 = vunpack.c.h.b16 %v436
      %v624 = vunpack.c.l.b16 %v437
      %v625 = vunpack.c.h.b16 %v437
      %v626 = vunpack.c.l.b16 %v438
      %v627 = vunpack.c.h.b16 %v438
      %v628 = vunpack.c.l.b16 %v439
      %v629 = vunpack.c.h.b16 %v439
      %v630 = vunpack.c.l.b16 %v440
      %v631 = vunpack.c.h.b16 %v440
      %v632 = vunpack.c.l.b16 %v441
      %v633 = vunpack.c.h.b16 %v441
      %v634 = vunpack.c.l.b16 %v442
      %v635 = vunpack.c.h.b16 %v442
      %v636 = vunpack.c.l.b16 %v443
      %v637 = vunpack.c.h.b16 %v443
      %v638 = vunpack.c.l.b16 %v444
      %v639 = vunpack.c.h.b16 %v444
      %v640 = vunpack.c.l.b16 %v445
      %v641 = vunpack.c.h.b16 %v445
      %v642 = vunpack.c.l.b16 %v446
      %v643 = vunpack.c.h.b16 %v446
      %v644 = vunpack.c.l.b16 %v447
      %v645 = vunpack.c.h.b16 %v447
      %v646 = vunpack.c.l.b16 %v448
      %v647 = vunpack.c.h.b16 %v448
      %v648 = vunpack.c.l.b16 %v449
      %v649 = vunpack.c.h.b16 %v449
      %v650 = vunpack.c.l.b16 %v450
      %v651 = vunpack.c.h.b16 %v450
      %v652 = vunpack.c.l.b16 %v451
      %v653 = vunpack.c.h.b16 %v451
      %v654 = vunpack.c.l.b16 %v452
      %v655 = vunpack.c.h.b16 %v452
      %v656 = vunpack.c.l.b16 %v453
      %v657 = vunpack.c.h.b16 %v453
      %v658 = vunpack.c.l.b16 %v454
      %v659 = vunpack.c.h.b16 %v454
      %v660 = vunpack.c.l.b16 %v455
      %v661 = vunpack.c.h.b16 %v455
      %v662 = vunpack.c.l.b16 %v456
      %v663 = vunpack.c.h.b16 %v456
      %v664 = vunpack.c.l.b16 %v457
      %v665 = vunpack.c.h.b16 %v457
      %v666 = vunpack.c.l.b16 %v458
      %v667 = vunpack.c.h.b16 %v458
      %v668 = vunpack.c.l.b16 %v459
      %v669 = vunpack.c.h.b16 %v459
      %v670 = vunpack.c.l.b16 %v460
      %v671 = vunpack.c.h.b16 %v460
      %v672 = vunpack.c.l.b16 %v461
      %v673 = vunpack.c.h.b16 %v461
      %v674 = vunpack.c.l.b16 %v462
      %v675 = vunpack.c.h.b16 %v462
      %v676 = vunpack.c.l.b16 %v463
      %v677 = vunpack.c.h.b16 %v463
      %v678 = vpack.c.b16 %v554, %v550
      %v679 = vpack.c.b16 %v555, %v551
      %v680 = vpack.c.b16 %v556, %v552
      %v681 = vpack.c.b16 %v557, %v553
      %v682 = vpack.c.b16 %v562, %v558
      %v683 = vpack.c.b16 %v563, %v559
      %v684 = vpack.c.b16 %v564, %v560
      %v685 = vpack.c.b16 %v565, %v561
      %v686 = vpack.c.b16 %v570, %v566
      %v687 = vpack.c.b16 %v571, %v567
      %v688 = vpack.c.b16 %v572, %v568
      %v689 = vpack.c.b16 %v573, %v569
      %v690 = vpack.c.b16 %v578, %v574
      %v691 = vpack.c.b16 %v579, %v575
      %v692 = vpack.c.b16 %v580, %v576
      %v693 = vpack.c.b16 %v581, %v577
      %v694 = vpack.c.b16 %v586, %v582
      %v695 = vpack.c.b16 %v587, %v583
      %v696 = vpack.c.b16 %v588, %v584
      %v697 = vpack.c.b16 %v589, %v585
      %v698 = vpack.c.b16 %v594, %v590
      %v699 = vpack.c.b16 %v595, %v591
      %v700 = vpack.c.b16 %v596, %v592
      %v701 = vpack.c.b16 %v597, %v593
      %v702 = vpack.c.b16 %v602, %v598
      %v703 = vpack.c.b16 %v603, %v599
      %v704 = vpack.c.b16 %v604, %v600
      %v705 = vpack.c.b16 %v605, %v601
      %v706 = vpack.c.b16 %v610, %v606
      %v707 = vpack.c.b16 %v611, %v607
      %v708 = vpack.c.b16 %v612, %v608
      %v709 = vpack.c.b16 %v613, %v609
      %v710 = vpack.c.b16 %v618, %v614
      %v711 = vpack.c.b16 %v619, %v615
      %v712 = vpack.c.b16 %v620, %v616
      %v713 = vpack.c.b16 %v621, %v617
      %v714 = vpack.c.b16 %v626, %v622
      %v715 = vpack.c.b16 %v627, %v623
      %v716 = vpack.c.b16 %v628, %v624
      %v717 = vpack.c.b16 %v629, %v625
      %v718 = vpack.c.b16 %v634, %v630
      %v719 = vpack.c.b16 %v635, %v631
      %v720 = vpack.c.b16 %v636, %v632
      %v721 = vpack.c.b16 %v637, %v633
      %v722 = vpack.c.b16 %v642, %v638
      %v723 = vpack.c.b16 %v643, %v639
      %v724 = vpack.c.b16 %v644, %v640
      %v725 = vpack.c.b16 %v645, %v641
      %v726 = vpack.c.b16 %v650, %v646
      %v727 = vpack.c.b16 %v651, %v647
      %v728 = vpack.c.b16 %v652, %v648
      %v729 = vpack.c.b16 %v653, %v649
      %v730 = vpack.c.b16 %v658, %v654
      %v731 = vpack.c.b16 %v659, %v655
      %v732 = vpack.c.b16 %v660, %v656
      %v733 = vpack.c.b16 %v661, %v657
      %v734 = vpack.c.b16 %v666, %v662
      %v735 = vpack.c.b16 %v667, %v663
      %v736 = vpack.c.b16 %v668, %v664
      %v737 = vpack.c.b16 %v669, %v665
      %v738 = vpack.c.b16 %v674, %v670
      %v739 = vpack.c.b16 %v675, %v671
      %v740 = vpack.c.b16 %v676, %v672
      %v741 = vpack.c.b16 %v677, %v673
      %806 = vmatprep.subr.bf16.mxu0 %v679
      %807 = vmatpush1.bf16.msra.mxu0 %v678
      %808 = vmatprep.subr.bf16.mxu0 %v683
      %809 = vmatpush1.bf16.msra.mxu0 %v682
      %810 = vmatprep.subr.bf16.mxu0 %v687
      %811 = vmatpush1.bf16.msra.mxu0 %v686
      %812 = vmatprep.subr.bf16.mxu0 %v691
      %813 = vmatpush1.bf16.msra.mxu0 %v690
      %814 = vmatprep.subr.bf16.mxu0 %v695
      %815 = vmatpush1.bf16.msra.mxu0 %v694
      %816 = vmatprep.subr.bf16.mxu0 %v699
      %817 = vmatpush1.bf16.msra.mxu0 %v698
      %818 = vmatprep.subr.bf16.mxu0 %v703
      %819 = vmatpush1.bf16.msra.mxu0 %v702
      %820 = vmatprep.subr.bf16.mxu0 %v707
      %821 = vmatpush1.bf16.msra.mxu0 %v706
      %822 = vmatprep.subr.bf16.mxu0 %v711
      %823 = vmatpush1.bf16.msra.mxu0 %v710
      %824 = vmatprep.subr.bf16.mxu0 %v715
      %825 = vmatpush1.bf16.msra.mxu0 %v714
      %826 = vmatprep.subr.bf16.mxu0 %v719
      %827 = vmatpush1.bf16.msra.mxu0 %v718
      %828 = vmatprep.subr.bf16.mxu0 %v723
      %829 = vmatpush1.bf16.msra.mxu0 %v722
      %830 = vmatprep.subr.bf16.mxu0 %v727
      %831 = vmatpush1.bf16.msra.mxu0 %v726
      %832 = vmatprep.subr.bf16.mxu0 %v731
      %833 = vmatpush1.bf16.msra.mxu0 %v730
      %834 = vmatprep.subr.bf16.mxu0 %v735
      %835 = vmatpush1.bf16.msra.mxu0 %v734
      %836 = vmatprep.subr.bf16.mxu0 %v739
      %837 = vmatpush1.bf16.msra.mxu0 %v738
      %838 = vmatprep.mubr.bf16.mxu0 %v399
      %839 = vmatmul.mubr.bf16.gmra.mrb[0].mxu0 %v398
      %v840 = vpop.f32.mrb[0].mxu0
      %v841 = vadd.f32 %v469, %v840
      %v842 = vpop.f32.mrb[0].mxu0
      %v843 = vadd.f32 %v473, %v842
      %v844 = vpop.f32.mrb[0].mxu0
      %v845 = vadd.f32 %v469, %v844
      %v846 = vpop.f32.mrb[0].mxu0
      %v847 = vadd.f32 %v473, %v846
      %848 = vdwg.mxu0
      %849 = vmatprep.subr.bf16.mxu0 %v681
      %850 = vmatpush1.bf16.msra.mxu0 %v680
      %851 = vmatprep.subr.bf16.mxu0 %v685
      %852 = vmatpush1.bf16.msra.mxu0 %v684
      %853 = vmatprep.subr.bf16.mxu0 %v689
      %854 = vmatpush1.bf16.msra.mxu0 %v688
      %855 = vmatprep.subr.bf16.mxu0 %v693
      %856 = vmatpush1.bf16.msra.mxu0 %v692
      %857 = vmatprep.subr.bf16.mxu0 %v697
      %858 = vmatpush1.bf16.msra.mxu0 %v696
      %859 = vmatprep.subr.bf16.mxu0 %v701
      %860 = vmatpush1.bf16.msra.mxu0 %v700
      %861 = vmatprep.subr.bf16.mxu0 %v705
      %862 = vmatpush1.bf16.msra.mxu0 %v704
      %863 = vmatprep.subr.bf16.mxu0 %v709
      %864 = vmatpush1.bf16.msra.mxu0 %v708
      %865 = vmatprep.subr.bf16.mxu0 %v713
      %866 = vmatpush1.bf16.msra.mxu0 %v712
      %867 = vmatprep.subr.bf16.mxu0 %v717
      %868 = vmatpush1.bf16.msra.mxu0 %v716
      %869 = vmatprep.subr.bf16.mxu0 %v721
      %870 = vmatpush1.bf16.msra.mxu0 %v720
      %871 = vmatprep.subr.bf16.mxu0 %v725
      %872 = vmatpush1.bf16.msra.mxu0 %v724
      %873 = vmatprep.subr.bf16.mxu0 %v729
      %874 = vmatpush1.bf16.msra.mxu0 %v728
      %875 = vmatprep.subr.bf16.mxu0 %v733
      %876 = vmatpush1.bf16.msra.mxu0 %v732
      %877 = vmatprep.subr.bf16.mxu0 %v737
      %878 = vmatpush1.bf16.msra.mxu0 %v736
      %879 = vmatprep.subr.bf16.mxu0 %v741
      %880 = vmatpush1.bf16.msra.mxu0 %v740
      %881 = vmatprep.mubr.bf16.mxu0 %v399
      %882 = vmatmul.mubr.bf16.gmra.mrb[0].mxu0 %v398
      %v883 = vpop.f32.mrb[0].mxu0
      %v884 = vadd.f32 %v477, %v883
      %v885 = vpop.f32.mrb[0].mxu0
      %v886 = vadd.f32 %v481, %v885
      %v887 = vpop.f32.mrb[0].mxu0
      %v888 = vadd.f32 %v477, %v887
      %v889 = vpop.f32.mrb[0].mxu0
      %v890 = vadd.f32 %v481, %v889
      %891 = vdwg.mxu0
      %v892 = vmul.f32 %v841, 0.2
      %v893 = vmul.f32 %v843, 0.2
      %v894 = vmul.f32 %v884, 0.2
      %v895 = vmul.f32 %v886, 0.2
      %v896 = vmul.f32 %v845, 0.2
      %v897 = vmul.f32 %v847, 0.2
      %v898 = vmul.f32 %v888, 0.2
      %v899 = vmul.f32 %v890, 0.2
      %v900 = vmax.f32 %v841, %v892
      %v901 = vmax.f32 %v843, %v893
      %v902 = vmax.f32 %v884, %v894
      %v903 = vmax.f32 %v886, %v895
      %v904 = vmax.f32 %v845, %v896
      %v905 = vmax.f32 %v847, %v897
      %v906 = vmax.f32 %v888, %v898
      %v907 = vmax.f32 %v890, %v899
      %v908 = vpack.c.bf16 %v904, %v900
      %v909 = vpack.c.bf16 %v905, %v901
      %v910 = vpack.c.bf16 %v906, %v902
      %v911 = vpack.c.bf16 %v907, %v903
      %v912 = vld [vmem:[%s3] sm:$0xff]
      %v913 = vld [vmem:[%s3 + $0x8] sm:$0xff]
      %v914 = vld [vmem:[%s3 + $0x10] sm:$0xff]
      %v915 = vld [vmem:[%s3 + $0x18] sm:$0xff]
      %v916 = vld [vmem:[%s3 + $0x20] sm:$0xff]
      %v917 = vld [vmem:[%s3 + $0x28] sm:$0xff]
      %v918 = vld [vmem:[%s3 + $0x30] sm:$0xff]
      %v919 = vld [vmem:[%s3 + $0x38] sm:$0xff]
      %v920 = vld [vmem:[%s3 + $0x40] sm:$0xff]
      %v921 = vld [vmem:[%s3 + $0x48] sm:$0xff]
      %v922 = vld [vmem:[%s3 + $0x50] sm:$0xff]
      %v923 = vld [vmem:[%s3 + $0x58] sm:$0xff]
      %v924 = vld [vmem:[%s3 + $0x60] sm:$0xff]
      %v925 = vld [vmem:[%s3 + $0x68] sm:$0xff]
      %v926 = vld [vmem:[%s3 + $0x70] sm:$0xff]
      %v927 = vld [vmem:[%s3 + $0x78] sm:$0xff]
      %v928 = vld [vmem:[%s3 + $0x80] sm:$0xff]
      %v929 = vld [vmem:[%s3 + $0x88] sm:$0xff]
      %v930 = vld [vmem:[%s3 + $0x90] sm:$0xff]
      %v931 = vld [vmem:[%s3 + $0x98] sm:$0xff]
      %v932 = vld [vmem:[%s3 + $0xa0] sm:$0xff]
      %v933 = vld [vmem:[%s3 + $0xa8] sm:$0xff]
      %v934 = vld [vmem:[%s3 + $0xb0] sm:$0xff]
      %v935 = vld [vmem:[%s3 + $0xb8] sm:$0xff]
      %v936 = vld [vmem:[%s3 + $0xc0] sm:$0xff]
      %v937 = vld [vmem:[%s3 + $0xc8] sm:$0xff]
      %v938 = vld [vmem:[%s3 + $0xd0] sm:$0xff]
      %v939 = vld [vmem:[%s3 + $0xd8] sm:$0xff]
      %v940 = vld [vmem:[%s3 + $0xe0] sm:$0xff]
      %v941 = vld [vmem:[%s3 + $0xe8] sm:$0xff]
      %v942 = vld [vmem:[%s3 + $0xf0] sm:$0xff]
      %v943 = vld [vmem:[%s3 + $0xf8] sm:$0xff]
      %v944 = vld [vmem:[%s3 + $0x100] sm:$0xff]
      %v945 = vld [vmem:[%s3 + $0x108] sm:$0xff]
      %v946 = vld [vmem:[%s3 + $0x110] sm:$0xff]
      %v947 = vld [vmem:[%s3 + $0x118] sm:$0xff]
      %v948 = vld [vmem:[%s3 + $0x120] sm:$0xff]
      %v949 = vld [vmem:[%s3 + $0x128] sm:$0xff]
      %v950 = vld [vmem:[%s3 + $0x130] sm:$0xff]
      %v951 = vld [vmem:[%s3 + $0x138] sm:$0xff]
      %v952 = vld [vmem:[%s3 + $0x140] sm:$0xff]
      %v953 = vld [vmem:[%s3 + $0x148] sm:$0xff]
      %v954 = vld [vmem:[%s3 + $0x150] sm:$0xff]
      %v955 = vld [vmem:[%s3 + $0x158] sm:$0xff]
      %v956 = vld [vmem:[%s3 + $0x160] sm:$0xff]
      %v957 = vld [vmem:[%s3 + $0x168] sm:$0xff]
      %v958 = vld [vmem:[%s3 + $0x170] sm:$0xff]
      %v959 = vld [vmem:[%s3 + $0x178] sm:$0xff]
      %v960 = vld [vmem:[%s3 + $0x180] sm:$0xff]
      %v961 = vld [vmem:[%s3 + $0x188] sm:$0xff]
      %v962 = vld [vmem:[%s3 + $0x190] sm:$0xff]
      %v963 = vld [vmem:[%s3 + $0x198] sm:$0xff]
      %v964 = vld [vmem:[%s3 + $0x1a0] sm:$0xff]
      %v965 = vld [vmem:[%s3 + $0x1a8] sm:$0xff]
      %v966 = vld [vmem:[%s3 + $0x1b0] sm:$0xff]
      %v967 = vld [vmem:[%s3 + $0x1b8] sm:$0xff]
      %v968 = vld [vmem:[%s3 + $0x1c0] sm:$0xff]
      %v969 = vld [vmem:[%s3 + $0x1c8] sm:$0xff]
      %v970 = vld [vmem:[%s3 + $0x1d0] sm:$0xff]
      %v971 = vld [vmem:[%s3 + $0x1d8] sm:$0xff]
      %v972 = vld [vmem:[%s3 + $0x1e0] sm:$0xff]
      %v973 = vld [vmem:[%s3 + $0x1e8] sm:$0xff]
      %v974 = vld [vmem:[%s3 + $0x1f0] sm:$0xff]
      %v975 = vld [vmem:[%s3 + $0x1f8] sm:$0xff]
      %v976 = vld [vmem:[%s3 + $0x200] sm:$0xff]
      %v977 = vld [vmem:[%s3 + $0x208] sm:$0xff]
      %v978 = vld [vmem:[%s3 + $0x210] sm:$0xff]
      %v979 = vld [vmem:[%s3 + $0x218] sm:$0xff]
      %v980 = vld [vmem:[%s3 + $0x220] sm:$0xff]
      %v981 = vld [vmem:[%s3 + $0x228] sm:$0xff]
      %v982 = vld [vmem:[%s3 + $0x230] sm:$0xff]
      %v983 = vld [vmem:[%s3 + $0x238] sm:$0xff]
      %v984 = vld [vmem:[%s3 + $0x240] sm:$0xff]
      %v985 = vld [vmem:[%s3 + $0x248] sm:$0xff]
      %v986 = vld [vmem:[%s3 + $0x250] sm:$0xff]
      %v987 = vld [vmem:[%s3 + $0x258] sm:$0xff]
      %v988 = vld [vmem:[%s3 + $0x260] sm:$0xff]
      %v989 = vld [vmem:[%s3 + $0x268] sm:$0xff]
      %v990 = vld [vmem:[%s3 + $0x270] sm:$0xff]
      %v991 = vld [vmem:[%s3 + $0x278] sm:$0xff]
      %v992 = vld [vmem:[%s3 + $0x280] sm:$0xff]
      %v993 = vld [vmem:[%s3 + $0x288] sm:$0xff]
      %v994 = vld [vmem:[%s3 + $0x290] sm:$0xff]
      %v995 = vld [vmem:[%s3 + $0x298] sm:$0xff]
      %v996 = vld [vmem:[%s3 + $0x2a0] sm:$0xff]
      %v997 = vld [vmem:[%s3 + $0x2a8] sm:$0xff]
      %v998 = vld [vmem:[%s3 + $0x2b0] sm:$0xff]
      %v999 = vld [vmem:[%s3 + $0x2b8] sm:$0xff]
      %v1000 = vld [vmem:[%s3 + $0x2c0] sm:$0xff]
      %v1001 = vld [vmem:[%s3 + $0x2c8] sm:$0xff]
      %v1002 = vld [vmem:[%s3 + $0x2d0] sm:$0xff]
      %v1003 = vld [vmem:[%s3 + $0x2d8] sm:$0xff]
      %v1004 = vld [vmem:[%s3 + $0x2e0] sm:$0xff]
      %v1005 = vld [vmem:[%s3 + $0x2e8] sm:$0xff]
      %v1006 = vld [vmem:[%s3 + $0x2f0] sm:$0xff]
      %v1007 = vld [vmem:[%s3 + $0x2f8] sm:$0xff]
      %v1008 = vld [vmem:[%s3 + $0x300] sm:$0xff]
      %v1009 = vld [vmem:[%s3 + $0x308] sm:$0xff]
      %v1010 = vld [vmem:[%s3 + $0x310] sm:$0xff]
      %v1011 = vld [vmem:[%s3 + $0x318] sm:$0xff]
      %v1012 = vld [vmem:[%s3 + $0x320] sm:$0xff]
      %v1013 = vld [vmem:[%s3 + $0x328] sm:$0xff]
      %v1014 = vld [vmem:[%s3 + $0x330] sm:$0xff]
      %v1015 = vld [vmem:[%s3 + $0x338] sm:$0xff]
      %v1016 = vld [vmem:[%s3 + $0x340] sm:$0xff]
      %v1017 = vld [vmem:[%s3 + $0x348] sm:$0xff]
      %v1018 = vld [vmem:[%s3 + $0x350] sm:$0xff]
      %v1019 = vld [vmem:[%s3 + $0x358] sm:$0xff]
      %v1020 = vld [vmem:[%s3 + $0x360] sm:$0xff]
      %v1021 = vld [vmem:[%s3 + $0x368] sm:$0xff]
      %v1022 = vld [vmem:[%s3 + $0x370] sm:$0xff]
      %v1023 = vld [vmem:[%s3 + $0x378] sm:$0xff]
      %v1024 = vld [vmem:[%s3 + $0x380] sm:$0xff]
      %v1025 = vld [vmem:[%s3 + $0x388] sm:$0xff]
      %v1026 = vld [vmem:[%s3 + $0x390] sm:$0xff]
      %v1027 = vld [vmem:[%s3 + $0x398] sm:$0xff]
      %v1028 = vld [vmem:[%s3 + $0x3a0] sm:$0xff]
      %v1029 = vld [vmem:[%s3 + $0x3a8] sm:$0xff]
      %v1030 = vld [vmem:[%s3 + $0x3b0] sm:$0xff]
      %v1031 = vld [vmem:[%s3 + $0x3b8] sm:$0xff]
      %v1032 = vld [vmem:[%s3 + $0x3c0] sm:$0xff]
      %v1033 = vld [vmem:[%s3 + $0x3c8] sm:$0xff]
      %v1034 = vld [vmem:[%s3 + $0x3d0] sm:$0xff]
      %v1035 = vld [vmem:[%s3 + $0x3d8] sm:$0xff]
      %v1036 = vld [vmem:[%s3 + $0x3e0] sm:$0xff]
      %v1037 = vld [vmem:[%s3 + $0x3e8] sm:$0xff]
      %v1038 = vld [vmem:[%s3 + $0x3f0] sm:$0xff]
      %v1039 = vld [vmem:[%s3 + $0x3f8] sm:$0xff]
      %v1040 = vld [vmem:[%s4] sm:$0xf]
      %v1042 = vlaneseq
      %v1043 = vshrl.u32 %v1042, 7
      %v1044 = vsub.s32 0, %v1043
      %v1045 = vrot.slane %v1040, %v1044
      %v1046 = vlaneseq
      %v1047 = vshrl.u32 %v1046, 7
      %v1048 = vsub.s32 1, %v1047
      %v1049 = vrot.slane %v1040, %v1048
      %v1050 = vlaneseq
      %v1051 = vshrl.u32 %v1050, 7
      %v1052 = vsub.s32 2, %v1051
      %v1053 = vrot.slane %v1040, %v1052
      %v1054 = vlaneseq
      %v1055 = vshrl.u32 %v1054, 7
      %v1056 = vsub.s32 3, %v1055
      %v1057 = vrot.slane %v1040, %v1056
      %v1190 = vunpack.c.l.b16 %v912
      %v1191 = vunpack.c.h.b16 %v912
      %v1192 = vunpack.c.l.b16 %v913
      %v1193 = vunpack.c.h.b16 %v913
      %v1194 = vunpack.c.l.b16 %v914
      %v1195 = vunpack.c.h.b16 %v914
      %v1196 = vunpack.c.l.b16 %v915
      %v1197 = vunpack.c.h.b16 %v915
      %v1198 = vunpack.c.l.b16 %v916
      %v1199 = vunpack.c.h.b16 %v916
      %v1200 = vunpack.c.l.b16 %v917
      %v1201 = vunpack.c.h.b16 %v917
      %v1202 = vunpack.c.l.b16 %v918
      %v1203 = vunpack.c.h.b16 %v918
      %v1204 = vunpack.c.l.b16 %v919
      %v1205 = vunpack.c.h.b16 %v919
      %v1206 = vunpack.c.l.b16 %v920
      %v1207 = vunpack.c.h.b16 %v920
      %v1208 = vunpack.c.l.b16 %v921
      %v1209 = vunpack.c.h.b16 %v921
      %v1210 = vunpack.c.l.b16 %v922
      %v1211 = vunpack.c.h.b16 %v922
      %v1212 = vunpack.c.l.b16 %v923
      %v1213 = vunpack.c.h.b16 %v923
      %v1214 = vunpack.c.l.b16 %v924
      %v1215 = vunpack.c.h.b16 %v924
      %v1216 = vunpack.c.l.b16 %v925
      %v1217 = vunpack.c.h.b16 %v925
      %v1218 = vunpack.c.l.b16 %v926
      %v1219 = vunpack.c.h.b16 %v926
      %v1220 = vunpack.c.l.b16 %v927
      %v1221 = vunpack.c.h.b16 %v927
      %v1222 = vunpack.c.l.b16 %v928
      %v1223 = vunpack.c.h.b16 %v928
      %v1224 = vunpack.c.l.b16 %v929
      %v1225 = vunpack.c.h.b16 %v929
      %v1226 = vunpack.c.l.b16 %v930
      %v1227 = vunpack.c.h.b16 %v930
      %v1228 = vunpack.c.l.b16 %v931
      %v1229 = vunpack.c.h.b16 %v931
      %v1230 = vunpack.c.l.b16 %v932
      %v1231 = vunpack.c.h.b16 %v932
      %v1232 = vunpack.c.l.b16 %v933
      %v1233 = vunpack.c.h.b16 %v933
      %v1234 = vunpack.c.l.b16 %v934
      %v1235 = vunpack.c.h.b16 %v934
      %v1236 = vunpack.c.l.b16 %v935
      %v1237 = vunpack.c.h.b16 %v935
      %v1238 = vunpack.c.l.b16 %v936
      %v1239 = vunpack.c.h.b16 %v936
      %v1240 = vunpack.c.l.b16 %v937
      %v1241 = vunpack.c.h.b16 %v937
      %v1242 = vunpack.c.l.b16 %v938
      %v1243 = vunpack.c.h.b16 %v938
      %v1244 = vunpack.c.l.b16 %v939
      %v1245 = vunpack.c.h.b16 %v939
      %v1246 = vunpack.c.l.b16 %v940
      %v1247 = vunpack.c.h.b16 %v940
      %v1248 = vunpack.c.l.b16 %v941
      %v1249 = vunpack.c.h.b16 %v941
      %v1250 = vunpack.c.l.b16 %v942
      %v1251 = vunpack.c.h.b16 %v942
      %v1252 = vunpack.c.l.b16 %v943
      %v1253 = vunpack.c.h.b16 %v943
      %v1254 = vunpack.c.l.b16 %v944
      %v1255 = vunpack.c.h.b16 %v944
      %v1256 = vunpack.c.l.b16 %v945
      %v1257 = vunpack.c.h.b16 %v945
      %v1258 = vunpack.c.l.b16 %v946
      %v1259 = vunpack.c.h.b16 %v946
      %v1260 = vunpack.c.l.b16 %v947
      %v1261 = vunpack.c.h.b16 %v947
      %v1262 = vunpack.c.l.b16 %v948
      %v1263 = vunpack.c.h.b16 %v948
      %v1264 = vunpack.c.l.b16 %v949
      %v1265 = vunpack.c.h.b16 %v949
      %v1266 = vunpack.c.l.b16 %v950
      %v1267 = vunpack.c.h.b16 %v950
      %v1268 = vunpack.c.l.b16 %v951
      %v1269 = vunpack.c.h.b16 %v951
      %v1270 = vunpack.c.l.b16 %v952
      %v1271 = vunpack.c.h.b16 %v952
      %v1272 = vunpack.c.l.b16 %v953
      %v1273 = vunpack.c.h.b16 %v953
      %v1274 = vunpack.c.l.b16 %v954
      %v1275 = vunpack.c.h.b16 %v954
      %v1276 = vunpack.c.l.b16 %v955
      %v1277 = vunpack.c.h.b16 %v955
      %v1278 = vunpack.c.l.b16 %v956
      %v1279 = vunpack.c.h.b16 %v956
      %v1280 = vunpack.c.l.b16 %v957
      %v1281 = vunpack.c.h.b16 %v957
      %v1282 = vunpack.c.l.b16 %v958
      %v1283 = vunpack.c.h.b16 %v958
      %v1284 = vunpack.c.l.b16 %v959
      %v1285 = vunpack.c.h.b16 %v959
      %v1286 = vunpack.c.l.b16 %v960
      %v1287 = vunpack.c.h.b16 %v960
      %v1288 = vunpack.c.l.b16 %v961
      %v1289 = vunpack.c.h.b16 %v961
      %v1290 = vunpack.c.l.b16 %v962
      %v1291 = vunpack.c.h.b16 %v962
      %v1292 = vunpack.c.l.b16 %v963
      %v1293 = vunpack.c.h.b16 %v963
      %v1294 = vunpack.c.l.b16 %v964
      %v1295 = vunpack.c.h.b16 %v964
      %v1296 = vunpack.c.l.b16 %v965
      %v1297 = vunpack.c.h.b16 %v965
      %v1298 = vunpack.c.l.b16 %v966
      %v1299 = vunpack.c.h.b16 %v966
      %v1300 = vunpack.c.l.b16 %v967
      %v1301 = vunpack.c.h.b16 %v967
      %v1302 = vunpack.c.l.b16 %v968
      %v1303 = vunpack.c.h.b16 %v968
      %v1304 = vunpack.c.l.b16 %v969
      %v1305 = vunpack.c.h.b16 %v969
      %v1306 = vunpack.c.l.b16 %v970
      %v1307 = vunpack.c.h.b16 %v970
      %v1308 = vunpack.c.l.b16 %v971
      %v1309 = vunpack.c.h.b16 %v971
      %v1310 = vunpack.c.l.b16 %v972
      %v1311 = vunpack.c.h.b16 %v972
      %v1312 = vunpack.c.l.b16 %v973
      %v1313 = vunpack.c.h.b16 %v973
      %v1314 = vunpack.c.l.b16 %v974
      %v1315 = vunpack.c.h.b16 %v974
      %v1316 = vunpack.c.l.b16 %v975
      %v1317 = vunpack.c.h.b16 %v975
      %v1318 = vunpack.c.l.b16 %v976
      %v1319 = vunpack.c.h.b16 %v976
      %v1320 = vunpack.c.l.b16 %v977
      %v1321 = vunpack.c.h.b16 %v977
      %v1322 = vunpack.c.l.b16 %v978
      %v1323 = vunpack.c.h.b16 %v978
      %v1324 = vunpack.c.l.b16 %v979
      %v1325 = vunpack.c.h.b16 %v979
      %v1326 = vunpack.c.l.b16 %v980
      %v1327 = vunpack.c.h.b16 %v980
      %v1328 = vunpack.c.l.b16 %v981
      %v1329 = vunpack.c.h.b16 %v981
      %v1330 = vunpack.c.l.b16 %v982
      %v1331 = vunpack.c.h.b16 %v982
      %v1332 = vunpack.c.l.b16 %v983
      %v1333 = vunpack.c.h.b16 %v983
      %v1334 = vunpack.c.l.b16 %v984
      %v1335 = vunpack.c.h.b16 %v984
      %v1336 = vunpack.c.l.b16 %v985
      %v1337 = vunpack.c.h.b16 %v985
      %v1338 = vunpack.c.l.b16 %v986
      %v1339 = vunpack.c.h.b16 %v986
      %v1340 = vunpack.c.l.b16 %v987
      %v1341 = vunpack.c.h.b16 %v987
      %v1342 = vunpack.c.l.b16 %v988
      %v1343 = vunpack.c.h.b16 %v988
      %v1344 = vunpack.c.l.b16 %v989
      %v1345 = vunpack.c.h.b16 %v989
      %v1346 = vunpack.c.l.b16 %v990
      %v1347 = vunpack.c.h.b16 %v990
      %v1348 = vunpack.c.l.b16 %v991
      %v1349 = vunpack.c.h.b16 %v991
      %v1350 = vunpack.c.l.b16 %v992
      %v1351 = vunpack.c.h.b16 %v992
      %v1352 = vunpack.c.l.b16 %v993
      %v1353 = vunpack.c.h.b16 %v993
      %v1354 = vunpack.c.l.b16 %v994
      %v1355 = vunpack.c.h.b16 %v994
      %v1356 = vunpack.c.l.b16 %v995
      %v1357 = vunpack.c.h.b16 %v995
      %v1358 = vunpack.c.l.b16 %v996
      %v1359 = vunpack.c.h.b16 %v996
      %v1360 = vunpack.c.l.b16 %v997
      %v1361 = vunpack.c.h.b16 %v997
      %v1362 = vunpack.c.l.b16 %v998
      %v1363 = vunpack.c.h.b16 %v998
      %v1364 = vunpack.c.l.b16 %v999
      %v1365 = vunpack.c.h.b16 %v999
      %v1366 = vunpack.c.l.b16 %v1000
      %v1367 = vunpack.c.h.b16 %v1000
      %v1368 = vunpack.c.l.b16 %v1001
      %v1369 = vunpack.c.h.b16 %v1001
      %v1370 = vunpack.c.l.b16 %v1002
      %v1371 = vunpack.c.h.b16 %v1002
      %v1372 = vunpack.c.l.b16 %v1003
      %v1373 = vunpack.c.h.b16 %v1003
      %v1374 = vunpack.c.l.b16 %v1004
      %v1375 = vunpack.c.h.b16 %v1004
      %v1376 = vunpack.c.l.b16 %v1005
      %v1377 = vunpack.c.h.b16 %v1005
      %v1378 = vunpack.c.l.b16 %v1006
      %v1379 = vunpack.c.h.b16 %v1006
      %v1380 = vunpack.c.l.b16 %v1007
      %v1381 = vunpack.c.h.b16 %v1007
      %v1382 = vunpack.c.l.b16 %v1008
      %v1383 = vunpack.c.h.b16 %v1008
      %v1384 = vunpack.c.l.b16 %v1009
      %v1385 = vunpack.c.h.b16 %v1009
      %v1386 = vunpack.c.l.b16 %v1010
      %v1387 = vunpack.c.h.b16 %v1010
      %v1388 = vunpack.c.l.b16 %v1011
      %v1389 = vunpack.c.h.b16 %v1011
      %v1390 = vunpack.c.l.b16 %v1012
      %v1391 = vunpack.c.h.b16 %v1012
      %v1392 = vunpack.c.l.b16 %v1013
      %v1393 = vunpack.c.h.b16 %v1013
      %v1394 = vunpack.c.l.b16 %v1014
      %v1395 = vunpack.c.h.b16 %v1014
      %v1396 = vunpack.c.l.b16 %v1015
      %v1397 = vunpack.c.h.b16 %v1015
      %v1398 = vunpack.c.l.b16 %v1016
      %v1399 = vunpack.c.h.b16 %v1016
      %v1400 = vunpack.c.l.b16 %v1017
      %v1401 = vunpack.c.h.b16 %v1017
      %v1402 = vunpack.c.l.b16 %v1018
      %v1403 = vunpack.c.h.b16 %v1018
      %v1404 = vunpack.c.l.b16 %v1019
      %v1405 = vunpack.c.h.b16 %v1019
      %v1406 = vunpack.c.l.b16 %v1020
      %v1407 = vunpack.c.h.b16 %v1020
      %v1408 = vunpack.c.l.b16 %v1021
      %v1409 = vunpack.c.h.b16 %v1021
      %v1410 = vunpack.c.l.b16 %v1022
      %v1411 = vunpack.c.h.b16 %v1022
      %v1412 = vunpack.c.l.b16 %v1023
      %v1413 = vunpack.c.h.b16 %v1023
      %v1414 = vunpack.c.l.b16 %v1024
      %v1415 = vunpack.c.h.b16 %v1024
      %v1416 = vunpack.c.l.b16 %v1025
      %v1417 = vunpack.c.h.b16 %v1025
      %v1418 = vunpack.c.l.b16 %v1026
      %v1419 = vunpack.c.h.b16 %v1026
      %v1420 = vunpack.c.l.b16 %v1027
      %v1421 = vunpack.c.h.b16 %v1027
      %v1422 = vunpack.c.l.b16 %v1028
      %v1423 = vunpack.c.h.b16 %v1028
      %v1424 = vunpack.c.l.b16 %v1029
      %v1425 = vunpack.c.h.b16 %v1029
      %v1426 = vunpack.c.l.b16 %v1030
      %v1427 = vunpack.c.h.b16 %v1030
      %v1428 = vunpack.c.l.b16 %v1031
      %v1429 = vunpack.c.h.b16 %v1031
      %v1430 = vunpack.c.l.b16 %v1032
      %v1431 = vunpack.c.h.b16 %v1032
      %v1432 = vunpack.c.l.b16 %v1033
      %v1433 = vunpack.c.h.b16 %v1033
      %v1434 = vunpack.c.l.b16 %v1034
      %v1435 = vunpack.c.h.b16 %v1034
      %v1436 = vunpack.c.l.b16 %v1035
      %v1437 = vunpack.c.h.b16 %v1035
      %v1438 = vunpack.c.l.b16 %v1036
      %v1439 = vunpack.c.h.b16 %v1036
      %v1440 = vunpack.c.l.b16 %v1037
      %v1441 = vunpack.c.h.b16 %v1037
      %v1442 = vunpack.c.l.b16 %v1038
      %v1443 = vunpack.c.h.b16 %v1038
      %v1444 = vunpack.c.l.b16 %v1039
      %v1445 = vunpack.c.h.b16 %v1039
      %v1446 = vpack.c.b16 %v1194, %v1190
      %v1447 = vpack.c.b16 %v1195, %v1191
      %v1448 = vpack.c.b16 %v1196, %v1192
      %v1449 = vpack.c.b16 %v1197, %v1193
      %v1450 = vpack.c.b16 %v1202, %v1198
      %v1451 = vpack.c.b16 %v1203, %v1199
      %v1452 = vpack.c.b16 %v1204, %v1200
      %v1453 = vpack.c.b16 %v1205, %v1201
      %v1454 = vpack.c.b16 %v1210, %v1206
      %v1455 = vpack.c.b16 %v1211, %v1207
      %v1456 = vpack.c.b16 %v1212, %v1208
      %v1457 = vpack.c.b16 %v1213, %v1209
      %v1458 = vpack.c.b16 %v1218, %v1214
      %v1459 = vpack.c.b16 %v1219, %v1215
      %v1460 = vpack.c.b16 %v1220, %v1216
      %v1461 = vpack.c.b16 %v1221, %v1217
      %v1462 = vpack.c.b16 %v1226, %v1222
      %v1463 = vpack.c.b16 %v1227, %v1223
      %v1464 = vpack.c.b16 %v1228, %v1224
      %v1465 = vpack.c.b16 %v1229, %v1225
      %v1466 = vpack.c.b16 %v1234, %v1230
      %v1467 = vpack.c.b16 %v1235, %v1231
      %v1468 = vpack.c.b16 %v1236, %v1232
      %v1469 = vpack.c.b16 %v1237, %v1233
      %v1470 = vpack.c.b16 %v1242, %v1238
      %v1471 = vpack.c.b16 %v1243, %v1239
      %v1472 = vpack.c.b16 %v1244, %v1240
      %v1473 = vpack.c.b16 %v1245, %v1241
      %v1474 = vpack.c.b16 %v1250, %v1246
      %v1475 = vpack.c.b16 %v1251, %v1247
      %v1476 = vpack.c.b16 %v1252, %v1248
      %v1477 = vpack.c.b16 %v1253, %v1249
      %v1478 = vpack.c.b16 %v1258, %v1254
      %v1479 = vpack.c.b16 %v1259, %v1255
      %v1480 = vpack.c.b16 %v1260, %v1256
      %v1481 = vpack.c.b16 %v1261, %v1257
      %v1482 = vpack.c.b16 %v1266, %v1262
      %v1483 = vpack.c.b16 %v1267, %v1263
      %v1484 = vpack.c.b16 %v1268, %v1264
      %v1485 = vpack.c.b16 %v1269, %v1265
      %v1486 = vpack.c.b16 %v1274, %v1270
      %v1487 = vpack.c.b16 %v1275, %v1271
      %v1488 = vpack.c.b16 %v1276, %v1272
      %v1489 = vpack.c.b16 %v1277, %v1273
      %v1490 = vpack.c.b16 %v1282, %v1278
      %v1491 = vpack.c.b16 %v1283, %v1279
      %v1492 = vpack.c.b16 %v1284, %v1280
      %v1493 = vpack.c.b16 %v1285, %v1281
      %v1494 = vpack.c.b16 %v1290, %v1286
      %v1495 = vpack.c.b16 %v1291, %v1287
      %v1496 = vpack.c.b16 %v1292, %v1288
      %v1497 = vpack.c.b16 %v1293, %v1289
      %v1498 = vpack.c.b16 %v1298, %v1294
      %v1499 = vpack.c.b16 %v1299, %v1295
      %v1500 = vpack.c.b16 %v1300, %v1296
      %v1501 = vpack.c.b16 %v1301, %v1297
      %v1502 = vpack.c.b16 %v1306, %v1302
      %v1503 = vpack.c.b16 %v1307, %v1303
      %v1504 = vpack.c.b16 %v1308, %v1304
      %v1505 = vpack.c.b16 %v1309, %v1305
      %v1506 = vpack.c.b16 %v1314, %v1310
      %v1507 = vpack.c.b16 %v1315, %v1311
      %v1508 = vpack.c.b16 %v1316, %v1312
      %v1509 = vpack.c.b16 %v1317, %v1313
      %v1510 = vpack.c.b16 %v1322, %v1318
      %v1511 = vpack.c.b16 %v1323, %v1319
      %v1512 = vpack.c.b16 %v1324, %v1320
      %v1513 = vpack.c.b16 %v1325, %v1321
      %v1514 = vpack.c.b16 %v1330, %v1326
      %v1515 = vpack.c.b16 %v1331, %v1327
      %v1516 = vpack.c.b16 %v1332, %v1328
      %v1517 = vpack.c.b16 %v1333, %v1329
      %v1518 = vpack.c.b16 %v1338, %v1334
      %v1519 = vpack.c.b16 %v1339, %v1335
      %v1520 = vpack.c.b16 %v1340, %v1336
      %v1521 = vpack.c.b16 %v1341, %v1337
      %v1522 = vpack.c.b16 %v1346, %v1342
      %v1523 = vpack.c.b16 %v1347, %v1343
      %v1524 = vpack.c.b16 %v1348, %v1344
      %v1525 = vpack.c.b16 %v1349, %v1345
      %v1526 = vpack.c.b16 %v1354, %v1350
      %v1527 = vpack.c.b16 %v1355, %v1351
      %v1528 = vpack.c.b16 %v1356, %v1352
      %v1529 = vpack.c.b16 %v1357, %v1353
      %v1530 = vpack.c.b16 %v1362, %v1358
      %v1531 = vpack.c.b16 %v1363, %v1359
      %v1532 = vpack.c.b16 %v1364, %v1360
      %v1533 = vpack.c.b16 %v1365, %v1361
      %v1534 = vpack.c.b16 %v1370, %v1366
      %v1535 = vpack.c.b16 %v1371, %v1367
      %v1536 = vpack.c.b16 %v1372, %v1368
      %v1537 = vpack.c.b16 %v1373, %v1369
      %v1538 = vpack.c.b16 %v1378, %v1374
      %v1539 = vpack.c.b16 %v1379, %v1375
      %v1540 = vpack.c.b16 %v1380, %v1376
      %v1541 = vpack.c.b16 %v1381, %v1377
      %v1542 = vpack.c.b16 %v1386, %v1382
      %v1543 = vpack.c.b16 %v1387, %v1383
      %v1544 = vpack.c.b16 %v1388, %v1384
      %v1545 = vpack.c.b16 %v1389, %v1385
      %v1546 = vpack.c.b16 %v1394, %v1390
      %v1547 = vpack.c.b16 %v1395, %v1391
      %v1548 = vpack.c.b16 %v1396, %v1392
      %v1549 = vpack.c.b16 %v1397, %v1393
      %v1550 = vpack.c.b16 %v1402, %v1398
      %v1551 = vpack.c.b16 %v1403, %v1399
      %v1552 = vpack.c.b16 %v1404, %v1400
      %v1553 = vpack.c.b16 %v1405, %v1401
      %v1554 = vpack.c.b16 %v1410, %v1406
      %v1555 = vpack.c.b16 %v1411, %v1407
      %v1556 = vpack.c.b16 %v1412, %v1408
      %v1557 = vpack.c.b16 %v1413, %v1409
      %v1558 = vpack.c.b16 %v1418, %v1414
      %v1559 = vpack.c.b16 %v1419, %v1415
      %v1560 = vpack.c.b16 %v1420, %v1416
      %v1561 = vpack.c.b16 %v1421, %v1417
      %v1562 = vpack.c.b16 %v1426, %v1422
      %v1563 = vpack.c.b16 %v1427, %v1423
      %v1564 = vpack.c.b16 %v1428, %v1424
      %v1565 = vpack.c.b16 %v1429, %v1425
      %v1566 = vpack.c.b16 %v1434, %v1430
      %v1567 = vpack.c.b16 %v1435, %v1431
      %v1568 = vpack.c.b16 %v1436, %v1432
      %v1569 = vpack.c.b16 %v1437, %v1433
      %v1570 = vpack.c.b16 %v1442, %v1438
      %v1571 = vpack.c.b16 %v1443, %v1439
      %v1572 = vpack.c.b16 %v1444, %v1440
      %v1573 = vpack.c.b16 %v1445, %v1441
      %1702 = vmatprep.subr.bf16.mxu0 %v1447
      %1703 = vmatpush1.bf16.msra.mxu0 %v1446
      %1704 = vmatprep.subr.bf16.mxu0 %v1451
      %1705 = vmatpush1.bf16.msra.mxu0 %v1450
      %1706 = vmatprep.subr.bf16.mxu0 %v1455
      %1707 = vmatpush1.bf16.msra.mxu0 %v1454
      %1708 = vmatprep.subr.bf16.mxu0 %v1459
      %1709 = vmatpush1.bf16.msra.mxu0 %v1458
      %1710 = vmatprep.subr.bf16.mxu0 %v1463
      %1711 = vmatpush1.bf16.msra.mxu0 %v1462
      %1712 = vmatprep.subr.bf16.mxu0 %v1467
      %1713 = vmatpush1.bf16.msra.mxu0 %v1466
      %1714 = vmatprep.subr.bf16.mxu0 %v1471
      %1715 = vmatpush1.bf16.msra.mxu0 %v1470
      %1716 = vmatprep.subr.bf16.mxu0 %v1475
      %1717 = vmatpush1.bf16.msra.mxu0 %v1474
      %1718 = vmatprep.subr.bf16.mxu0 %v1479
      %1719 = vmatpush1.bf16.msra.mxu0 %v1478
      %1720 = vmatprep.subr.bf16.mxu0 %v1483
      %1721 = vmatpush1.bf16.msra.mxu0 %v1482
      %1722 = vmatprep.subr.bf16.mxu0 %v1487
      %1723 = vmatpush1.bf16.msra.mxu0 %v1486
      %1724 = vmatprep.subr.bf16.mxu0 %v1491
      %1725 = vmatpush1.bf16.msra.mxu0 %v1490
      %1726 = vmatprep.subr.bf16.mxu0 %v1495
      %1727 = vmatpush1.bf16.msra.mxu0 %v1494
      %1728 = vmatprep.subr.bf16.mxu0 %v1499
      %1729 = vmatpush1.bf16.msra.mxu0 %v1498
      %1730 = vmatprep.subr.bf16.mxu0 %v1503
      %1731 = vmatpush1.bf16.msra.mxu0 %v1502
      %1732 = vmatprep.subr.bf16.mxu0 %v1507
      %1733 = vmatpush1.bf16.msra.mxu0 %v1506
      %1734 = vmatprep.mubr.bf16.mxu0 %v909
      %1735 = vmatmul.mubr.bf16.gmra.mrb[0].mxu0 %v908
      %v1736 = vpop.f32.mrb[0].mxu0
      %v1737 = vadd.f32 %v1045, %v1736
      %v1738 = vpop.f32.mrb[0].mxu0
      %v1739 = vadd.f32 %v1049, %v1738
      %v1740 = vpop.f32.mrb[0].mxu0
      %v1741 = vadd.f32 %v1045, %v1740
      %v1742 = vpop.f32.mrb[0].mxu0
      %v1743 = vadd.f32 %v1049, %v1742
      %1744 = vdwg.mxu0
      %1745 = vmatprep.subr.bf16.mxu0 %v1511
      %1746 = vmatpush1.bf16.msra.mxu0 %v1510
      %1747 = vmatprep.subr.bf16.mxu0 %v1515
      %1748 = vmatpush1.bf16.msra.mxu0 %v1514
      %1749 = vmatprep.subr.bf16.mxu0 %v1519
      %1750 = vmatpush1.bf16.msra.mxu0 %v1518
      %1751 = vmatprep.subr.bf16.mxu0 %v1523
      %1752 = vmatpush1.bf16.msra.mxu0 %v1522
      %1753 = vmatprep.subr.bf16.mxu0 %v1527
      %1754 = vmatpush1.bf16.msra.mxu0 %v1526
      %1755 = vmatprep.subr.bf16.mxu0 %v1531
      %1756 = vmatpush1.bf16.msra.mxu0 %v1530
      %1757 = vmatprep.subr.bf16.mxu0 %v1535
      %1758 = vmatpush1.bf16.msra.mxu0 %v1534
      %1759 = vmatprep.subr.bf16.mxu0 %v1539
      %1760 = vmatpush1.bf16.msra.mxu0 %v1538
      %1761 = vmatprep.subr.bf16.mxu0 %v1543
      %1762 = vmatpush1.bf16.msra.mxu0 %v1542
      %1763 = vmatprep.subr.bf16.mxu0 %v1547
      %1764 = vmatpush1.bf16.msra.mxu0 %v1546
      %1765 = vmatprep.subr.bf16.mxu0 %v1551
      %1766 = vmatpush1.bf16.msra.mxu0 %v1550
      %1767 = vmatprep.subr.bf16.mxu0 %v1555
      %1768 = vmatpush1.bf16.msra.mxu0 %v1554
      %1769 = vmatprep.subr.bf16.mxu0 %v1559
      %1770 = vmatpush1.bf16.msra.mxu0 %v1558
      %1771 = vmatprep.subr.bf16.mxu0 %v1563
      %1772 = vmatpush1.bf16.msra.mxu0 %v1562
      %1773 = vmatprep.subr.bf16.mxu0 %v1567
      %1774 = vmatpush1.bf16.msra.mxu0 %v1566
      %1775 = vmatprep.subr.bf16.mxu0 %v1571
      %1776 = vmatpush1.bf16.msra.mxu0 %v1570
      %1777 = vmatprep.mubr.bf16.mxu0 %v911
      %1778 = vmatmul.mubr.bf16.gmra.mrb[0].mxu0 %v910
      %v1779 = vpop.f32.mrb[0].mxu0
      %v1780 = vadd.f32 %v1737, %v1779
      %v1781 = vpop.f32.mrb[0].mxu0
      %v1782 = vadd.f32 %v1739, %v1781
      %v1783 = vpop.f32.mrb[0].mxu0
      %v1784 = vadd.f32 %v1741, %v1783
      %v1785 = vpop.f32.mrb[0].mxu0
      %v1786 = vadd.f32 %v1743, %v1785
      %1787 = vdwg.mxu0
      %1788 = vmatprep.subr.bf16.mxu0 %v1449
      %1789 = vmatpush1.bf16.msra.mxu0 %v1448
      %1790 = vmatprep.subr.bf16.mxu0 %v1453
      %1791 = vmatpush1.bf16.msra.mxu0 %v1452
      %1792 = vmatprep.subr.bf16.mxu0 %v1457
      %1793 = vmatpush1.bf16.msra.mxu0 %v1456
      %1794 = vmatprep.subr.bf16.mxu0 %v1461
      %1795 = vmatpush1.bf16.msra.mxu0 %v1460
      %1796 = vmatprep.subr.bf16.mxu0 %v1465
      %1797 = vmatpush1.bf16.msra.mxu0 %v1464
      %1798 = vmatprep.subr.bf16.mxu0 %v1469
      %1799 = vmatpush1.bf16.msra.mxu0 %v1468
      %1800 = vmatprep.subr.bf16.mxu0 %v1473
      %1801 = vmatpush1.bf16.msra.mxu0 %v1472
      %1802 = vmatprep.subr.bf16.mxu0 %v1477
      %1803 = vmatpush1.bf16.msra.mxu0 %v1476
      %1804 = vmatprep.subr.bf16.mxu0 %v1481
      %1805 = vmatpush1.bf16.msra.mxu0 %v1480
      %1806 = vmatprep.subr.bf16.mxu0 %v1485
      %1807 = vmatpush1.bf16.msra.mxu0 %v1484
      %1808 = vmatprep.subr.bf16.mxu0 %v1489
      %1809 = vmatpush1.bf16.msra.mxu0 %v1488
      %1810 = vmatprep.subr.bf16.mxu0 %v1493
      %1811 = vmatpush1.bf16.msra.mxu0 %v1492
      %1812 = vmatprep.subr.bf16.mxu0 %v1497
      %1813 = vmatpush1.bf16.msra.mxu0 %v1496
      %1814 = vmatprep.subr.bf16.mxu0 %v1501
      %1815 = vmatpush1.bf16.msra.mxu0 %v1500
      %1816 = vmatprep.subr.bf16.mxu0 %v1505
      %1817 = vmatpush1.bf16.msra.mxu0 %v1504
      %1818 = vmatprep.subr.bf16.mxu0 %v1509
      %1819 = vmatpush1.bf16.msra.mxu0 %v1508
      %1820 = vmatprep.mubr.bf16.mxu0 %v909
      %1821 = vmatmul.mubr.bf16.gmra.mrb[0].mxu0 %v908
      %v1822 = vpop.f32.mrb[0].mxu0
      %v1823 = vadd.f32 %v1053, %v1822
      %v1824 = vpop.f32.mrb[0].mxu0
      %v1825 = vadd.f32 %v1057, %v1824
      %v1826 = vpop.f32.mrb[0].mxu0
      %v1827 = vadd.f32 %v1053, %v1826
      %v1828 = vpop.f32.mrb[0].mxu0
      %v1829 = vadd.f32 %v1057, %v1828
      %1830 = vdwg.mxu0
      %1831 = vmatprep.subr.bf16.mxu0 %v1513
      %1832 = vmatpush1.bf16.msra.mxu0 %v1512
      %1833 = vmatprep.subr.bf16.mxu0 %v1517
      %1834 = vmatpush1.bf16.msra.mxu0 %v1516
      %1835 = vmatprep.subr.bf16.mxu0 %v1521
      %1836 = vmatpush1.bf16.msra.mxu0 %v1520
      %1837 = vmatprep.subr.bf16.mxu0 %v1525
      %1838 = vmatpush1.bf16.msra.mxu0 %v1524
      %1839 = vmatprep.subr.bf16.mxu0 %v1529
      %1840 = vmatpush1.bf16.msra.mxu0 %v1528
      %1841 = vmatprep.subr.bf16.mxu0 %v1533
      %1842 = vmatpush1.bf16.msra.mxu0 %v1532
      %1843 = vmatprep.subr.bf16.mxu0 %v1537
      %1844 = vmatpush1.bf16.msra.mxu0 %v1536
      %1845 = vmatprep.subr.bf16.mxu0 %v1541
      %1846 = vmatpush1.bf16.msra.mxu0 %v1540
      %1847 = vmatprep.subr.bf16.mxu0 %v1545
      %1848 = vmatpush1.bf16.msra.mxu0 %v1544
      %1849 = vmatprep.subr.bf16.mxu0 %v1549
      %1850 = vmatpush1.bf16.msra.mxu0 %v1548
      %1851 = vmatprep.subr.bf16.mxu0 %v1553
      %1852 = vmatpush1.bf16.msra.mxu0 %v1552
      %1853 = vmatprep.subr.bf16.mxu0 %v1557
      %1854 = vmatpush1.bf16.msra.mxu0 %v1556
      %1855 = vmatprep.subr.bf16.mxu0 %v1561
      %1856 = vmatpush1.bf16.msra.mxu0 %v1560
      %1857 = vmatprep.subr.bf16.mxu0 %v1565
      %1858 = vmatpush1.bf16.msra.mxu0 %v1564
      %1859 = vmatprep.subr.bf16.mxu0 %v1569
      %1860 = vmatpush1.bf16.msra.mxu0 %v1568
      %1861 = vmatprep.subr.bf16.mxu0 %v1573
      %1862 = vmatpush1.bf16.msra.mxu0 %v1572
      %1863 = vmatprep.mubr.bf16.mxu0 %v911
      %1864 = vmatmul.mubr.bf16.gmra.mrb[0].mxu0 %v910
      %v1865 = vpop.f32.mrb[0].mxu0
      %v1866 = vadd.f32 %v1823, %v1865
      %v1867 = vpop.f32.mrb[0].mxu0
      %v1868 = vadd.f32 %v1825, %v1867
      %v1869 = vpop.f32.mrb[0].mxu0
      %v1870 = vadd.f32 %v1827, %v1869
      %v1871 = vpop.f32.mrb[0].mxu0
      %v1872 = vadd.f32 %v1829, %v1871
      %1873 = vdwg.mxu0
      %v1874 = vmul.f32 %v1780, 0.2
      %v1875 = vmul.f32 %v1782, 0.2
      %v1876 = vmul.f32 %v1866, 0.2
      %v1877 = vmul.f32 %v1868, 0.2
      %v1878 = vmul.f32 %v1784, 0.2
      %v1879 = vmul.f32 %v1786, 0.2
      %v1880 = vmul.f32 %v1870, 0.2
      %v1881 = vmul.f32 %v1872, 0.2
      %v1882 = vmax.f32 %v1780, %v1874
      %v1883 = vmax.f32 %v1782, %v1875
      %v1884 = vmax.f32 %v1866, %v1876
      %v1885 = vmax.f32 %v1868, %v1877
      %v1886 = vmax.f32 %v1784, %v1878
      %v1887 = vmax.f32 %v1786, %v1879
      %v1888 = vmax.f32 %v1870, %v1880
      %v1889 = vmax.f32 %v1872, %v1881
      %v1890 = vpack.c.bf16 %v1886, %v1882
      %v1891 = vpack.c.bf16 %v1887, %v1883
      %v1892 = vpack.c.bf16 %v1888, %v1884
      %v1893 = vpack.c.bf16 %v1889, %v1885
      %v1894 = vld [vmem:[%s5] sm:$0xff]
      %v1895 = vld [vmem:[%s5 + $0x8] sm:$0xff]
      %v1896 = vld [vmem:[%s5 + $0x10] sm:$0xff]
      %v1897 = vld [vmem:[%s5 + $0x18] sm:$0xff]
      %v1898 = vld [vmem:[%s5 + $0x20] sm:$0xff]
      %v1899 = vld [vmem:[%s5 + $0x28] sm:$0xff]
      %v1900 = vld [vmem:[%s5 + $0x30] sm:$0xff]
      %v1901 = vld [vmem:[%s5 + $0x38] sm:$0xff]
      %v1902 = vld [vmem:[%s5 + $0x40] sm:$0xff]
      %v1903 = vld [vmem:[%s5 + $0x48] sm:$0xff]
      %v1904 = vld [vmem:[%s5 + $0x50] sm:$0xff]
      %v1905 = vld [vmem:[%s5 + $0x58] sm:$0xff]
      %v1906 = vld [vmem:[%s5 + $0x60] sm:$0xff]
      %v1907 = vld [vmem:[%s5 + $0x68] sm:$0xff]
      %v1908 = vld [vmem:[%s5 + $0x70] sm:$0xff]
      %v1909 = vld [vmem:[%s5 + $0x78] sm:$0xff]
      %v1910 = vld [vmem:[%s5 + $0x80] sm:$0xff]
      %v1911 = vld [vmem:[%s5 + $0x88] sm:$0xff]
      %v1912 = vld [vmem:[%s5 + $0x90] sm:$0xff]
      %v1913 = vld [vmem:[%s5 + $0x98] sm:$0xff]
      %v1914 = vld [vmem:[%s5 + $0xa0] sm:$0xff]
      %v1915 = vld [vmem:[%s5 + $0xa8] sm:$0xff]
      %v1916 = vld [vmem:[%s5 + $0xb0] sm:$0xff]
      %v1917 = vld [vmem:[%s5 + $0xb8] sm:$0xff]
      %v1918 = vld [vmem:[%s5 + $0xc0] sm:$0xff]
      %v1919 = vld [vmem:[%s5 + $0xc8] sm:$0xff]
      %v1920 = vld [vmem:[%s5 + $0xd0] sm:$0xff]
      %v1921 = vld [vmem:[%s5 + $0xd8] sm:$0xff]
      %v1922 = vld [vmem:[%s5 + $0xe0] sm:$0xff]
      %v1923 = vld [vmem:[%s5 + $0xe8] sm:$0xff]
      %v1924 = vld [vmem:[%s5 + $0xf0] sm:$0xff]
      %v1925 = vld [vmem:[%s5 + $0xf8] sm:$0xff]
      %v1926 = vld [vmem:[%s5 + $0x100] sm:$0xff]
      %v1927 = vld [vmem:[%s5 + $0x108] sm:$0xff]
      %v1928 = vld [vmem:[%s5 + $0x110] sm:$0xff]
      %v1929 = vld [vmem:[%s5 + $0x118] sm:$0xff]
      %v1930 = vld [vmem:[%s5 + $0x120] sm:$0xff]
      %v1931 = vld [vmem:[%s5 + $0x128] sm:$0xff]
      %v1932 = vld [vmem:[%s5 + $0x130] sm:$0xff]
      %v1933 = vld [vmem:[%s5 + $0x138] sm:$0xff]
      %v1934 = vld [vmem:[%s5 + $0x140] sm:$0xff]
      %v1935 = vld [vmem:[%s5 + $0x148] sm:$0xff]
      %v1936 = vld [vmem:[%s5 + $0x150] sm:$0xff]
      %v1937 = vld [vmem:[%s5 + $0x158] sm:$0xff]
      %v1938 = vld [vmem:[%s5 + $0x160] sm:$0xff]
      %v1939 = vld [vmem:[%s5 + $0x168] sm:$0xff]
      %v1940 = vld [vmem:[%s5 + $0x170] sm:$0xff]
      %v1941 = vld [vmem:[%s5 + $0x178] sm:$0xff]
      %v1942 = vld [vmem:[%s5 + $0x180] sm:$0xff]
      %v1943 = vld [vmem:[%s5 + $0x188] sm:$0xff]
      %v1944 = vld [vmem:[%s5 + $0x190] sm:$0xff]
      %v1945 = vld [vmem:[%s5 + $0x198] sm:$0xff]
      %v1946 = vld [vmem:[%s5 + $0x1a0] sm:$0xff]
      %v1947 = vld [vmem:[%s5 + $0x1a8] sm:$0xff]
      %v1948 = vld [vmem:[%s5 + $0x1b0] sm:$0xff]
      %v1949 = vld [vmem:[%s5 + $0x1b8] sm:$0xff]
      %v1950 = vld [vmem:[%s5 + $0x1c0] sm:$0xff]
      %v1951 = vld [vmem:[%s5 + $0x1c8] sm:$0xff]
      %v1952 = vld [vmem:[%s5 + $0x1d0] sm:$0xff]
      %v1953 = vld [vmem:[%s5 + $0x1d8] sm:$0xff]
      %v1954 = vld [vmem:[%s5 + $0x1e0] sm:$0xff]
      %v1955 = vld [vmem:[%s5 + $0x1e8] sm:$0xff]
      %v1956 = vld [vmem:[%s5 + $0x1f0] sm:$0xff]
      %v1957 = vld [vmem:[%s5 + $0x1f8] sm:$0xff]
      %v1958 = vld [vmem:[%s5 + $0x200] sm:$0xff]
      %v1959 = vld [vmem:[%s5 + $0x208] sm:$0xff]
      %v1960 = vld [vmem:[%s5 + $0x210] sm:$0xff]
      %v1961 = vld [vmem:[%s5 + $0x218] sm:$0xff]
      %v1962 = vld [vmem:[%s5 + $0x220] sm:$0xff]
      %v1963 = vld [vmem:[%s5 + $0x228] sm:$0xff]
      %v1964 = vld [vmem:[%s5 + $0x230] sm:$0xff]
      %v1965 = vld [vmem:[%s5 + $0x238] sm:$0xff]
      %v1966 = vld [vmem:[%s5 + $0x240] sm:$0xff]
      %v1967 = vld [vmem:[%s5 + $0x248] sm:$0xff]
      %v1968 = vld [vmem:[%s5 + $0x250] sm:$0xff]
      %v1969 = vld [vmem:[%s5 + $0x258] sm:$0xff]
      %v1970 = vld [vmem:[%s5 + $0x260] sm:$0xff]
      %v1971 = vld [vmem:[%s5 + $0x268] sm:$0xff]
      %v1972 = vld [vmem:[%s5 + $0x270] sm:$0xff]
      %v1973 = vld [vmem:[%s5 + $0x278] sm:$0xff]
      %v1974 = vld [vmem:[%s5 + $0x280] sm:$0xff]
      %v1975 = vld [vmem:[%s5 + $0x288] sm:$0xff]
      %v1976 = vld [vmem:[%s5 + $0x290] sm:$0xff]
      %v1977 = vld [vmem:[%s5 + $0x298] sm:$0xff]
      %v1978 = vld [vmem:[%s5 + $0x2a0] sm:$0xff]
      %v1979 = vld [vmem:[%s5 + $0x2a8] sm:$0xff]
      %v1980 = vld [vmem:[%s5 + $0x2b0] sm:$0xff]
      %v1981 = vld [vmem:[%s5 + $0x2b8] sm:$0xff]
      %v1982 = vld [vmem:[%s5 + $0x2c0] sm:$0xff]
      %v1983 = vld [vmem:[%s5 + $0x2c8] sm:$0xff]
      %v1984 = vld [vmem:[%s5 + $0x2d0] sm:$0xff]
      %v1985 = vld [vmem:[%s5 + $0x2d8] sm:$0xff]
      %v1986 = vld [vmem:[%s5 + $0x2e0] sm:$0xff]
      %v1987 = vld [vmem:[%s5 + $0x2e8] sm:$0xff]
      %v1988 = vld [vmem:[%s5 + $0x2f0] sm:$0xff]
      %v1989 = vld [vmem:[%s5 + $0x2f8] sm:$0xff]
      %v1990 = vld [vmem:[%s5 + $0x300] sm:$0xff]
      %v1991 = vld [vmem:[%s5 + $0x308] sm:$0xff]
      %v1992 = vld [vmem:[%s5 + $0x310] sm:$0xff]
      %v1993 = vld [vmem:[%s5 + $0x318] sm:$0xff]
      %v1994 = vld [vmem:[%s5 + $0x320] sm:$0xff]
      %v1995 = vld [vmem:[%s5 + $0x328] sm:$0xff]
      %v1996 = vld [vmem:[%s5 + $0x330] sm:$0xff]
      %v1997 = vld [vmem:[%s5 + $0x338] sm:$0xff]
      %v1998 = vld [vmem:[%s5 + $0x340] sm:$0xff]
      %v1999 = vld [vmem:[%s5 + $0x348] sm:$0xff]
      %v2000 = vld [vmem:[%s5 + $0x350] sm:$0xff]
      %v2001 = vld [vmem:[%s5 + $0x358] sm:$0xff]
      %v2002 = vld [vmem:[%s5 + $0x360] sm:$0xff]
      %v2003 = vld [vmem:[%s5 + $0x368] sm:$0xff]
      %v2004 = vld [vmem:[%s5 + $0x370] sm:$0xff]
      %v2005 = vld [vmem:[%s5 + $0x378] sm:$0xff]
      %v2006 = vld [vmem:[%s5 + $0x380] sm:$0xff]
      %v2007 = vld [vmem:[%s5 + $0x388] sm:$0xff]
      %v2008 = vld [vmem:[%s5 + $0x390] sm:$0xff]
      %v2009 = vld [vmem:[%s5 + $0x398] sm:$0xff]
      %v2010 = vld [vmem:[%s5 + $0x3a0] sm:$0xff]
      %v2011 = vld [vmem:[%s5 + $0x3a8] sm:$0xff]
      %v2012 = vld [vmem:[%s5 + $0x3b0] sm:$0xff]
      %v2013 = vld [vmem:[%s5 + $0x3b8] sm:$0xff]
      %v2014 = vld [vmem:[%s5 + $0x3c0] sm:$0xff]
      %v2015 = vld [vmem:[%s5 + $0x3c8] sm:$0xff]
      %v2016 = vld [vmem:[%s5 + $0x3d0] sm:$0xff]
      %v2017 = vld [vmem:[%s5 + $0x3d8] sm:$0xff]
      %v2018 = vld [vmem:[%s5 + $0x3e0] sm:$0xff]
      %v2019 = vld [vmem:[%s5 + $0x3e8] sm:$0xff]
      %v2020 = vld [vmem:[%s5 + $0x3f0] sm:$0xff]
      %v2021 = vld [vmem:[%s5 + $0x3f8] sm:$0xff]
      %v2022 = vld [vmem:[%s6] sm:$0xf]
      %v2024 = vlaneseq
      %v2025 = vshrl.u32 %v2024, 7
      %v2026 = vsub.s32 0, %v2025
      %v2027 = vrot.slane %v2022, %v2026
      %v2028 = vlaneseq
      %v2029 = vshrl.u32 %v2028, 7
      %v2030 = vsub.s32 1, %v2029
      %v2031 = vrot.slane %v2022, %v2030
      %v2032 = vlaneseq
      %v2033 = vshrl.u32 %v2032, 7
      %v2034 = vsub.s32 2, %v2033
      %v2035 = vrot.slane %v2022, %v2034
      %v2036 = vlaneseq
      %v2037 = vshrl.u32 %v2036, 7
      %v2038 = vsub.s32 3, %v2037
      %v2039 = vrot.slane %v2022, %v2038
      %v2172 = vunpack.c.l.b16 %v1894
      %v2173 = vunpack.c.h.b16 %v1894
      %v2174 = vunpack.c.l.b16 %v1895
      %v2175 = vunpack.c.h.b16 %v1895
      %v2176 = vunpack.c.l.b16 %v1896
      %v2177 = vunpack.c.h.b16 %v1896
      %v2178 = vunpack.c.l.b16 %v1897
      %v2179 = vunpack.c.h.b16 %v1897
      %v2180 = vunpack.c.l.b16 %v1898
      %v2181 = vunpack.c.h.b16 %v1898
      %v2182 = vunpack.c.l.b16 %v1899
      %v2183 = vunpack.c.h.b16 %v1899
      %v2184 = vunpack.c.l.b16 %v1900
      %v2185 = vunpack.c.h.b16 %v1900
      %v2186 = vunpack.c.l.b16 %v1901
      %v2187 = vunpack.c.h.b16 %v1901
      %v2188 = vunpack.c.l.b16 %v1902
      %v2189 = vunpack.c.h.b16 %v1902
      %v2190 = vunpack.c.l.b16 %v1903
      %v2191 = vunpack.c.h.b16 %v1903
      %v2192 = vunpack.c.l.b16 %v1904
      %v2193 = vunpack.c.h.b16 %v1904
      %v2194 = vunpack.c.l.b16 %v1905
      %v2195 = vunpack.c.h.b16 %v1905
      %v2196 = vunpack.c.l.b16 %v1906
      %v2197 = vunpack.c.h.b16 %v1906
      %v2198 = vunpack.c.l.b16 %v1907
      %v2199 = vunpack.c.h.b16 %v1907
      %v2200 = vunpack.c.l.b16 %v1908
      %v2201 = vunpack.c.h.b16 %v1908
      %v2202 = vunpack.c.l.b16 %v1909
      %v2203 = vunpack.c.h.b16 %v1909
      %v2204 = vunpack.c.l.b16 %v1910
      %v2205 = vunpack.c.h.b16 %v1910
      %v2206 = vunpack.c.l.b16 %v1911
      %v2207 = vunpack.c.h.b16 %v1911
      %v2208 = vunpack.c.l.b16 %v1912
      %v2209 = vunpack.c.h.b16 %v1912
      %v2210 = vunpack.c.l.b16 %v1913
      %v2211 = vunpack.c.h.b16 %v1913
      %v2212 = vunpack.c.l.b16 %v1914
      %v2213 = vunpack.c.h.b16 %v1914
      %v2214 = vunpack.c.l.b16 %v1915
      %v2215 = vunpack.c.h.b16 %v1915
      %v2216 = vunpack.c.l.b16 %v1916
      %v2217 = vunpack.c.h.b16 %v1916
      %v2218 = vunpack.c.l.b16 %v1917
      %v2219 = vunpack.c.h.b16 %v1917
      %v2220 = vunpack.c.l.b16 %v1918
      %v2221 = vunpack.c.h.b16 %v1918
      %v2222 = vunpack.c.l.b16 %v1919
      %v2223 = vunpack.c.h.b16 %v1919
      %v2224 = vunpack.c.l.b16 %v1920
      %v2225 = vunpack.c.h.b16 %v1920
      %v2226 = vunpack.c.l.b16 %v1921
      %v2227 = vunpack.c.h.b16 %v1921
      %v2228 = vunpack.c.l.b16 %v1922
      %v2229 = vunpack.c.h.b16 %v1922
      %v2230 = vunpack.c.l.b16 %v1923
      %v2231 = vunpack.c.h.b16 %v1923
      %v2232 = vunpack.c.l.b16 %v1924
      %v2233 = vunpack.c.h.b16 %v1924
      %v2234 = vunpack.c.l.b16 %v1925
      %v2235 = vunpack.c.h.b16 %v1925
      %v2236 = vunpack.c.l.b16 %v1926
      %v2237 = vunpack.c.h.b16 %v1926
      %v2238 = vunpack.c.l.b16 %v1927
      %v2239 = vunpack.c.h.b16 %v1927
      %v2240 = vunpack.c.l.b16 %v1928
      %v2241 = vunpack.c.h.b16 %v1928
      %v2242 = vunpack.c.l.b16 %v1929
      %v2243 = vunpack.c.h.b16 %v1929
      %v2244 = vunpack.c.l.b16 %v1930
      %v2245 = vunpack.c.h.b16 %v1930
      %v2246 = vunpack.c.l.b16 %v1931
      %v2247 = vunpack.c.h.b16 %v1931
      %v2248 = vunpack.c.l.b16 %v1932
      %v2249 = vunpack.c.h.b16 %v1932
      %v2250 = vunpack.c.l.b16 %v1933
      %v2251 = vunpack.c.h.b16 %v1933
      %v2252 = vunpack.c.l.b16 %v1934
      %v2253 = vunpack.c.h.b16 %v1934
      %v2254 = vunpack.c.l.b16 %v1935
      %v2255 = vunpack.c.h.b16 %v1935
      %v2256 = vunpack.c.l.b16 %v1936
      %v2257 = vunpack.c.h.b16 %v1936
      %v2258 = vunpack.c.l.b16 %v1937
      %v2259 = vunpack.c.h.b16 %v1937
      %v2260 = vunpack.c.l.b16 %v1938
      %v2261 = vunpack.c.h.b16 %v1938
      %v2262 = vunpack.c.l.b16 %v1939
      %v2263 = vunpack.c.h.b16 %v1939
      %v2264 = vunpack.c.l.b16 %v1940
      %v2265 = vunpack.c.h.b16 %v1940
      %v2266 = vunpack.c.l.b16 %v1941
      %v2267 = vunpack.c.h.b16 %v1941
      %v2268 = vunpack.c.l.b16 %v1942
      %v2269 = vunpack.c.h.b16 %v1942
      %v2270 = vunpack.c.l.b16 %v1943
      %v2271 = vunpack.c.h.b16 %v1943
      %v2272 = vunpack.c.l.b16 %v1944
      %v2273 = vunpack.c.h.b16 %v1944
      %v2274 = vunpack.c.l.b16 %v1945
      %v2275 = vunpack.c.h.b16 %v1945
      %v2276 = vunpack.c.l.b16 %v1946
      %v2277 = vunpack.c.h.b16 %v1946
      %v2278 = vunpack.c.l.b16 %v1947
      %v2279 = vunpack.c.h.b16 %v1947
      %v2280 = vunpack.c.l.b16 %v1948
      %v2281 = vunpack.c.h.b16 %v1948
      %v2282 = vunpack.c.l.b16 %v1949
      %v2283 = vunpack.c.h.b16 %v1949
      %v2284 = vunpack.c.l.b16 %v1950
      %v2285 = vunpack.c.h.b16 %v1950
      %v2286 = vunpack.c.l.b16 %v1951
      %v2287 = vunpack.c.h.b16 %v1951
      %v2288 = vunpack.c.l.b16 %v1952
      %v2289 = vunpack.c.h.b16 %v1952
      %v2290 = vunpack.c.l.b16 %v1953
      %v2291 = vunpack.c.h.b16 %v1953
      %v2292 = vunpack.c.l.b16 %v1954
      %v2293 = vunpack.c.h.b16 %v1954
      %v2294 = vunpack.c.l.b16 %v1955
      %v2295 = vunpack.c.h.b16 %v1955
      %v2296 = vunpack.c.l.b16 %v1956
      %v2297 = vunpack.c.h.b16 %v1956
      %v2298 = vunpack.c.l.b16 %v1957
      %v2299 = vunpack.c.h.b16 %v1957
      %v2300 = vunpack.c.l.b16 %v1958
      %v2301 = vunpack.c.h.b16 %v1958
      %v2302 = vunpack.c.l.b16 %v1959
      %v2303 = vunpack.c.h.b16 %v1959
      %v2304 = vunpack.c.l.b16 %v1960
      %v2305 = vunpack.c.h.b16 %v1960
      %v2306 = vunpack.c.l.b16 %v1961
      %v2307 = vunpack.c.h.b16 %v1961
      %v2308 = vunpack.c.l.b16 %v1962
      %v2309 = vunpack.c.h.b16 %v1962
      %v2310 = vunpack.c.l.b16 %v1963
      %v2311 = vunpack.c.h.b16 %v1963
      %v2312 = vunpack.c.l.b16 %v1964
      %v2313 = vunpack.c.h.b16 %v1964
      %v2314 = vunpack.c.l.b16 %v1965
      %v2315 = vunpack.c.h.b16 %v1965
      %v2316 = vunpack.c.l.b16 %v1966
      %v2317 = vunpack.c.h.b16 %v1966
      %v2318 = vunpack.c.l.b16 %v1967
      %v2319 = vunpack.c.h.b16 %v1967
      %v2320 = vunpack.c.l.b16 %v1968
      %v2321 = vunpack.c.h.b16 %v1968
      %v2322 = vunpack.c.l.b16 %v1969
      %v2323 = vunpack.c.h.b16 %v1969
      %v2324 = vunpack.c.l.b16 %v1970
      %v2325 = vunpack.c.h.b16 %v1970
      %v2326 = vunpack.c.l.b16 %v1971
      %v2327 = vunpack.c.h.b16 %v1971
      %v2328 = vunpack.c.l.b16 %v1972
      %v2329 = vunpack.c.h.b16 %v1972
      %v2330 = vunpack.c.l.b16 %v1973
      %v2331 = vunpack.c.h.b16 %v1973
      %v2332 = vunpack.c.l.b16 %v1974
      %v2333 = vunpack.c.h.b16 %v1974
      %v2334 = vunpack.c.l.b16 %v1975
      %v2335 = vunpack.c.h.b16 %v1975
      %v2336 = vunpack.c.l.b16 %v1976
      %v2337 = vunpack.c.h.b16 %v1976
      %v2338 = vunpack.c.l.b16 %v1977
      %v2339 = vunpack.c.h.b16 %v1977
      %v2340 = vunpack.c.l.b16 %v1978
      %v2341 = vunpack.c.h.b16 %v1978
      %v2342 = vunpack.c.l.b16 %v1979
      %v2343 = vunpack.c.h.b16 %v1979
      %v2344 = vunpack.c.l.b16 %v1980
      %v2345 = vunpack.c.h.b16 %v1980
      %v2346 = vunpack.c.l.b16 %v1981
      %v2347 = vunpack.c.h.b16 %v1981
      %v2348 = vunpack.c.l.b16 %v1982
      %v2349 = vunpack.c.h.b16 %v1982
      %v2350 = vunpack.c.l.b16 %v1983
      %v2351 = vunpack.c.h.b16 %v1983
      %v2352 = vunpack.c.l.b16 %v1984
      %v2353 = vunpack.c.h.b16 %v1984
      %v2354 = vunpack.c.l.b16 %v1985
      %v2355 = vunpack.c.h.b16 %v1985
      %v2356 = vunpack.c.l.b16 %v1986
      %v2357 = vunpack.c.h.b16 %v1986
      %v2358 = vunpack.c.l.b16 %v1987
      %v2359 = vunpack.c.h.b16 %v1987
      %v2360 = vunpack.c.l.b16 %v1988
      %v2361 = vunpack.c.h.b16 %v1988
      %v2362 = vunpack.c.l.b16 %v1989
      %v2363 = vunpack.c.h.b16 %v1989
      %v2364 = vunpack.c.l.b16 %v1990
      %v2365 = vunpack.c.h.b16 %v1990
      %v2366 = vunpack.c.l.b16 %v1991
      %v2367 = vunpack.c.h.b16 %v1991
      %v2368 = vunpack.c.l.b16 %v1992
      %v2369 = vunpack.c.h.b16 %v1992
      %v2370 = vunpack.c.l.b16 %v1993
      %v2371 = vunpack.c.h.b16 %v1993
      %v2372 = vunpack.c.l.b16 %v1994
      %v2373 = vunpack.c.h.b16 %v1994
      %v2374 = vunpack.c.l.b16 %v1995
      %v2375 = vunpack.c.h.b16 %v1995
      %v2376 = vunpack.c.l.b16 %v1996
      %v2377 = vunpack.c.h.b16 %v1996
      %v2378 = vunpack.c.l.b16 %v1997
      %v2379 = vunpack.c.h.b16 %v1997
      %v2380 = vunpack.c.l.b16 %v1998
      %v2381 = vunpack.c.h.b16 %v1998
      %v2382 = vunpack.c.l.b16 %v1999
      %v2383 = vunpack.c.h.b16 %v1999
      %v2384 = vunpack.c.l.b16 %v2000
      %v2385 = vunpack.c.h.b16 %v2000
      %v2386 = vunpack.c.l.b16 %v2001
      %v2387 = vunpack.c.h.b16 %v2001
      %v2388 = vunpack.c.l.b16 %v2002
      %v2389 = vunpack.c.h.b16 %v2002
      %v2390 = vunpack.c.l.b16 %v2003
      %v2391 = vunpack.c.h.b16 %v2003
      %v2392 = vunpack.c.l.b16 %v2004
      %v2393 = vunpack.c.h.b16 %v2004
      %v2394 = vunpack.c.l.b16 %v2005
      %v2395 = vunpack.c.h.b16 %v2005
      %v2396 = vunpack.c.l.b16 %v2006
      %v2397 = vunpack.c.h.b16 %v2006
      %v2398 = vunpack.c.l.b16 %v2007
      %v2399 = vunpack.c.h.b16 %v2007
      %v2400 = vunpack.c.l.b16 %v2008
      %v2401 = vunpack.c.h.b16 %v2008
      %v2402 = vunpack.c.l.b16 %v2009
      %v2403 = vunpack.c.h.b16 %v2009
      %v2404 = vunpack.c.l.b16 %v2010
      %v2405 = vunpack.c.h.b16 %v2010
      %v2406 = vunpack.c.l.b16 %v2011
      %v2407 = vunpack.c.h.b16 %v2011
      %v2408 = vunpack.c.l.b16 %v2012
      %v2409 = vunpack.c.h.b16 %v2012
      %v2410 = vunpack.c.l.b16 %v2013
      %v2411 = vunpack.c.h.b16 %v2013
      %v2412 = vunpack.c.l.b16 %v2014
      %v2413 = vunpack.c.h.b16 %v2014
      %v2414 = vunpack.c.l.b16 %v2015
      %v2415 = vunpack.c.h.b16 %v2015
      %v2416 = vunpack.c.l.b16 %v2016
      %v2417 = vunpack.c.h.b16 %v2016
      %v2418 = vunpack.c.l.b16 %v2017
      %v2419 = vunpack.c.h.b16 %v2017
      %v2420 = vunpack.c.l.b16 %v2018
      %v2421 = vunpack.c.h.b16 %v2018
      %v2422 = vunpack.c.l.b16 %v2019
      %v2423 = vunpack.c.h.b16 %v2019
      %v2424 = vunpack.c.l.b16 %v2020
      %v2425 = vunpack.c.h.b16 %v2020
      %v2426 = vunpack.c.l.b16 %v2021
      %v2427 = vunpack.c.h.b16 %v2021
      %v2428 = vpack.c.b16 %v2176, %v2172
      %v2429 = vpack.c.b16 %v2177, %v2173
      %v2430 = vpack.c.b16 %v2178, %v2174
      %v2431 = vpack.c.b16 %v2179, %v2175
      %v2432 = vpack.c.b16 %v2184, %v2180
      %v2433 = vpack.c.b16 %v2185, %v2181
      %v2434 = vpack.c.b16 %v2186, %v2182
      %v2435 = vpack.c.b16 %v2187, %v2183
      %v2436 = vpack.c.b16 %v2192, %v2188
      %v2437 = vpack.c.b16 %v2193, %v2189
      %v2438 = vpack.c.b16 %v2194, %v2190
      %v2439 = vpack.c.b16 %v2195, %v2191
      %v2440 = vpack.c.b16 %v2200, %v2196
      %v2441 = vpack.c.b16 %v2201, %v2197
      %v2442 = vpack.c.b16 %v2202, %v2198
      %v2443 = vpack.c.b16 %v2203, %v2199
      %v2444 = vpack.c.b16 %v2208, %v2204
      %v2445 = vpack.c.b16 %v2209, %v2205
      %v2446 = vpack.c.b16 %v2210, %v2206
      %v2447 = vpack.c.b16 %v2211, %v2207
      %v2448 = vpack.c.b16 %v2216, %v2212
      %v2449 = vpack.c.b16 %v2217, %v2213
      %v2450 = vpack.c.b16 %v2218, %v2214
      %v2451 = vpack.c.b16 %v2219, %v2215
      %v2452 = vpack.c.b16 %v2224, %v2220
      %v2453 = vpack.c.b16 %v2225, %v2221
      %v2454 = vpack.c.b16 %v2226, %v2222
      %v2455 = vpack.c.b16 %v2227, %v2223
      %v2456 = vpack.c.b16 %v2232, %v2228
      %v2457 = vpack.c.b16 %v2233, %v2229
      %v2458 = vpack.c.b16 %v2234, %v2230
      %v2459 = vpack.c.b16 %v2235, %v2231
      %v2460 = vpack.c.b16 %v2240, %v2236
      %v2461 = vpack.c.b16 %v2241, %v2237
      %v2462 = vpack.c.b16 %v2242, %v2238
      %v2463 = vpack.c.b16 %v2243, %v2239
      %v2464 = vpack.c.b16 %v2248, %v2244
      %v2465 = vpack.c.b16 %v2249, %v2245
      %v2466 = vpack.c.b16 %v2250, %v2246
      %v2467 = vpack.c.b16 %v2251, %v2247
      %v2468 = vpack.c.b16 %v2256, %v2252
      %v2469 = vpack.c.b16 %v2257, %v2253
      %v2470 = vpack.c.b16 %v2258, %v2254
      %v2471 = vpack.c.b16 %v2259, %v2255
      %v2472 = vpack.c.b16 %v2264, %v2260
      %v2473 = vpack.c.b16 %v2265, %v2261
      %v2474 = vpack.c.b16 %v2266, %v2262
      %v2475 = vpack.c.b16 %v2267, %v2263
      %v2476 = vpack.c.b16 %v2272, %v2268
      %v2477 = vpack.c.b16 %v2273, %v2269
      %v2478 = vpack.c.b16 %v2274, %v2270
      %v2479 = vpack.c.b16 %v2275, %v2271
      %v2480 = vpack.c.b16 %v2280, %v2276
      %v2481 = vpack.c.b16 %v2281, %v2277
      %v2482 = vpack.c.b16 %v2282, %v2278
      %v2483 = vpack.c.b16 %v2283, %v2279
      %v2484 = vpack.c.b16 %v2288, %v2284
      %v2485 = vpack.c.b16 %v2289, %v2285
      %v2486 = vpack.c.b16 %v2290, %v2286
      %v2487 = vpack.c.b16 %v2291, %v2287
      %v2488 = vpack.c.b16 %v2296, %v2292
      %v2489 = vpack.c.b16 %v2297, %v2293
      %v2490 = vpack.c.b16 %v2298, %v2294
      %v2491 = vpack.c.b16 %v2299, %v2295
      %v2492 = vpack.c.b16 %v2304, %v2300
      %v2493 = vpack.c.b16 %v2305, %v2301
      %v2494 = vpack.c.b16 %v2306, %v2302
      %v2495 = vpack.c.b16 %v2307, %v2303
      %v2496 = vpack.c.b16 %v2312, %v2308
      %v2497 = vpack.c.b16 %v2313, %v2309
      %v2498 = vpack.c.b16 %v2314, %v2310
      %v2499 = vpack.c.b16 %v2315, %v2311
      %v2500 = vpack.c.b16 %v2320, %v2316
      %v2501 = vpack.c.b16 %v2321, %v2317
      %v2502 = vpack.c.b16 %v2322, %v2318
      %v2503 = vpack.c.b16 %v2323, %v2319
      %v2504 = vpack.c.b16 %v2328, %v2324
      %v2505 = vpack.c.b16 %v2329, %v2325
      %v2506 = vpack.c.b16 %v2330, %v2326
      %v2507 = vpack.c.b16 %v2331, %v2327
      %v2508 = vpack.c.b16 %v2336, %v2332
      %v2509 = vpack.c.b16 %v2337, %v2333
      %v2510 = vpack.c.b16 %v2338, %v2334
      %v2511 = vpack.c.b16 %v2339, %v2335
      %v2512 = vpack.c.b16 %v2344, %v2340
      %v2513 = vpack.c.b16 %v2345, %v2341
      %v2514 = vpack.c.b16 %v2346, %v2342
      %v2515 = vpack.c.b16 %v2347, %v2343
      %v2516 = vpack.c.b16 %v2352, %v2348
      %v2517 = vpack.c.b16 %v2353, %v2349
      %v2518 = vpack.c.b16 %v2354, %v2350
      %v2519 = vpack.c.b16 %v2355, %v2351
      %v2520 = vpack.c.b16 %v2360, %v2356
      %v2521 = vpack.c.b16 %v2361, %v2357
      %v2522 = vpack.c.b16 %v2362, %v2358
      %v2523 = vpack.c.b16 %v2363, %v2359
      %v2524 = vpack.c.b16 %v2368, %v2364
      %v2525 = vpack.c.b16 %v2369, %v2365
      %v2526 = vpack.c.b16 %v2370, %v2366
      %v2527 = vpack.c.b16 %v2371, %v2367
      %v2528 = vpack.c.b16 %v2376, %v2372
      %v2529 = vpack.c.b16 %v2377, %v2373
      %v2530 = vpack.c.b16 %v2378, %v2374
      %v2531 = vpack.c.b16 %v2379, %v2375
      %v2532 = vpack.c.b16 %v2384, %v2380
      %v2533 = vpack.c.b16 %v2385, %v2381
      %v2534 = vpack.c.b16 %v2386, %v2382
      %v2535 = vpack.c.b16 %v2387, %v2383
      %v2536 = vpack.c.b16 %v2392, %v2388
      %v2537 = vpack.c.b16 %v2393, %v2389
      %v2538 = vpack.c.b16 %v2394, %v2390
      %v2539 = vpack.c.b16 %v2395, %v2391
      %v2540 = vpack.c.b16 %v2400, %v2396
      %v2541 = vpack.c.b16 %v2401, %v2397
      %v2542 = vpack.c.b16 %v2402, %v2398
      %v2543 = vpack.c.b16 %v2403, %v2399
      %v2544 = vpack.c.b16 %v2408, %v2404
      %v2545 = vpack.c.b16 %v2409, %v2405
      %v2546 = vpack.c.b16 %v2410, %v2406
      %v2547 = vpack.c.b16 %v2411, %v2407
      %v2548 = vpack.c.b16 %v2416, %v2412
      %v2549 = vpack.c.b16 %v2417, %v2413
      %v2550 = vpack.c.b16 %v2418, %v2414
      %v2551 = vpack.c.b16 %v2419, %v2415
      %v2552 = vpack.c.b16 %v2424, %v2420
      %v2553 = vpack.c.b16 %v2425, %v2421
      %v2554 = vpack.c.b16 %v2426, %v2422
      %v2555 = vpack.c.b16 %v2427, %v2423
      %2684 = vmatprep.subr.bf16.mxu0 %v2429
      %2685 = vmatpush1.bf16.msra.mxu0 %v2428
      %2686 = vmatprep.subr.bf16.mxu0 %v2433
      %2687 = vmatpush1.bf16.msra.mxu0 %v2432
      %2688 = vmatprep.subr.bf16.mxu0 %v2437
      %2689 = vmatpush1.bf16.msra.mxu0 %v2436
      %2690 = vmatprep.subr.bf16.mxu0 %v2441
      %2691 = vmatpush1.bf16.msra.mxu0 %v2440
      %2692 = vmatprep.subr.bf16.mxu0 %v2445
      %2693 = vmatpush1.bf16.msra.mxu0 %v2444
      %2694 = vmatprep.subr.bf16.mxu0 %v2449
      %2695 = vmatpush1.bf16.msra.mxu0 %v2448
      %2696 = vmatprep.subr.bf16.mxu0 %v2453
      %2697 = vmatpush1.bf16.msra.mxu0 %v2452
      %2698 = vmatprep.subr.bf16.mxu0 %v2457
      %2699 = vmatpush1.bf16.msra.mxu0 %v2456
      %2700 = vmatprep.subr.bf16.mxu0 %v2461
      %2701 = vmatpush1.bf16.msra.mxu0 %v2460
      %2702 = vmatprep.subr.bf16.mxu0 %v2465
      %2703 = vmatpush1.bf16.msra.mxu0 %v2464
      %2704 = vmatprep.subr.bf16.mxu0 %v2469
      %2705 = vmatpush1.bf16.msra.mxu0 %v2468
      %2706 = vmatprep.subr.bf16.mxu0 %v2473
      %2707 = vmatpush1.bf16.msra.mxu0 %v2472
      %2708 = vmatprep.subr.bf16.mxu0 %v2477
      %2709 = vmatpush1.bf16.msra.mxu0 %v2476
      %2710 = vmatprep.subr.bf16.mxu0 %v2481
      %2711 = vmatpush1.bf16.msra.mxu0 %v2480
      %2712 = vmatprep.subr.bf16.mxu0 %v2485
      %2713 = vmatpush1.bf16.msra.mxu0 %v2484
      %2714 = vmatprep.subr.bf16.mxu0 %v2489
      %2715 = vmatpush1.bf16.msra.mxu0 %v2488
      %2716 = vmatprep.mubr.bf16.mxu0 %v1891
      %2717 = vmatmul.mubr.bf16.gmra.mrb[0].mxu0 %v1890
      %v2718 = vpop.f32.mrb[0].mxu0
      %v2719 = vadd.f32 %v2027, %v2718
      %v2720 = vpop.f32.mrb[0].mxu0
      %v2721 = vadd.f32 %v2031, %v2720
      %v2722 = vpop.f32.mrb[0].mxu0
      %v2723 = vadd.f32 %v2027, %v2722
      %v2724 = vpop.f32.mrb[0].mxu0
      %v2725 = vadd.f32 %v2031, %v2724
      %2726 = vdwg.mxu0
      %2727 = vmatprep.subr.bf16.mxu0 %v2493
      %2728 = vmatpush1.bf16.msra.mxu0 %v2492
      %2729 = vmatprep.subr.bf16.mxu0 %v2497
      %2730 = vmatpush1.bf16.msra.mxu0 %v2496
      %2731 = vmatprep.subr.bf16.mxu0 %v2501
      %2732 = vmatpush1.bf16.msra.mxu0 %v2500
      %2733 = vmatprep.subr.bf16.mxu0 %v2505
      %2734 = vmatpush1.bf16.msra.mxu0 %v2504
      %2735 = vmatprep.subr.bf16.mxu0 %v2509
      %2736 = vmatpush1.bf16.msra.mxu0 %v2508
      %2737 = vmatprep.subr.bf16.mxu0 %v2513
      %2738 = vmatpush1.bf16.msra.mxu0 %v2512
      %2739 = vmatprep.subr.bf16.mxu0 %v2517
      %2740 = vmatpush1.bf16.msra.mxu0 %v2516
      %2741 = vmatprep.subr.bf16.mxu0 %v2521
      %2742 = vmatpush1.bf16.msra.mxu0 %v2520
      %2743 = vmatprep.subr.bf16.mxu0 %v2525
      %2744 = vmatpush1.bf16.msra.mxu0 %v2524
      %2745 = vmatprep.subr.bf16.mxu0 %v2529
      %2746 = vmatpush1.bf16.msra.mxu0 %v2528
      %2747 = vmatprep.subr.bf16.mxu0 %v2533
      %2748 = vmatpush1.bf16.msra.mxu0 %v2532
      %2749 = vmatprep.subr.bf16.mxu0 %v2537
      %2750 = vmatpush1.bf16.msra.mxu0 %v2536
      %2751 = vmatprep.subr.bf16.mxu0 %v2541
      %2752 = vmatpush1.bf16.msra.mxu0 %v2540
      %2753 = vmatprep.subr.bf16.mxu0 %v2545
      %2754 = vmatpush1.bf16.msra.mxu0 %v2544
      %2755 = vmatprep.subr.bf16.mxu0 %v2549
      %2756 = vmatpush1.bf16.msra.mxu0 %v2548
      %2757 = vmatprep.subr.bf16.mxu0 %v2553
      %2758 = vmatpush1.bf16.msra.mxu0 %v2552
      %2759 = vmatprep.mubr.bf16.mxu0 %v1893
      %2760 = vmatmul.mubr.bf16.gmra.mrb[0].mxu0 %v1892
      %v2761 = vpop.f32.mrb[0].mxu0
      %v2762 = vadd.f32 %v2719, %v2761
      %v2763 = vpop.f32.mrb[0].mxu0
      %v2764 = vadd.f32 %v2721, %v2763
      %v2765 = vpop.f32.mrb[0].mxu0
      %v2766 = vadd.f32 %v2723, %v2765
      %v2767 = vpop.f32.mrb[0].mxu0
      %v2768 = vadd.f32 %v2725, %v2767
      %2769 = vdwg.mxu0
      %2770 = vmatprep.subr.bf16.mxu0 %v2431
      %2771 = vmatpush1.bf16.msra.mxu0 %v2430
      %2772 = vmatprep.subr.bf16.mxu0 %v2435
      %2773 = vmatpush1.bf16.msra.mxu0 %v2434
      %2774 = vmatprep.subr.bf16.mxu0 %v2439
      %2775 = vmatpush1.bf16.msra.mxu0 %v2438
      %2776 = vmatprep.subr.bf16.mxu0 %v2443
      %2777 = vmatpush1.bf16.msra.mxu0 %v2442
      %2778 = vmatprep.subr.bf16.mxu0 %v2447
      %2779 = vmatpush1.bf16.msra.mxu0 %v2446
      %2780 = vmatprep.subr.bf16.mxu0 %v2451
      %2781 = vmatpush1.bf16.msra.mxu0 %v2450
      %2782 = vmatprep.subr.bf16.mxu0 %v2455
      %2783 = vmatpush1.bf16.msra.mxu0 %v2454
      %2784 = vmatprep.subr.bf16.mxu0 %v2459
      %2785 = vmatpush1.bf16.msra.mxu0 %v2458
      %2786 = vmatprep.subr.bf16.mxu0 %v2463
      %2787 = vmatpush1.bf16.msra.mxu0 %v2462
      %2788 = vmatprep.subr.bf16.mxu0 %v2467
      %2789 = vmatpush1.bf16.msra.mxu0 %v2466
      %2790 = vmatprep.subr.bf16.mxu0 %v2471
      %2791 = vmatpush1.bf16.msra.mxu0 %v2470
      %2792 = vmatprep.subr.bf16.mxu0 %v2475
      %2793 = vmatpush1.bf16.msra.mxu0 %v2474
      %2794 = vmatprep.subr.bf16.mxu0 %v2479
      %2795 = vmatpush1.bf16.msra.mxu0 %v2478
      %2796 = vmatprep.subr.bf16.mxu0 %v2483
      %2797 = vmatpush1.bf16.msra.mxu0 %v2482
      %2798 = vmatprep.subr.bf16.mxu0 %v2487
      %2799 = vmatpush1.bf16.msra.mxu0 %v2486
      %2800 = vmatprep.subr.bf16.mxu0 %v2491
      %2801 = vmatpush1.bf16.msra.mxu0 %v2490
      %2802 = vmatprep.mubr.bf16.mxu0 %v1891
      %2803 = vmatmul.mubr.bf16.gmra.mrb[0].mxu0 %v1890
      %v2804 = vpop.f32.mrb[0].mxu0
      %v2805 = vadd.f32 %v2035, %v2804
      %v2806 = vpop.f32.mrb[0].mxu0
      %v2807 = vadd.f32 %v2039, %v2806
      %v2808 = vpop.f32.mrb[0].mxu0
      %v2809 = vadd.f32 %v2035, %v2808
      %v2810 = vpop.f32.mrb[0].mxu0
      %v2811 = vadd.f32 %v2039, %v2810
      %2812 = vdwg.mxu0
      %2813 = vmatprep.subr.bf16.mxu0 %v2495
      %2814 = vmatpush1.bf16.msra.mxu0 %v2494
      %2815 = vmatprep.subr.bf16.mxu0 %v2499
      %2816 = vmatpush1.bf16.msra.mxu0 %v2498
      %2817 = vmatprep.subr.bf16.mxu0 %v2503
      %2818 = vmatpush1.bf16.msra.mxu0 %v2502
      %2819 = vmatprep.subr.bf16.mxu0 %v2507
      %2820 = vmatpush1.bf16.msra.mxu0 %v2506
      %2821 = vmatprep.subr.bf16.mxu0 %v2511
      %2822 = vmatpush1.bf16.msra.mxu0 %v2510
      %2823 = vmatprep.subr.bf16.mxu0 %v2515
      %2824 = vmatpush1.bf16.msra.mxu0 %v2514
      %2825 = vmatprep.subr.bf16.mxu0 %v2519
      %2826 = vmatpush1.bf16.msra.mxu0 %v2518
      %2827 = vmatprep.subr.bf16.mxu0 %v2523
      %2828 = vmatpush1.bf16.msra.mxu0 %v2522
      %2829 = vmatprep.subr.bf16.mxu0 %v2527
      %2830 = vmatpush1.bf16.msra.mxu0 %v2526
      %2831 = vmatprep.subr.bf16.mxu0 %v2531
      %2832 = vmatpush1.bf16.msra.mxu0 %v2530
      %2833 = vmatprep.subr.bf16.mxu0 %v2535
      %2834 = vmatpush1.bf16.msra.mxu0 %v2534
      %2835 = vmatprep.subr.bf16.mxu0 %v2539
      %2836 = vmatpush1.bf16.msra.mxu0 %v2538
      %2837 = vmatprep.subr.bf16.mxu0 %v2543
      %2838 = vmatpush1.bf16.msra.mxu0 %v2542
      %2839 = vmatprep.subr.bf16.mxu0 %v2547
      %2840 = vmatpush1.bf16.msra.mxu0 %v2546
      %2841 = vmatprep.subr.bf16.mxu0 %v2551
      %2842 = vmatpush1.bf16.msra.mxu0 %v2550
      %2843 = vmatprep.subr.bf16.mxu0 %v2555
      %2844 = vmatpush1.bf16.msra.mxu0 %v2554
      %2845 = vmatprep.mubr.bf16.mxu0 %v1893
      %2846 = vmatmul.mubr.bf16.gmra.mrb[0].mxu0 %v1892
      %v2847 = vpop.f32.mrb[0].mxu0
      %v2848 = vadd.f32 %v2805, %v2847
      %v2849 = vpop.f32.mrb[0].mxu0
      %v2850 = vadd.f32 %v2807, %v2849
      %v2851 = vpop.f32.mrb[0].mxu0
      %v2852 = vadd.f32 %v2809, %v2851
      %v2853 = vpop.f32.mrb[0].mxu0
      %v2854 = vadd.f32 %v2811, %v2853
      %2855 = vdwg.mxu0
      %v2856 = vmul.f32 %v2762, 0.2
      %v2857 = vmul.f32 %v2764, 0.2
      %v2858 = vmul.f32 %v2848, 0.2
      %v2859 = vmul.f32 %v2850, 0.2
      %v2860 = vmul.f32 %v2766, 0.2
      %v2861 = vmul.f32 %v2768, 0.2
      %v2862 = vmul.f32 %v2852, 0.2
      %v2863 = vmul.f32 %v2854, 0.2
      %v2864 = vmax.f32 %v2762, %v2856
      %v2865 = vmax.f32 %v2764, %v2857
      %v2866 = vmax.f32 %v2848, %v2858
      %v2867 = vmax.f32 %v2850, %v2859
      %v2868 = vmax.f32 %v2766, %v2860
      %v2869 = vmax.f32 %v2768, %v2861
      %v2870 = vmax.f32 %v2852, %v2862
      %v2871 = vmax.f32 %v2854, %v2863
      %v2872 = vpack.c.bf16 %v2868, %v2864
      %v2873 = vpack.c.bf16 %v2869, %v2865
      %v2874 = vpack.c.bf16 %v2870, %v2866
      %v2875 = vpack.c.bf16 %v2871, %v2867
      %v2876 = vld [vmem:[%s7] sm:$0xff]
      %v2877 = vld [vmem:[%s7 + $0x8] sm:$0xff]
      %v2878 = vld [vmem:[%s7 + $0x10] sm:$0xff]
      %v2879 = vld [vmem:[%s7 + $0x18] sm:$0xff]
      %v2880 = vld [vmem:[%s7 + $0x20] sm:$0xff]
      %v2881 = vld [vmem:[%s7 + $0x28] sm:$0xff]
      %v2882 = vld [vmem:[%s7 + $0x30] sm:$0xff]
      %v2883 = vld [vmem:[%s7 + $0x38] sm:$0xff]
      %v2884 = vld [vmem:[%s7 + $0x40] sm:$0xff]
      %v2885 = vld [vmem:[%s7 + $0x48] sm:$0xff]
      %v2886 = vld [vmem:[%s7 + $0x50] sm:$0xff]
      %v2887 = vld [vmem:[%s7 + $0x58] sm:$0xff]
      %v2888 = vld [vmem:[%s7 + $0x60] sm:$0xff]
      %v2889 = vld [vmem:[%s7 + $0x68] sm:$0xff]
      %v2890 = vld [vmem:[%s7 + $0x70] sm:$0xff]
      %v2891 = vld [vmem:[%s7 + $0x78] sm:$0xff]
      %v2892 = vld [vmem:[%s7 + $0x80] sm:$0xff]
      %v2893 = vld [vmem:[%s7 + $0x88] sm:$0xff]
      %v2894 = vld [vmem:[%s7 + $0x90] sm:$0xff]
      %v2895 = vld [vmem:[%s7 + $0x98] sm:$0xff]
      %v2896 = vld [vmem:[%s7 + $0xa0] sm:$0xff]
      %v2897 = vld [vmem:[%s7 + $0xa8] sm:$0xff]
      %v2898 = vld [vmem:[%s7 + $0xb0] sm:$0xff]
      %v2899 = vld [vmem:[%s7 + $0xb8] sm:$0xff]
      %v2900 = vld [vmem:[%s7 + $0xc0] sm:$0xff]
      %v2901 = vld [vmem:[%s7 + $0xc8] sm:$0xff]
      %v2902 = vld [vmem:[%s7 + $0xd0] sm:$0xff]
      %v2903 = vld [vmem:[%s7 + $0xd8] sm:$0xff]
      %v2904 = vld [vmem:[%s7 + $0xe0] sm:$0xff]
      %v2905 = vld [vmem:[%s7 + $0xe8] sm:$0xff]
      %v2906 = vld [vmem:[%s7 + $0xf0] sm:$0xff]
      %v2907 = vld [vmem:[%s7 + $0xf8] sm:$0xff]
      %v2908 = vld [vmem:[%s7 + $0x100] sm:$0xff]
      %v2909 = vld [vmem:[%s7 + $0x108] sm:$0xff]
      %v2910 = vld [vmem:[%s7 + $0x110] sm:$0xff]
      %v2911 = vld [vmem:[%s7 + $0x118] sm:$0xff]
      %v2912 = vld [vmem:[%s7 + $0x120] sm:$0xff]
      %v2913 = vld [vmem:[%s7 + $0x128] sm:$0xff]
      %v2914 = vld [vmem:[%s7 + $0x130] sm:$0xff]
      %v2915 = vld [vmem:[%s7 + $0x138] sm:$0xff]
      %v2916 = vld [vmem:[%s7 + $0x140] sm:$0xff]
      %v2917 = vld [vmem:[%s7 + $0x148] sm:$0xff]
      %v2918 = vld [vmem:[%s7 + $0x150] sm:$0xff]
      %v2919 = vld [vmem:[%s7 + $0x158] sm:$0xff]
      %v2920 = vld [vmem:[%s7 + $0x160] sm:$0xff]
      %v2921 = vld [vmem:[%s7 + $0x168] sm:$0xff]
      %v2922 = vld [vmem:[%s7 + $0x170] sm:$0xff]
      %v2923 = vld [vmem:[%s7 + $0x178] sm:$0xff]
      %v2924 = vld [vmem:[%s7 + $0x180] sm:$0xff]
      %v2925 = vld [vmem:[%s7 + $0x188] sm:$0xff]
      %v2926 = vld [vmem:[%s7 + $0x190] sm:$0xff]
      %v2927 = vld [vmem:[%s7 + $0x198] sm:$0xff]
      %v2928 = vld [vmem:[%s7 + $0x1a0] sm:$0xff]
      %v2929 = vld [vmem:[%s7 + $0x1a8] sm:$0xff]
      %v2930 = vld [vmem:[%s7 + $0x1b0] sm:$0xff]
      %v2931 = vld [vmem:[%s7 + $0x1b8] sm:$0xff]
      %v2932 = vld [vmem:[%s7 + $0x1c0] sm:$0xff]
      %v2933 = vld [vmem:[%s7 + $0x1c8] sm:$0xff]
      %v2934 = vld [vmem:[%s7 + $0x1d0] sm:$0xff]
      %v2935 = vld [vmem:[%s7 + $0x1d8] sm:$0xff]
      %v2936 = vld [vmem:[%s7 + $0x1e0] sm:$0xff]
      %v2937 = vld [vmem:[%s7 + $0x1e8] sm:$0xff]
      %v2938 = vld [vmem:[%s7 + $0x1f0] sm:$0xff]
      %v2939 = vld [vmem:[%s7 + $0x1f8] sm:$0xff]
      %v2940 = vld [vmem:[%s7 + $0x200] sm:$0xff]
      %v2941 = vld [vmem:[%s7 + $0x208] sm:$0xff]
      %v2942 = vld [vmem:[%s7 + $0x210] sm:$0xff]
      %v2943 = vld [vmem:[%s7 + $0x218] sm:$0xff]
      %v2944 = vld [vmem:[%s7 + $0x220] sm:$0xff]
      %v2945 = vld [vmem:[%s7 + $0x228] sm:$0xff]
      %v2946 = vld [vmem:[%s7 + $0x230] sm:$0xff]
      %v2947 = vld [vmem:[%s7 + $0x238] sm:$0xff]
      %v2948 = vld [vmem:[%s7 + $0x240] sm:$0xff]
      %v2949 = vld [vmem:[%s7 + $0x248] sm:$0xff]
      %v2950 = vld [vmem:[%s7 + $0x250] sm:$0xff]
      %v2951 = vld [vmem:[%s7 + $0x258] sm:$0xff]
      %v2952 = vld [vmem:[%s7 + $0x260] sm:$0xff]
      %v2953 = vld [vmem:[%s7 + $0x268] sm:$0xff]
      %v2954 = vld [vmem:[%s7 + $0x270] sm:$0xff]
      %v2955 = vld [vmem:[%s7 + $0x278] sm:$0xff]
      %v2956 = vld [vmem:[%s7 + $0x280] sm:$0xff]
      %v2957 = vld [vmem:[%s7 + $0x288] sm:$0xff]
      %v2958 = vld [vmem:[%s7 + $0x290] sm:$0xff]
      %v2959 = vld [vmem:[%s7 + $0x298] sm:$0xff]
      %v2960 = vld [vmem:[%s7 + $0x2a0] sm:$0xff]
      %v2961 = vld [vmem:[%s7 + $0x2a8] sm:$0xff]
      %v2962 = vld [vmem:[%s7 + $0x2b0] sm:$0xff]
      %v2963 = vld [vmem:[%s7 + $0x2b8] sm:$0xff]
      %v2964 = vld [vmem:[%s7 + $0x2c0] sm:$0xff]
      %v2965 = vld [vmem:[%s7 + $0x2c8] sm:$0xff]
      %v2966 = vld [vmem:[%s7 + $0x2d0] sm:$0xff]
      %v2967 = vld [vmem:[%s7 + $0x2d8] sm:$0xff]
      %v2968 = vld [vmem:[%s7 + $0x2e0] sm:$0xff]
      %v2969 = vld [vmem:[%s7 + $0x2e8] sm:$0xff]
      %v2970 = vld [vmem:[%s7 + $0x2f0] sm:$0xff]
      %v2971 = vld [vmem:[%s7 + $0x2f8] sm:$0xff]
      %v2972 = vld [vmem:[%s7 + $0x300] sm:$0xff]
      %v2973 = vld [vmem:[%s7 + $0x308] sm:$0xff]
      %v2974 = vld [vmem:[%s7 + $0x310] sm:$0xff]
      %v2975 = vld [vmem:[%s7 + $0x318] sm:$0xff]
      %v2976 = vld [vmem:[%s7 + $0x320] sm:$0xff]
      %v2977 = vld [vmem:[%s7 + $0x328] sm:$0xff]
      %v2978 = vld [vmem:[%s7 + $0x330] sm:$0xff]
      %v2979 = vld [vmem:[%s7 + $0x338] sm:$0xff]
      %v2980 = vld [vmem:[%s7 + $0x340] sm:$0xff]
      %v2981 = vld [vmem:[%s7 + $0x348] sm:$0xff]
      %v2982 = vld [vmem:[%s7 + $0x350] sm:$0xff]
      %v2983 = vld [vmem:[%s7 + $0x358] sm:$0xff]
      %v2984 = vld [vmem:[%s7 + $0x360] sm:$0xff]
      %v2985 = vld [vmem:[%s7 + $0x368] sm:$0xff]
      %v2986 = vld [vmem:[%s7 + $0x370] sm:$0xff]
      %v2987 = vld [vmem:[%s7 + $0x378] sm:$0xff]
      %v2988 = vld [vmem:[%s7 + $0x380] sm:$0xff]
      %v2989 = vld [vmem:[%s7 + $0x388] sm:$0xff]
      %v2990 = vld [vmem:[%s7 + $0x390] sm:$0xff]
      %v2991 = vld [vmem:[%s7 + $0x398] sm:$0xff]
      %v2992 = vld [vmem:[%s7 + $0x3a0] sm:$0xff]
      %v2993 = vld [vmem:[%s7 + $0x3a8] sm:$0xff]
      %v2994 = vld [vmem:[%s7 + $0x3b0] sm:$0xff]
      %v2995 = vld [vmem:[%s7 + $0x3b8] sm:$0xff]
      %v2996 = vld [vmem:[%s7 + $0x3c0] sm:$0xff]
      %v2997 = vld [vmem:[%s7 + $0x3c8] sm:$0xff]
      %v2998 = vld [vmem:[%s7 + $0x3d0] sm:$0xff]
      %v2999 = vld [vmem:[%s7 + $0x3d8] sm:$0xff]
      %v3000 = vld [vmem:[%s7 + $0x3e0] sm:$0xff]
      %v3001 = vld [vmem:[%s7 + $0x3e8] sm:$0xff]
      %v3002 = vld [vmem:[%s7 + $0x3f0] sm:$0xff]
      %v3003 = vld [vmem:[%s7 + $0x3f8] sm:$0xff]
      %v3004 = vld [vmem:[%s8] sm:$0xf]
      %v3006 = vlaneseq
      %v3007 = vshrl.u32 %v3006, 7
      %v3008 = vsub.s32 0, %v3007
      %v3009 = vrot.slane %v3004, %v3008
      %v3010 = vlaneseq
      %v3011 = vshrl.u32 %v3010, 7
      %v3012 = vsub.s32 1, %v3011
      %v3013 = vrot.slane %v3004, %v3012
      %v3014 = vlaneseq
      %v3015 = vshrl.u32 %v3014, 7
      %v3016 = vsub.s32 2, %v3015
      %v3017 = vrot.slane %v3004, %v3016
      %v3018 = vlaneseq
      %v3019 = vshrl.u32 %v3018, 7
      %v3020 = vsub.s32 3, %v3019
      %v3021 = vrot.slane %v3004, %v3020
      %v3154 = vunpack.c.l.b16 %v2876
      %v3155 = vunpack.c.h.b16 %v2876
      %v3156 = vunpack.c.l.b16 %v2877
      %v3157 = vunpack.c.h.b16 %v2877
      %v3158 = vunpack.c.l.b16 %v2878
      %v3159 = vunpack.c.h.b16 %v2878
      %v3160 = vunpack.c.l.b16 %v2879
      %v3161 = vunpack.c.h.b16 %v2879
      %v3162 = vunpack.c.l.b16 %v2880
      %v3163 = vunpack.c.h.b16 %v2880
      %v3164 = vunpack.c.l.b16 %v2881
      %v3165 = vunpack.c.h.b16 %v2881
      %v3166 = vunpack.c.l.b16 %v2882
      %v3167 = vunpack.c.h.b16 %v2882
      %v3168 = vunpack.c.l.b16 %v2883
      %v3169 = vunpack.c.h.b16 %v2883
      %v3170 = vunpack.c.l.b16 %v2884
      %v3171 = vunpack.c.h.b16 %v2884
      %v3172 = vunpack.c.l.b16 %v2885
      %v3173 = vunpack.c.h.b16 %v2885
      %v3174 = vunpack.c.l.b16 %v2886
      %v3175 = vunpack.c.h.b16 %v2886
      %v3176 = vunpack.c.l.b16 %v2887
      %v3177 = vunpack.c.h.b16 %v2887
      %v3178 = vunpack.c.l.b16 %v2888
      %v3179 = vunpack.c.h.b16 %v2888
      %v3180 = vunpack.c.l.b16 %v2889
      %v3181 = vunpack.c.h.b16 %v2889
      %v3182 = vunpack.c.l.b16 %v2890
      %v3183 = vunpack.c.h.b16 %v2890
      %v3184 = vunpack.c.l.b16 %v2891
      %v3185 = vunpack.c.h.b16 %v2891
      %v3186 = vunpack.c.l.b16 %v2892
      %v3187 = vunpack.c.h.b16 %v2892
      %v3188 = vunpack.c.l.b16 %v2893
      %v3189 = vunpack.c.h.b16 %v2893
      %v3190 = vunpack.c.l.b16 %v2894
      %v3191 = vunpack.c.h.b16 %v2894
      %v3192 = vunpack.c.l.b16 %v2895
      %v3193 = vunpack.c.h.b16 %v2895
      %v3194 = vunpack.c.l.b16 %v2896
      %v3195 = vunpack.c.h.b16 %v2896
      %v3196 = vunpack.c.l.b16 %v2897
      %v3197 = vunpack.c.h.b16 %v2897
      %v3198 = vunpack.c.l.b16 %v2898
      %v3199 = vunpack.c.h.b16 %v2898
      %v3200 = vunpack.c.l.b16 %v2899
      %v3201 = vunpack.c.h.b16 %v2899
      %v3202 = vunpack.c.l.b16 %v2900
      %v3203 = vunpack.c.h.b16 %v2900
      %v3204 = vunpack.c.l.b16 %v2901
      %v3205 = vunpack.c.h.b16 %v2901
      %v3206 = vunpack.c.l.b16 %v2902
      %v3207 = vunpack.c.h.b16 %v2902
      %v3208 = vunpack.c.l.b16 %v2903
      %v3209 = vunpack.c.h.b16 %v2903
      %v3210 = vunpack.c.l.b16 %v2904
      %v3211 = vunpack.c.h.b16 %v2904
      %v3212 = vunpack.c.l.b16 %v2905
      %v3213 = vunpack.c.h.b16 %v2905
      %v3214 = vunpack.c.l.b16 %v2906
      %v3215 = vunpack.c.h.b16 %v2906
      %v3216 = vunpack.c.l.b16 %v2907
      %v3217 = vunpack.c.h.b16 %v2907
      %v3218 = vunpack.c.l.b16 %v2908
      %v3219 = vunpack.c.h.b16 %v2908
      %v3220 = vunpack.c.l.b16 %v2909
      %v3221 = vunpack.c.h.b16 %v2909
      %v3222 = vunpack.c.l.b16 %v2910
      %v3223 = vunpack.c.h.b16 %v2910
      %v3224 = vunpack.c.l.b16 %v2911
      %v3225 = vunpack.c.h.b16 %v2911
      %v3226 = vunpack.c.l.b16 %v2912
      %v3227 = vunpack.c.h.b16 %v2912
      %v3228 = vunpack.c.l.b16 %v2913
      %v3229 = vunpack.c.h.b16 %v2913
      %v3230 = vunpack.c.l.b16 %v2914
      %v3231 = vunpack.c.h.b16 %v2914
      %v3232 = vunpack.c.l.b16 %v2915
      %v3233 = vunpack.c.h.b16 %v2915
      %v3234 = vunpack.c.l.b16 %v2916
      %v3235 = vunpack.c.h.b16 %v2916
      %v3236 = vunpack.c.l.b16 %v2917
      %v3237 = vunpack.c.h.b16 %v2917
      %v3238 = vunpack.c.l.b16 %v2918
      %v3239 = vunpack.c.h.b16 %v2918
      %v3240 = vunpack.c.l.b16 %v2919
      %v3241 = vunpack.c.h.b16 %v2919
      %v3242 = vunpack.c.l.b16 %v2920
      %v3243 = vunpack.c.h.b16 %v2920
      %v3244 = vunpack.c.l.b16 %v2921
      %v3245 = vunpack.c.h.b16 %v2921
      %v3246 = vunpack.c.l.b16 %v2922
      %v3247 = vunpack.c.h.b16 %v2922
      %v3248 = vunpack.c.l.b16 %v2923
      %v3249 = vunpack.c.h.b16 %v2923
      %v3250 = vunpack.c.l.b16 %v2924
      %v3251 = vunpack.c.h.b16 %v2924
      %v3252 = vunpack.c.l.b16 %v2925
      %v3253 = vunpack.c.h.b16 %v2925
      %v3254 = vunpack.c.l.b16 %v2926
      %v3255 = vunpack.c.h.b16 %v2926
      %v3256 = vunpack.c.l.b16 %v2927
      %v3257 = vunpack.c.h.b16 %v2927
      %v3258 = vunpack.c.l.b16 %v2928
      %v3259 = vunpack.c.h.b16 %v2928
      %v3260 = vunpack.c.l.b16 %v2929
      %v3261 = vunpack.c.h.b16 %v2929
      %v3262 = vunpack.c.l.b16 %v2930
      %v3263 = vunpack.c.h.b16 %v2930
      %v3264 = vunpack.c.l.b16 %v2931
      %v3265 = vunpack.c.h.b16 %v2931
      %v3266 = vunpack.c.l.b16 %v2932
      %v3267 = vunpack.c.h.b16 %v2932
      %v3268 = vunpack.c.l.b16 %v2933
      %v3269 = vunpack.c.h.b16 %v2933
      %v3270 = vunpack.c.l.b16 %v2934
      %v3271 = vunpack.c.h.b16 %v2934
      %v3272 = vunpack.c.l.b16 %v2935
      %v3273 = vunpack.c.h.b16 %v2935
      %v3274 = vunpack.c.l.b16 %v2936
      %v3275 = vunpack.c.h.b16 %v2936
      %v3276 = vunpack.c.l.b16 %v2937
      %v3277 = vunpack.c.h.b16 %v2937
      %v3278 = vunpack.c.l.b16 %v2938
      %v3279 = vunpack.c.h.b16 %v2938
      %v3280 = vunpack.c.l.b16 %v2939
      %v3281 = vunpack.c.h.b16 %v2939
      %v3282 = vunpack.c.l.b16 %v2940
      %v3283 = vunpack.c.h.b16 %v2940
      %v3284 = vunpack.c.l.b16 %v2941
      %v3285 = vunpack.c.h.b16 %v2941
      %v3286 = vunpack.c.l.b16 %v2942
      %v3287 = vunpack.c.h.b16 %v2942
      %v3288 = vunpack.c.l.b16 %v2943
      %v3289 = vunpack.c.h.b16 %v2943
      %v3290 = vunpack.c.l.b16 %v2944
      %v3291 = vunpack.c.h.b16 %v2944
      %v3292 = vunpack.c.l.b16 %v2945
      %v3293 = vunpack.c.h.b16 %v2945
      %v3294 = vunpack.c.l.b16 %v2946
      %v3295 = vunpack.c.h.b16 %v2946
      %v3296 = vunpack.c.l.b16 %v2947
      %v3297 = vunpack.c.h.b16 %v2947
      %v3298 = vunpack.c.l.b16 %v2948
      %v3299 = vunpack.c.h.b16 %v2948
      %v3300 = vunpack.c.l.b16 %v2949
      %v3301 = vunpack.c.h.b16 %v2949
      %v3302 = vunpack.c.l.b16 %v2950
      %v3303 = vunpack.c.h.b16 %v2950
      %v3304 = vunpack.c.l.b16 %v2951
      %v3305 = vunpack.c.h.b16 %v2951
      %v3306 = vunpack.c.l.b16 %v2952
      %v3307 = vunpack.c.h.b16 %v2952
      %v3308 = vunpack.c.l.b16 %v2953
      %v3309 = vunpack.c.h.b16 %v2953
      %v3310 = vunpack.c.l.b16 %v2954
      %v3311 = vunpack.c.h.b16 %v2954
      %v3312 = vunpack.c.l.b16 %v2955
      %v3313 = vunpack.c.h.b16 %v2955
      %v3314 = vunpack.c.l.b16 %v2956
      %v3315 = vunpack.c.h.b16 %v2956
      %v3316 = vunpack.c.l.b16 %v2957
      %v3317 = vunpack.c.h.b16 %v2957
      %v3318 = vunpack.c.l.b16 %v2958
      %v3319 = vunpack.c.h.b16 %v2958
      %v3320 = vunpack.c.l.b16 %v2959
      %v3321 = vunpack.c.h.b16 %v2959
      %v3322 = vunpack.c.l.b16 %v2960
      %v3323 = vunpack.c.h.b16 %v2960
      %v3324 = vunpack.c.l.b16 %v2961
      %v3325 = vunpack.c.h.b16 %v2961
      %v3326 = vunpack.c.l.b16 %v2962
      %v3327 = vunpack.c.h.b16 %v2962
      %v3328 = vunpack.c.l.b16 %v2963
      %v3329 = vunpack.c.h.b16 %v2963
      %v3330 = vunpack.c.l.b16 %v2964
      %v3331 = vunpack.c.h.b16 %v2964
      %v3332 = vunpack.c.l.b16 %v2965
      %v3333 = vunpack.c.h.b16 %v2965
      %v3334 = vunpack.c.l.b16 %v2966
      %v3335 = vunpack.c.h.b16 %v2966
      %v3336 = vunpack.c.l.b16 %v2967
      %v3337 = vunpack.c.h.b16 %v2967
      %v3338 = vunpack.c.l.b16 %v2968
      %v3339 = vunpack.c.h.b16 %v2968
      %v3340 = vunpack.c.l.b16 %v2969
      %v3341 = vunpack.c.h.b16 %v2969
      %v3342 = vunpack.c.l.b16 %v2970
      %v3343 = vunpack.c.h.b16 %v2970
      %v3344 = vunpack.c.l.b16 %v2971
      %v3345 = vunpack.c.h.b16 %v2971
      %v3346 = vunpack.c.l.b16 %v2972
      %v3347 = vunpack.c.h.b16 %v2972
      %v3348 = vunpack.c.l.b16 %v2973
      %v3349 = vunpack.c.h.b16 %v2973
      %v3350 = vunpack.c.l.b16 %v2974
      %v3351 = vunpack.c.h.b16 %v2974
      %v3352 = vunpack.c.l.b16 %v2975
      %v3353 = vunpack.c.h.b16 %v2975
      %v3354 = vunpack.c.l.b16 %v2976
      %v3355 = vunpack.c.h.b16 %v2976
      %v3356 = vunpack.c.l.b16 %v2977
      %v3357 = vunpack.c.h.b16 %v2977
      %v3358 = vunpack.c.l.b16 %v2978
      %v3359 = vunpack.c.h.b16 %v2978
      %v3360 = vunpack.c.l.b16 %v2979
      %v3361 = vunpack.c.h.b16 %v2979
      %v3362 = vunpack.c.l.b16 %v2980
      %v3363 = vunpack.c.h.b16 %v2980
      %v3364 = vunpack.c.l.b16 %v2981
      %v3365 = vunpack.c.h.b16 %v2981
      %v3366 = vunpack.c.l.b16 %v2982
      %v3367 = vunpack.c.h.b16 %v2982
      %v3368 = vunpack.c.l.b16 %v2983
      %v3369 = vunpack.c.h.b16 %v2983
      %v3370 = vunpack.c.l.b16 %v2984
      %v3371 = vunpack.c.h.b16 %v2984
      %v3372 = vunpack.c.l.b16 %v2985
      %v3373 = vunpack.c.h.b16 %v2985
      %v3374 = vunpack.c.l.b16 %v2986
      %v3375 = vunpack.c.h.b16 %v2986
      %v3376 = vunpack.c.l.b16 %v2987
      %v3377 = vunpack.c.h.b16 %v2987
      %v3378 = vunpack.c.l.b16 %v2988
      %v3379 = vunpack.c.h.b16 %v2988
      %v3380 = vunpack.c.l.b16 %v2989
      %v3381 = vunpack.c.h.b16 %v2989
      %v3382 = vunpack.c.l.b16 %v2990
      %v3383 = vunpack.c.h.b16 %v2990
      %v3384 = vunpack.c.l.b16 %v2991
      %v3385 = vunpack.c.h.b16 %v2991
      %v3386 = vunpack.c.l.b16 %v2992
      %v3387 = vunpack.c.h.b16 %v2992
      %v3388 = vunpack.c.l.b16 %v2993
      %v3389 = vunpack.c.h.b16 %v2993
      %v3390 = vunpack.c.l.b16 %v2994
      %v3391 = vunpack.c.h.b16 %v2994
      %v3392 = vunpack.c.l.b16 %v2995
      %v3393 = vunpack.c.h.b16 %v2995
      %v3394 = vunpack.c.l.b16 %v2996
      %v3395 = vunpack.c.h.b16 %v2996
      %v3396 = vunpack.c.l.b16 %v2997
      %v3397 = vunpack.c.h.b16 %v2997
      %v3398 = vunpack.c.l.b16 %v2998
      %v3399 = vunpack.c.h.b16 %v2998
      %v3400 = vunpack.c.l.b16 %v2999
      %v3401 = vunpack.c.h.b16 %v2999
      %v3402 = vunpack.c.l.b16 %v3000
      %v3403 = vunpack.c.h.b16 %v3000
      %v3404 = vunpack.c.l.b16 %v3001
      %v3405 = vunpack.c.h.b16 %v3001
      %v3406 = vunpack.c.l.b16 %v3002
      %v3407 = vunpack.c.h.b16 %v3002
      %v3408 = vunpack.c.l.b16 %v3003
      %v3409 = vunpack.c.h.b16 %v3003
      %v3410 = vpack.c.b16 %v3158, %v3154
      %v3411 = vpack.c.b16 %v3159, %v3155
      %v3412 = vpack.c.b16 %v3160, %v3156
      %v3413 = vpack.c.b16 %v3161, %v3157
      %v3414 = vpack.c.b16 %v3166, %v3162
      %v3415 = vpack.c.b16 %v3167, %v3163
      %v3416 = vpack.c.b16 %v3168, %v3164
      %v3417 = vpack.c.b16 %v3169, %v3165
      %v3418 = vpack.c.b16 %v3174, %v3170
      %v3419 = vpack.c.b16 %v3175, %v3171
      %v3420 = vpack.c.b16 %v3176, %v3172
      %v3421 = vpack.c.b16 %v3177, %v3173
      %v3422 = vpack.c.b16 %v3182, %v3178
      %v3423 = vpack.c.b16 %v3183, %v3179
      %v3424 = vpack.c.b16 %v3184, %v3180
      %v3425 = vpack.c.b16 %v3185, %v3181
      %v3426 = vpack.c.b16 %v3190, %v3186
      %v3427 = vpack.c.b16 %v3191, %v3187
      %v3428 = vpack.c.b16 %v3192, %v3188
      %v3429 = vpack.c.b16 %v3193, %v3189
      %v3430 = vpack.c.b16 %v3198, %v3194
      %v3431 = vpack.c.b16 %v3199, %v3195
      %v3432 = vpack.c.b16 %v3200, %v3196
      %v3433 = vpack.c.b16 %v3201, %v3197
      %v3434 = vpack.c.b16 %v3206, %v3202
      %v3435 = vpack.c.b16 %v3207, %v3203
      %v3436 = vpack.c.b16 %v3208, %v3204
      %v3437 = vpack.c.b16 %v3209, %v3205
      %v3438 = vpack.c.b16 %v3214, %v3210
      %v3439 = vpack.c.b16 %v3215, %v3211
      %v3440 = vpack.c.b16 %v3216, %v3212
      %v3441 = vpack.c.b16 %v3217, %v3213
      %v3442 = vpack.c.b16 %v3222, %v3218
      %v3443 = vpack.c.b16 %v3223, %v3219
      %v3444 = vpack.c.b16 %v3224, %v3220
      %v3445 = vpack.c.b16 %v3225, %v3221
      %v3446 = vpack.c.b16 %v3230, %v3226
      %v3447 = vpack.c.b16 %v3231, %v3227
      %v3448 = vpack.c.b16 %v3232, %v3228
      %v3449 = vpack.c.b16 %v3233, %v3229
      %v3450 = vpack.c.b16 %v3238, %v3234
      %v3451 = vpack.c.b16 %v3239, %v3235
      %v3452 = vpack.c.b16 %v3240, %v3236
      %v3453 = vpack.c.b16 %v3241, %v3237
      %v3454 = vpack.c.b16 %v3246, %v3242
      %v3455 = vpack.c.b16 %v3247, %v3243
      %v3456 = vpack.c.b16 %v3248, %v3244
      %v3457 = vpack.c.b16 %v3249, %v3245
      %v3458 = vpack.c.b16 %v3254, %v3250
      %v3459 = vpack.c.b16 %v3255, %v3251
      %v3460 = vpack.c.b16 %v3256, %v3252
      %v3461 = vpack.c.b16 %v3257, %v3253
      %v3462 = vpack.c.b16 %v3262, %v3258
      %v3463 = vpack.c.b16 %v3263, %v3259
      %v3464 = vpack.c.b16 %v3264, %v3260
      %v3465 = vpack.c.b16 %v3265, %v3261
      %v3466 = vpack.c.b16 %v3270, %v3266
      %v3467 = vpack.c.b16 %v3271, %v3267
      %v3468 = vpack.c.b16 %v3272, %v3268
      %v3469 = vpack.c.b16 %v3273, %v3269
      %v3470 = vpack.c.b16 %v3278, %v3274
      %v3471 = vpack.c.b16 %v3279, %v3275
      %v3472 = vpack.c.b16 %v3280, %v3276
      %v3473 = vpack.c.b16 %v3281, %v3277
      %v3474 = vpack.c.b16 %v3286, %v3282
      %v3475 = vpack.c.b16 %v3287, %v3283
      %v3476 = vpack.c.b16 %v3288, %v3284
      %v3477 = vpack.c.b16 %v3289, %v3285
      %v3478 = vpack.c.b16 %v3294, %v3290
      %v3479 = vpack.c.b16 %v3295, %v3291
      %v3480 = vpack.c.b16 %v3296, %v3292
      %v3481 = vpack.c.b16 %v3297, %v3293
      %v3482 = vpack.c.b16 %v3302, %v3298
      %v3483 = vpack.c.b16 %v3303, %v3299
      %v3484 = vpack.c.b16 %v3304, %v3300
      %v3485 = vpack.c.b16 %v3305, %v3301
      %v3486 = vpack.c.b16 %v3310, %v3306
      %v3487 = vpack.c.b16 %v3311, %v3307
      %v3488 = vpack.c.b16 %v3312, %v3308
      %v3489 = vpack.c.b16 %v3313, %v3309
      %v3490 = vpack.c.b16 %v3318, %v3314
      %v3491 = vpack.c.b16 %v3319, %v3315
      %v3492 = vpack.c.b16 %v3320, %v3316
      %v3493 = vpack.c.b16 %v3321, %v3317
      %v3494 = vpack.c.b16 %v3326, %v3322
      %v3495 = vpack.c.b16 %v3327, %v3323
      %v3496 = vpack.c.b16 %v3328, %v3324
      %v3497 = vpack.c.b16 %v3329, %v3325
      %v3498 = vpack.c.b16 %v3334, %v3330
      %v3499 = vpack.c.b16 %v3335, %v3331
      %v3500 = vpack.c.b16 %v3336, %v3332
      %v3501 = vpack.c.b16 %v3337, %v3333
      %v3502 = vpack.c.b16 %v3342, %v3338
      %v3503 = vpack.c.b16 %v3343, %v3339
      %v3504 = vpack.c.b16 %v3344, %v3340
      %v3505 = vpack.c.b16 %v3345, %v3341
      %v3506 = vpack.c.b16 %v3350, %v3346
      %v3507 = vpack.c.b16 %v3351, %v3347
      %v3508 = vpack.c.b16 %v3352, %v3348
      %v3509 = vpack.c.b16 %v3353, %v3349
      %v3510 = vpack.c.b16 %v3358, %v3354
      %v3511 = vpack.c.b16 %v3359, %v3355
      %v3512 = vpack.c.b16 %v3360, %v3356
      %v3513 = vpack.c.b16 %v3361, %v3357
      %v3514 = vpack.c.b16 %v3366, %v3362
      %v3515 = vpack.c.b16 %v3367, %v3363
      %v3516 = vpack.c.b16 %v3368, %v3364
      %v3517 = vpack.c.b16 %v3369, %v3365
      %v3518 = vpack.c.b16 %v3374, %v3370
      %v3519 = vpack.c.b16 %v3375, %v3371
      %v3520 = vpack.c.b16 %v3376, %v3372
      %v3521 = vpack.c.b16 %v3377, %v3373
      %v3522 = vpack.c.b16 %v3382, %v3378
      %v3523 = vpack.c.b16 %v3383, %v3379
      %v3524 = vpack.c.b16 %v3384, %v3380
      %v3525 = vpack.c.b16 %v3385, %v3381
      %v3526 = vpack.c.b16 %v3390, %v3386
      %v3527 = vpack.c.b16 %v3391, %v3387
      %v3528 = vpack.c.b16 %v3392, %v3388
      %v3529 = vpack.c.b16 %v3393, %v3389
      %v3530 = vpack.c.b16 %v3398, %v3394
      %v3531 = vpack.c.b16 %v3399, %v3395
      %v3532 = vpack.c.b16 %v3400, %v3396
      %v3533 = vpack.c.b16 %v3401, %v3397
      %v3534 = vpack.c.b16 %v3406, %v3402
      %v3535 = vpack.c.b16 %v3407, %v3403
      %v3536 = vpack.c.b16 %v3408, %v3404
      %v3537 = vpack.c.b16 %v3409, %v3405
      %3666 = vmatprep.subr.bf16.mxu0 %v3411
      %3667 = vmatpush1.bf16.msra.mxu0 %v3410
      %3668 = vmatprep.subr.bf16.mxu0 %v3415
      %3669 = vmatpush1.bf16.msra.mxu0 %v3414
      %3670 = vmatprep.subr.bf16.mxu0 %v3419
      %3671 = vmatpush1.bf16.msra.mxu0 %v3418
      %3672 = vmatprep.subr.bf16.mxu0 %v3423
      %3673 = vmatpush1.bf16.msra.mxu0 %v3422
      %3674 = vmatprep.subr.bf16.mxu0 %v3427
      %3675 = vmatpush1.bf16.msra.mxu0 %v3426
      %3676 = vmatprep.subr.bf16.mxu0 %v3431
      %3677 = vmatpush1.bf16.msra.mxu0 %v3430
      %3678 = vmatprep.subr.bf16.mxu0 %v3435
      %3679 = vmatpush1.bf16.msra.mxu0 %v3434
      %3680 = vmatprep.subr.bf16.mxu0 %v3439
      %3681 = vmatpush1.bf16.msra.mxu0 %v3438
      %3682 = vmatprep.subr.bf16.mxu0 %v3443
      %3683 = vmatpush1.bf16.msra.mxu0 %v3442
      %3684 = vmatprep.subr.bf16.mxu0 %v3447
      %3685 = vmatpush1.bf16.msra.mxu0 %v3446
      %3686 = vmatprep.subr.bf16.mxu0 %v3451
      %3687 = vmatpush1.bf16.msra.mxu0 %v3450
      %3688 = vmatprep.subr.bf16.mxu0 %v3455
      %3689 = vmatpush1.bf16.msra.mxu0 %v3454
      %3690 = vmatprep.subr.bf16.mxu0 %v3459
      %3691 = vmatpush1.bf16.msra.mxu0 %v3458
      %3692 = vmatprep.subr.bf16.mxu0 %v3463
      %3693 = vmatpush1.bf16.msra.mxu0 %v3462
      %3694 = vmatprep.subr.bf16.mxu0 %v3467
      %3695 = vmatpush1.bf16.msra.mxu0 %v3466
      %3696 = vmatprep.subr.bf16.mxu0 %v3471
      %3697 = vmatpush1.bf16.msra.mxu0 %v3470
      %3698 = vmatprep.mubr.bf16.mxu0 %v2873
      %3699 = vmatmul.mubr.bf16.gmra.mrb[0].mxu0 %v2872
      %v3700 = vpop.f32.mrb[0].mxu0
      %v3701 = vadd.f32 %v3009, %v3700
      %v3702 = vpop.f32.mrb[0].mxu0
      %v3703 = vadd.f32 %v3013, %v3702
      %v3704 = vpop.f32.mrb[0].mxu0
      %v3705 = vadd.f32 %v3009, %v3704
      %v3706 = vpop.f32.mrb[0].mxu0
      %v3707 = vadd.f32 %v3013, %v3706
      %3708 = vdwg.mxu0
      %3709 = vmatprep.subr.bf16.mxu0 %v3475
      %3710 = vmatpush1.bf16.msra.mxu0 %v3474
      %3711 = vmatprep.subr.bf16.mxu0 %v3479
      %3712 = vmatpush1.bf16.msra.mxu0 %v3478
      %3713 = vmatprep.subr.bf16.mxu0 %v3483
      %3714 = vmatpush1.bf16.msra.mxu0 %v3482
      %3715 = vmatprep.subr.bf16.mxu0 %v3487
      %3716 = vmatpush1.bf16.msra.mxu0 %v3486
      %3717 = vmatprep.subr.bf16.mxu0 %v3491
      %3718 = vmatpush1.bf16.msra.mxu0 %v3490
      %3719 = vmatprep.subr.bf16.mxu0 %v3495
      %3720 = vmatpush1.bf16.msra.mxu0 %v3494
      %3721 = vmatprep.subr.bf16.mxu0 %v3499
      %3722 = vmatpush1.bf16.msra.mxu0 %v3498
      %3723 = vmatprep.subr.bf16.mxu0 %v3503
      %3724 = vmatpush1.bf16.msra.mxu0 %v3502
      %3725 = vmatprep.subr.bf16.mxu0 %v3507
      %3726 = vmatpush1.bf16.msra.mxu0 %v3506
      %3727 = vmatprep.subr.bf16.mxu0 %v3511
      %3728 = vmatpush1.bf16.msra.mxu0 %v3510
      %3729 = vmatprep.subr.bf16.mxu0 %v3515
      %3730 = vmatpush1.bf16.msra.mxu0 %v3514
      %3731 = vmatprep.subr.bf16.mxu0 %v3519
      %3732 = vmatpush1.bf16.msra.mxu0 %v3518
      %3733 = vmatprep.subr.bf16.mxu0 %v3523
      %3734 = vmatpush1.bf16.msra.mxu0 %v3522
      %3735 = vmatprep.subr.bf16.mxu0 %v3527
      %3736 = vmatpush1.bf16.msra.mxu0 %v3526
      %3737 = vmatprep.subr.bf16.mxu0 %v3531
      %3738 = vmatpush1.bf16.msra.mxu0 %v3530
      %3739 = vmatprep.subr.bf16.mxu0 %v3535
      %3740 = vmatpush1.bf16.msra.mxu0 %v3534
      %3741 = vmatprep.mubr.bf16.mxu0 %v2875
      %3742 = vmatmul.mubr.bf16.gmra.mrb[0].mxu0 %v2874
      %v3743 = vpop.f32.mrb[0].mxu0
      %v3744 = vadd.f32 %v3701, %v3743
      %v3745 = vpop.f32.mrb[0].mxu0
      %v3746 = vadd.f32 %v3703, %v3745
      %v3747 = vpop.f32.mrb[0].mxu0
      %v3748 = vadd.f32 %v3705, %v3747
      %v3749 = vpop.f32.mrb[0].mxu0
      %v3750 = vadd.f32 %v3707, %v3749
      %3751 = vdwg.mxu0
      %3752 = vmatprep.subr.bf16.mxu0 %v3413
      %3753 = vmatpush1.bf16.msra.mxu0 %v3412
      %3754 = vmatprep.subr.bf16.mxu0 %v3417
      %3755 = vmatpush1.bf16.msra.mxu0 %v3416
      %3756 = vmatprep.subr.bf16.mxu0 %v3421
      %3757 = vmatpush1.bf16.msra.mxu0 %v3420
      %3758 = vmatprep.subr.bf16.mxu0 %v3425
      %3759 = vmatpush1.bf16.msra.mxu0 %v3424
      %3760 = vmatprep.subr.bf16.mxu0 %v3429
      %3761 = vmatpush1.bf16.msra.mxu0 %v3428
      %3762 = vmatprep.subr.bf16.mxu0 %v3433
      %3763 = vmatpush1.bf16.msra.mxu0 %v3432
      %3764 = vmatprep.subr.bf16.mxu0 %v3437
      %3765 = vmatpush1.bf16.msra.mxu0 %v3436
      %3766 = vmatprep.subr.bf16.mxu0 %v3441
      %3767 = vmatpush1.bf16.msra.mxu0 %v3440
      %3768 = vmatprep.subr.bf16.mxu0 %v3445
      %3769 = vmatpush1.bf16.msra.mxu0 %v3444
      %3770 = vmatprep.subr.bf16.mxu0 %v3449
      %3771 = vmatpush1.bf16.msra.mxu0 %v3448
      %3772 = vmatprep.subr.bf16.mxu0 %v3453
      %3773 = vmatpush1.bf16.msra.mxu0 %v3452
      %3774 = vmatprep.subr.bf16.mxu0 %v3457
      %3775 = vmatpush1.bf16.msra.mxu0 %v3456
      %3776 = vmatprep.subr.bf16.mxu0 %v3461
      %3777 = vmatpush1.bf16.msra.mxu0 %v3460
      %3778 = vmatprep.subr.bf16.mxu0 %v3465
      %3779 = vmatpush1.bf16.msra.mxu0 %v3464
      %3780 = vmatprep.subr.bf16.mxu0 %v3469
      %3781 = vmatpush1.bf16.msra.mxu0 %v3468
      %3782 = vmatprep.subr.bf16.mxu0 %v3473
      %3783 = vmatpush1.bf16.msra.mxu0 %v3472
      %3784 = vmatprep.mubr.bf16.mxu0 %v2873
      %3785 = vmatmul.mubr.bf16.gmra.mrb[0].mxu0 %v2872
      %v3786 = vpop.f32.mrb[0].mxu0
      %v3787 = vadd.f32 %v3017, %v3786
      %v3788 = vpop.f32.mrb[0].mxu0
      %v3789 = vadd.f32 %v3021, %v3788
      %v3790 = vpop.f32.mrb[0].mxu0
      %v3791 = vadd.f32 %v3017, %v3790
      %v3792 = vpop.f32.mrb[0].mxu0
      %v3793 = vadd.f32 %v3021, %v3792
      %3794 = vdwg.mxu0
      %3795 = vmatprep.subr.bf16.mxu0 %v3477
      %3796 = vmatpush1.bf16.msra.mxu0 %v3476
      %3797 = vmatprep.subr.bf16.mxu0 %v3481
      %3798 = vmatpush1.bf16.msra.mxu0 %v3480
      %3799 = vmatprep.subr.bf16.mxu0 %v3485
      %3800 = vmatpush1.bf16.msra.mxu0 %v3484
      %3801 = vmatprep.subr.bf16.mxu0 %v3489
      %3802 = vmatpush1.bf16.msra.mxu0 %v3488
      %3803 = vmatprep.subr.bf16.mxu0 %v3493
      %3804 = vmatpush1.bf16.msra.mxu0 %v3492
      %3805 = vmatprep.subr.bf16.mxu0 %v3497
      %3806 = vmatpush1.bf16.msra.mxu0 %v3496
      %3807 = vmatprep.subr.bf16.mxu0 %v3501
      %3808 = vmatpush1.bf16.msra.mxu0 %v3500
      %3809 = vmatprep.subr.bf16.mxu0 %v3505
      %3810 = vmatpush1.bf16.msra.mxu0 %v3504
      %3811 = vmatprep.subr.bf16.mxu0 %v3509
      %3812 = vmatpush1.bf16.msra.mxu0 %v3508
      %3813 = vmatprep.subr.bf16.mxu0 %v3513
      %3814 = vmatpush1.bf16.msra.mxu0 %v3512
      %3815 = vmatprep.subr.bf16.mxu0 %v3517
      %3816 = vmatpush1.bf16.msra.mxu0 %v3516
      %3817 = vmatprep.subr.bf16.mxu0 %v3521
      %3818 = vmatpush1.bf16.msra.mxu0 %v3520
      %3819 = vmatprep.subr.bf16.mxu0 %v3525
      %3820 = vmatpush1.bf16.msra.mxu0 %v3524
      %3821 = vmatprep.subr.bf16.mxu0 %v3529
      %3822 = vmatpush1.bf16.msra.mxu0 %v3528
      %3823 = vmatprep.subr.bf16.mxu0 %v3533
      %3824 = vmatpush1.bf16.msra.mxu0 %v3532
      %3825 = vmatprep.subr.bf16.mxu0 %v3537
      %3826 = vmatpush1.bf16.msra.mxu0 %v3536
      %3827 = vmatprep.mubr.bf16.mxu0 %v2875
      %3828 = vmatmul.mubr.bf16.gmra.mrb[0].mxu0 %v2874
      %v3829 = vpop.f32.mrb[0].mxu0
      %v3830 = vadd.f32 %v3787, %v3829
      %v3831 = vpop.f32.mrb[0].mxu0
      %v3832 = vadd.f32 %v3789, %v3831
      %v3833 = vpop.f32.mrb[0].mxu0
      %v3834 = vadd.f32 %v3791, %v3833
      %v3835 = vpop.f32.mrb[0].mxu0
      %v3836 = vadd.f32 %v3793, %v3835
      %3837 = vdwg.mxu0
      %v3838 = vmul.f32 %v3744, 0.2
      %v3839 = vmul.f32 %v3746, 0.2
      %v3840 = vmul.f32 %v3830, 0.2
      %v3841 = vmul.f32 %v3832, 0.2
      %v3842 = vmul.f32 %v3748, 0.2
      %v3843 = vmul.f32 %v3750, 0.2
      %v3844 = vmul.f32 %v3834, 0.2
      %v3845 = vmul.f32 %v3836, 0.2
      %v3846 = vmax.f32 %v3744, %v3838
      %v3847 = vmax.f32 %v3746, %v3839
      %v3848 = vmax.f32 %v3830, %v3840
      %v3849 = vmax.f32 %v3832, %v3841
      %v3850 = vmax.f32 %v3748, %v3842
      %v3851 = vmax.f32 %v3750, %v3843
      %v3852 = vmax.f32 %v3834, %v3844
      %v3853 = vmax.f32 %v3836, %v3845
      %v3854 = vld [vmem:[%s9] sm:$0xf]
      %v3856 = vlaneseq
      %v3857 = vshrl.u32 %v3856, 7
      %v3858 = vsub.s32 0, %v3857
      %v3859 = vrot.slane %v3854, %v3858
      %v3860 = vlaneseq
      %v3861 = vshrl.u32 %v3860, 7
      %v3862 = vsub.s32 1, %v3861
      %v3863 = vrot.slane %v3854, %v3862
      %v3864 = vlaneseq
      %v3865 = vshrl.u32 %v3864, 7
      %v3866 = vsub.s32 2, %v3865
      %v3867 = vrot.slane %v3854, %v3866
      %v3868 = vlaneseq
      %v3869 = vshrl.u32 %v3868, 7
      %v3870 = vsub.s32 3, %v3869
      %v3871 = vrot.slane %v3854, %v3870
      %v3876 = vmul.f32 %v3846, %v3859
      %v3877 = vmul.f32 %v3847, %v3863
      %v3878 = vmul.f32 %v3848, %v3867
      %v3879 = vmul.f32 %v3849, %v3871
      %v3880 = vmul.f32 %v3850, %v3859
      %v3881 = vmul.f32 %v3851, %v3863
      %v3882 = vmul.f32 %v3852, %v3867
      %v3883 = vmul.f32 %v3853, %v3871
      %v3884 = vadd.f32 %v3876, %v3877
      %v3885 = vadd.f32 %v3884, %v3878
      %v3886 = vadd.f32 %v3885, %v3879
      %3887 = vadd.xlane.f32.xlu0 %v3886
      %v3888 = vpop.xlane.xlu0 %3887
      %v3889 = vadd.f32 %v3880, %v3881
      %v3890 = vadd.f32 %v3889, %v3882
      %v3891 = vadd.f32 %v3890, %v3883
      %3892 = vadd.xlane.f32.xlu0 %v3891
      %v3893 = vpop.xlane.xlu0 %3892
      %s3894 = sld [smem:[#allocation2]]
      %v3895 = vstv %s3894
      %v3896 = vadd.f32 %v3888, %v3895
      %v3897 = vadd.f32 %v3893, %v3895
      %v3898 = vsub.f32 0.0, %v3896
      %v3899 = vsub.f32 0.0, %v3897
      %v3900 = vmul.f32 %v3898, 1.442695
      %v3901 = vpow.pop %v3900
      %v3902 = vmul.f32 %v3899, 1.442695
      %v3903 = vpow.pop %v3902
      %v3904 = vadd.f32 %v3901, 1.0
      %v3905 = vadd.f32 %v3903, 1.0
      %v3906 = vrcp.pop %v3904
      %v3907 = vmul.f32 1.0, %v3906
      %v3908 = vrcp.pop %v3905
      %v3909 = vmul.f32 1.0, %v3908
      %vm3910 = vcmask 7168
      %3911 = vst.msk [vmem:[%s392] sm:$0xff] %vm3910, %v3907
      %3912 = vst.msk [vmem:[%s392 + $0x8] sm:$0xff] %vm3910, %v3909
      %s3913 = smul.u32 2, %s23
      %p3914 = scmp.lt.s32.totalorder %s3913, 3
      %s3915 = scalar_select %p3914, %s3913, 3
      %s3916 = smul.addr %s3915, 8
      %s3917 = scalar_lea.vmem %s11, %s3916
      // Predicated region
      $region65: #{discriminator_forward.1} parent=63 // pred_check
        %p3918 = pneg %p277
      $region66: #{discriminator_forward.1} parent=63 // pred_check_branch
        %3920 = sbr.rel (%p3918) target = $region68
      $region67: #{discriminator_forward.1} parent=63 // pred_region
        %s3921 = smul.u32 2, %s23
      $region68: #{discriminator_forward.1} parent=63 // pred_fallthru
        _
    $region64: #{discriminator_forward.1} parent=5 // pred_fallthru
      _
    %p3922 = scmp.le.s32.totalorder 2, %s18
    // Predicated region
    $region69: #{discriminator_forward.1} parent=5 // pred_check
      %p3923 = pneg %p3922
    $region70: #{discriminator_forward.1} parent=5 // pred_check_branch
      %3925 = sbr.rel (%p3923) target = $region72
    $region71: #{discriminator_forward.1} parent=5 // pred_region
      %s3926 = ssub.s32 %s18, 2
      // Predicated region
      $region73: #{discriminator_forward.1} parent=71 // pred_check
        %p3927 = pneg %p283
      $region74: #{discriminator_forward.1} parent=71 // pred_check_branch
        %3929 = sbr.rel (%p3927) target = $region76
      $region75: #{discriminator_forward.1} parent=71 // pred_region
        %s3930 = smul.u32 2, %s24
        %p3931 = scmp.lt.s32.totalorder %s3930, 3
        %s3932 = scalar_select %p3931, %s3930, 3
        %s3933 = smul.addr %s3932, 8
        %s3934 = scalar_lea.vmem %s11, %s3933
      $region76: #{discriminator_forward.1} parent=71 // pred_fallthru
        _
    $region72: #{discriminator_forward.1} parent=5 // pred_fallthru
      _
  $region6: #{discriminator_forward.1} parent=0 // loop_footer
    %s22 = sadd.s32 1, %s18
  $region7: #{discriminator_forward.1} parent=0 // loop_footer_branch
    %17 = sbr.rel target = $region3
  $region8: #{discriminator_forward.1} parent=0 // loop_exit
    _

</llo_original>
